<compile_context>
chip_gen: v7x
topology: tpu7x:2x2x1
jax: 0.10.0
libtpu: 0.0.40
codegen_flags: <defaults>
</compile_context>

<pallas_src>
import jax
import jax.numpy as jnp
from jax import lax
from jax.experimental import pallas as pl
from jax.experimental.pallas import tpu as pltpu

HPARAMS = {"nodes": 32, "layers": 3}

_LANE = 128


def _round_up(n, m):
    return ((n + m - 1) // m) * m


def _cdiv(a, b):
    return -(-a // b)


def _make_kernel(nodes, n_hidden, vec_base):
    """Kernel over one [1, bt] batch tile; all params in one [nodes, width] slab.

    Slab columns: [0 .. n_hidden*nodes)            hidden weights W1..WL ([out,in])
                  vec_base + 0 / 1                 w0 (first-layer weight), b0
                  vec_base + 2 .. 2+n_hidden       b1..bL
                  vec_base + 2+n_hidden / 3+n_hid  w4T (last-layer weight), b4 (row 0)
    """

    def kernel(x_ref, p_ref, o_ref):
        p = p_ref[...]                                    # [nodes, width], one slab load
        x = x_ref[...]                                    # [1, bt], batch on lanes

        # Layer 0: Linear(1, nodes). K=1 -> rank-1 VPU broadcast multiply (no MXU).
        w0 = p[:, vec_base:vec_base + 1]                  # [nodes, 1]
        b0 = p[:, vec_base + 1:vec_base + 2]              # [nodes, 1]
        h = jnp.maximum(w0 * x + b0, 0.0)                 # [nodes, bt]

        # Hidden layers: W[nodes,nodes] @ h[nodes,bt]; MXU N = full lane-wide tile.
        # precision=HIGHEST pins true-f32 passes (not silently bf16).
        for l in range(n_hidden):
            W = p[:, l * nodes:(l + 1) * nodes]           # [nodes, nodes]
            b = p[:, vec_base + 2 + l:vec_base + 3 + l]   # [nodes, 1]
            h = jnp.dot(W, h,
                        precision=lax.Precision.HIGHEST,
                        preferred_element_type=jnp.float32) + b
            h = jnp.maximum(h, 0.0)

        # Output layer: Linear(nodes, 1). N=1 -> VPU multiply + sublane reduce (XLU).
        w4 = p[:, vec_base + 2 + n_hidden:vec_base + 3 + n_hidden]    # [nodes, 1]
        b4 = p[0:1, vec_base + 3 + n_hidden:vec_base + 4 + n_hidden]  # [1, 1]
        o_ref[...] = (jnp.sum(w4 * h, axis=0, keepdims=True) + b4).astype(o_ref.dtype)

    return kernel


def _pack_params(params, nodes, n_hidden, vec_base, width):
    """Pack all (weight, bias) pairs into a single [nodes, width] f32 slab."""
    (w0, b0) = params[0]
    hidden = params[1:-1]
    (w4, b4) = params[-1]

    slab = jnp.zeros((nodes, width), jnp.float32)
    for l, (w, _) in enumerate(hidden):
        slab = slab.at[:, l * nodes:(l + 1) * nodes].set(w)       # native [out, in]
    slab = slab.at[:, vec_base].set(w0[:, 0])                     # Linear(1,nodes) weight
    slab = slab.at[:, vec_base + 1].set(b0)
    for l, (_, b) in enumerate(hidden):
        slab = slab.at[:, vec_base + 2 + l].set(b)
    slab = slab.at[:, vec_base + 2 + n_hidden].set(w4[0, :])      # Linear(nodes,1) weight^T
    slab = slab.at[0, vec_base + 3 + n_hidden].set(b4[0])
    return slab


def mlp_forward(x, params, *, batch_tile=8192):
    """x: [B, 1] float32; params: list of (weight[out,in], bias[out]) like nn.Linear."""
    B = x.shape[0]
    nodes = params[0][0].shape[0]
    n_hidden = len(params) - 2

    # --- tiling: batch on the 128-lane axis, large tiles, >= 2 grid steps when possible
    nchunks = _cdiv(B, _LANE)                      # number of 128-lane batch chunks
    cpt_cap = max(1, batch_tile // _LANE)          # cap on chunks per tile
    if nchunks >= 2:
        # keep at least 2 grid steps so the "parallel" axis can use both TCs on v7x
        cpt = min(cpt_cap, _cdiv(nchunks, 2))
    else:
        cpt = 1
    bt = cpt * _LANE
    nsteps = _cdiv(nchunks, cpt)
    Bp = nsteps * bt

    # Batch on lanes: [1, Bp]; zero-padded tail rows are computed then sliced off.
    x_t = jnp.zeros((1, Bp), jnp.float32).at[0, :B].set(x[:, 0])

    # One packed parameter slab (eliminates ~10 tiny DMAs / double-buffer pairs).
    vec_base = n_hidden * nodes
    width = _round_up(vec_base + n_hidden + 4, _LANE)
    slab = _pack_params(params, nodes, n_hidden, vec_base, width)

    kernel = _make_kernel(nodes, n_hidden, vec_base)

    cost = pl.CostEstimate(
        flops=2 * Bp * (nodes + n_hidden * nodes * nodes + nodes),
        transcendentals=0,
        bytes_accessed=8 * Bp + 4 * nodes * width,
    )

    out_t = pl.pallas_call(
        kernel,
        out_shape=jax.ShapeDtypeStruct((1, Bp), jnp.float32),
        grid_spec=pltpu.PrefetchScalarGridSpec(
            num_scalar_prefetch=0,
            grid=(nsteps,),
            in_specs=[
                pl.BlockSpec((1, bt), lambda i: (0, i)),          # lane-dense x tile
                pl.BlockSpec((nodes, width), lambda i: (0, 0)),   # resident param slab
            ],
            out_specs=pl.BlockSpec((1, bt), lambda i: (0, i)),    # lane-dense o tile
        ),
        compiler_params=pltpu.CompilerParams(
            dimension_semantics=("parallel",),
            vmem_limit_bytes=32 << 20,   # explicit budget: safe on v5e/v6e/v7x
        ),
        cost_estimate=cost,
    )(x_t, slab)

    return out_t[0, :B].reshape(B, 1)


def init_params(key, hparams):
    """PyTorch-style init: weight [out, in], bias [out], U(-1/sqrt(in), 1/sqrt(in))."""
    nodes, layers = hparams["nodes"], hparams["layers"]
    dims = [(1, nodes)] + [(nodes, nodes)] * layers + [(nodes, 1)]
    params = []
    for (fan_in, fan_out) in dims:
        key, kw, kb = jax.random.split(key, 3)
        bound = float(fan_in) ** -0.5
        w = jax.random.uniform(kw, (fan_out, fan_in), jnp.float32, -bound, bound)
        b = jax.random.uniform(kb, (fan_out,), jnp.float32, -bound, bound)
        params.append((w, b))
    return params


def mlp_reference(x, params):
    h = x
    for i, (w, b) in enumerate(params):
        h = h @ w.T + b
        if i < len(params) - 1:
            h = jnp.maximum(h, 0.0)
    return h


if __name__ == "__main__":
    key = jax.random.PRNGKey(0)
    key, kx = jax.random.split(key)

    batch = 1024                      # -> 2 parallel grid steps of 512 rows each
    x = jax.random.normal(kx, (batch, 1), jnp.float32)
    params = init_params(key, HPARAMS)

    out = jax.block_until_ready(mlp_forward(x, params))

    ref = mlp_reference(x, params)
    assert out.shape == (batch, 1)
    assert jnp.allclose(out, ref, atol=1e-5, rtol=1e-4), \
        float(jnp.max(jnp.abs(out - ref)))

    print("KERNEL_OK")
</pallas_src>

<mosaic_0001>
module attributes {stable_mosaic.version = 11 : i64} {
  func.func @kernel(%arg0: i32, %arg1: memref<1x512xf32, #tpu.memory_space<vmem>>, %arg2: memref<32x128xf32, #tpu.memory_space<vmem>>, %arg3: memref<1x512xf32, #tpu.memory_space<vmem>>) attributes {dimension_semantics = [#tpu.dimension_semantics<parallel>], iteration_bounds = array<i64: 2>, scalar_prefetch = 0 : i64, scratch_operands = 0 : i64, tpu.core_type = #tpu.core_type<tc>, window_params = [{transform_indices = @transform_0, window_bounds = array<i64: 1, 512>}, {pipeline_mode = #tpu.pipeline_mode<synchronous>, transform_indices = @transform_1, window_bounds = array<i64: 32, 128>}, {transform_indices = @transform_2, window_bounds = array<i64: 1, 512>}]} {
    %c0 = arith.constant 0 : index
    %c0_0 = arith.constant 0 : index
    %0 = vector.load %arg2[%c0, %c0_0] : memref<32x128xf32, #tpu.memory_space<vmem>>, vector<32x128xf32>
    %c0_1 = arith.constant 0 : index
    %c0_2 = arith.constant 0 : index
    %1 = vector.load %arg1[%c0_1, %c0_2] : memref<1x512xf32, #tpu.memory_space<vmem>>, vector<1x512xf32>
    %2 = vector.extract_strided_slice %0 {offsets = [0, 96], sizes = [32, 1], strides = [1, 1]} : vector<32x128xf32> to vector<32x1xf32>
    %3 = vector.extract_strided_slice %0 {offsets = [0, 97], sizes = [32, 1], strides = [1, 1]} : vector<32x128xf32> to vector<32x1xf32>
    %4 = vector.broadcast %2 : vector<32x1xf32> to vector<32x512xf32>
    %5 = vector.broadcast %1 : vector<1x512xf32> to vector<32x512xf32>
    %6 = arith.mulf %4, %5 : vector<32x512xf32>
    %7 = vector.broadcast %3 : vector<32x1xf32> to vector<32x512xf32>
    %8 = arith.addf %6, %7 : vector<32x512xf32>
    %cst = arith.constant 0.000000e+00 : f32
    %9 = vector.broadcast %cst : f32 to vector<32x512xf32>
    %10 = arith.maximumf %8, %9 : vector<32x512xf32>
    %11 = vector.extract_strided_slice %0 {offsets = [0, 0], sizes = [32, 32], strides = [1, 1]} : vector<32x128xf32> to vector<32x32xf32>
    %12 = vector.extract_strided_slice %0 {offsets = [0, 98], sizes = [32, 1], strides = [1, 1]} : vector<32x128xf32> to vector<32x1xf32>
    %cst_3 = arith.constant dense<0.000000e+00> : vector<32x512xf32>
    %13 = tpu.matmul %11, %10, %cst_3 {dimension_numbers = #tpu.dot_dimension_numbers<[1], [0], [0], [1], [0, 0, 1, 1], [], []>, precision = #tpu.contract_precision<fp32>} : vector<32x32xf32>, vector<32x512xf32>, vector<32x512xf32> -> vector<32x512xf32>
    %14 = vector.broadcast %12 : vector<32x1xf32> to vector<32x512xf32>
    %15 = arith.addf %13, %14 : vector<32x512xf32>
    %cst_4 = arith.constant 0.000000e+00 : f32
    %16 = vector.broadcast %cst_4 : f32 to vector<32x512xf32>
    %17 = arith.maximumf %15, %16 : vector<32x512xf32>
    %18 = vector.extract_strided_slice %0 {offsets = [0, 32], sizes = [32, 32], strides = [1, 1]} : vector<32x128xf32> to vector<32x32xf32>
    %19 = vector.extract_strided_slice %0 {offsets = [0, 99], sizes = [32, 1], strides = [1, 1]} : vector<32x128xf32> to vector<32x1xf32>
    %cst_5 = arith.constant dense<0.000000e+00> : vector<32x512xf32>
    %20 = tpu.matmul %18, %17, %cst_5 {dimension_numbers = #tpu.dot_dimension_numbers<[1], [0], [0], [1], [0, 0, 1, 1], [], []>, precision = #tpu.contract_precision<fp32>} : vector<32x32xf32>, vector<32x512xf32>, vector<32x512xf32> -> vector<32x512xf32>
    %21 = vector.broadcast %19 : vector<32x1xf32> to vector<32x512xf32>
    %22 = arith.addf %20, %21 : vector<32x512xf32>
    %cst_6 = arith.constant 0.000000e+00 : f32
    %23 = vector.broadcast %cst_6 : f32 to vector<32x512xf32>
    %24 = arith.maximumf %22, %23 : vector<32x512xf32>
    %25 = vector.extract_strided_slice %0 {offsets = [0, 64], sizes = [32, 32], strides = [1, 1]} : vector<32x128xf32> to vector<32x32xf32>
    %26 = vector.extract_strided_slice %0 {offsets = [0, 100], sizes = [32, 1], strides = [1, 1]} : vector<32x128xf32> to vector<32x1xf32>
    %cst_7 = arith.constant dense<0.000000e+00> : vector<32x512xf32>
    %27 = tpu.matmul %25, %24, %cst_7 {dimension_numbers = #tpu.dot_dimension_numbers<[1], [0], [0], [1], [0, 0, 1, 1], [], []>, precision = #tpu.contract_precision<fp32>} : vector<32x32xf32>, vector<32x512xf32>, vector<32x512xf32> -> vector<32x512xf32>
    %28 = vector.broadcast %26 : vector<32x1xf32> to vector<32x512xf32>
    %29 = arith.addf %27, %28 : vector<32x512xf32>
    %cst_8 = arith.constant 0.000000e+00 : f32
    %30 = vector.broadcast %cst_8 : f32 to vector<32x512xf32>
    %31 = arith.maximumf %29, %30 : vector<32x512xf32>
    %32 = vector.extract_strided_slice %0 {offsets = [0, 101], sizes = [32, 1], strides = [1, 1]} : vector<32x128xf32> to vector<32x1xf32>
    %33 = vector.extract_strided_slice %0 {offsets = [0, 102], sizes = [1, 1], strides = [1, 1]} : vector<32x128xf32> to vector<1x1xf32>
    %34 = vector.broadcast %32 : vector<32x1xf32> to vector<32x512xf32>
    %35 = arith.mulf %34, %31 : vector<32x512xf32>
    %cst_9 = arith.constant dense<0.000000e+00> : vector<512xf32>
    %36 = vector.multi_reduction <add>, %35, %cst_9 [0] : vector<32x512xf32> to vector<512xf32>
    %37 = vector.shape_cast %36 : vector<512xf32> to vector<1x512xf32>
    %38 = vector.broadcast %33 : vector<1x1xf32> to vector<1x512xf32>
    %39 = arith.addf %37, %38 : vector<1x512xf32>
    %c0_10 = arith.constant 0 : index
    %c0_11 = arith.constant 0 : index
    %40 = vector.load %arg3[%c0_10, %c0_11] : memref<1x512xf32, #tpu.memory_space<vmem>>, vector<1x512xf32>
    tpu.vector_store %arg3[%c0_10, %c0_11], %39 {strides = array<i32>} : memref<1x512xf32, #tpu.memory_space<vmem>>, vector<1x512xf32>,
    return
  }
  func.func @transform_0(%arg0: i32) -> (i32, i32) {
    %c0_i32 = arith.constant 0 : i32
    %c0_i32_0 = arith.constant 0 : i32
    return %c0_i32, %arg0 : i32, i32
  }
  func.func @transform_1(%arg0: i32) -> (i32, i32) {
    %c0_i32 = arith.constant 0 : i32
    %c0_i32_0 = arith.constant 0 : i32
    %c0_i32_1 = arith.constant 0 : i32
    return %c0_i32, %c0_i32_0 : i32, i32
  }
  func.func @transform_2(%arg0: i32) -> (i32, i32) {
    %c0_i32 = arith.constant 0 : i32
    %c0_i32_0 = arith.constant 0 : i32
    return %c0_i32, %arg0 : i32, i32
  }
}

</mosaic_0001>

<llo_original>
// kernel: tpu_custom_call.1
$region0: #{tpu_custom_call.1}
  #allocation0 [shape = 'u32[]', space=smem, size = 0x4, offset = 0x4, fixed_abs, tag = 'smem constant byte address 0x4 - core index']
  #allocation1 [shape = 'u32[144,128]{1,0:T(1,128)}', space=vmem, size = 0x12000, scoped, tag = 'internal scratch']
  %s0 = inlined_call_operand.hbm [shape: f32[1,1024], index: 0, kind: input, shape index: {}]
  %s1 = inlined_call_operand.hbm [shape: f32[32,128], index: 1, kind: input, shape index: {}]
  %s2 = inlined_call_operand.hbm [shape: f32[1,1024], index: 2, kind: output, shape index: {}]
  %s3 = sld [smem:[#allocation0]]
  $region49: #{tpu_custom_call.1} parent=0
    _
  %s5 = ssub.s32 1, %s3
  %s6 = scalar_select 0, %s5, %s3
  $region1: #{tpu_custom_call.1} parent=0
    #allocation2 [shape = 'u8[4096]{0}', space=vmem, size = 0x1000, scoped, tag = 'input window, operand 0']
    #allocation3 [shape = 's32[2]{0}', space=sflag, size = 0x8, scoped, tag = 'scoped memory for tpu_custom_call.1']
    #allocation4 [shape = 's32[2]{0}', space=sflag, size = 0x8, scoped, tag = 'scoped memory for tpu_custom_call.1']
    #allocation5 [shape = 'u8[16384]{0}', space=vmem, size = 0x4000, scoped, tag = 'input window, operand 1, single buffered']
    #allocation6 [shape = 's32[1]{0}', space=sflag, size = 0x4, scoped, tag = 'scoped memory for tpu_custom_call.1']
    #allocation7 [shape = 'u8[4096]{0}', space=vmem, size = 0x1000, scoped, tag = 'output window, operand 0']
    %7 = vsyncpa [#allocation3], 0
    %s8 = scalar_lea.sflag [#allocation3], 1
    %9 = vsyncpa %s8, 0
    %10 = vsyncpa [#allocation6], 0
    %11 = vsyncpa [#allocation4], 0
    %s12 = scalar_lea.sflag [#allocation4], 1
    %13 = vsyncpa %s12, 0
    loop: start=0, step=1, limit=4
    $region2: #{tpu_custom_call.1} parent=1 // loop_pre_header
      _
    $region3: #{tpu_custom_call.1} parent=1 // loop_header
      %s15 = sphi 0, %s19
      %p16 = scmp.ge.s32.totalorder %s15, 4
      %s25 = sphi 0, %s27
      %s28 = sphi 0, %s25
      %s29 = sphi 0, %s28
      %s45 = sphi 0, %s29
      %s49 = sphi 0, %s49
      %s51 = sphi 0, %s49
      %s52 = sphi 0, %s51
      %s66 = sphi 0, %s52
      %s72 = sphi 0, %s74
      %s75 = sphi 0, %s72
      %s76 = sphi 0, %s75
      %s92 = sphi 0, %s76
    $region4: #{tpu_custom_call.1} parent=1 // loop_header_branch
      %18 = sbr.rel (%p16) target = $region8
    $region5: #{tpu_custom_call.1} parent=1 // loop_body
      %s20 = ssub.s32 %s15, 1
      %s21 = ssub.s32 %s15, 2
      %s22 = sadd.s32 %s15, 1
      %s23 = ssub.s32 %s15, %s22
      %p24 = scmp.eq.s32.totalorder %s23, 0
      %s26 = sadd.s32 %s25, 1
      %s27 = scalar_select %p24, %s25, %s26
      %p30 = pneg %p24
      %p31 = scmp.eq.s32.totalorder %s15, 1
      %p32 = por %p30, %p31
      %p33 = scmp.ne.s32.totalorder %s25, %s28
      %p34 = scmp.eq.s32.totalorder %s15, 0
      %p35 = por %p33, %p34
      %p36 = scmp.ne.s32.totalorder %s25, %s28
      %p37 = scmp.eq.s32.totalorder %s20, 1
      %p38 = por %p36, %p37
      %p39 = scmp.ne.s32.totalorder %s28, %s29
      %p40 = scmp.eq.s32.totalorder %s20, 0
      %p41 = por %p39, %p40
      %p42 = scmp.ne.s32.totalorder %s28, %s29
      %p43 = scmp.eq.s32.totalorder %s21, 1
      %p44 = por %p42, %p43
      %p46 = scmp.ne.s32.totalorder %s29, %s45
      %p47 = scmp.eq.s32.totalorder %s21, 0
      %p48 = por %p46, %p47
      %s50 = sadd.s32 %s49, 1
      %p53 = scmp.eq.s32.totalorder %s15, 1
      %p54 = scmp.ne.s32.totalorder %s49, %s51
      %p55 = scmp.eq.s32.totalorder %s15, 0
      %p56 = por %p54, %p55
      %p57 = scmp.ne.s32.totalorder %s49, %s51
      %p58 = scmp.eq.s32.totalorder %s20, 1
      %p59 = por %p57, %p58
      %p60 = scmp.ne.s32.totalorder %s51, %s52
      %p61 = scmp.eq.s32.totalorder %s20, 0
      %p62 = por %p60, %p61
      %p63 = scmp.ne.s32.totalorder %s51, %s52
      %p64 = scmp.eq.s32.totalorder %s21, 1
      %p65 = por %p63, %p64
      %p67 = scmp.ne.s32.totalorder %s52, %s66
      %p68 = scmp.eq.s32.totalorder %s21, 0
      %p69 = por %p67, %p68
      %s70 = ssub.s32 %s15, %s22
      %p71 = scmp.eq.s32.totalorder %s70, 0
      %s73 = sadd.s32 %s72, 1
      %s74 = scalar_select %p71, %s72, %s73
      %p77 = pneg %p71
      %p78 = scmp.eq.s32.totalorder %s15, 1
      %p79 = por %p77, %p78
      %p80 = scmp.ne.s32.totalorder %s72, %s75
      %p81 = scmp.eq.s32.totalorder %s15, 0
      %p82 = por %p80, %p81
      %p83 = scmp.ne.s32.totalorder %s72, %s75
      %p84 = scmp.eq.s32.totalorder %s20, 1
      %p85 = por %p83, %p84
      %p86 = scmp.ne.s32.totalorder %s75, %s76
      %p87 = scmp.eq.s32.totalorder %s20, 0
      %p88 = por %p86, %p87
      %p89 = scmp.ne.s32.totalorder %s75, %s76
      %p90 = scmp.eq.s32.totalorder %s21, 1
      %p91 = por %p89, %p90
      %p93 = scmp.ne.s32.totalorder %s76, %s92
      %p94 = scmp.eq.s32.totalorder %s21, 0
      %p95 = por %p93, %p94
      %p96 = scmp.le.s32.totalorder 1, %s15
      %p97 = scmp.lt.s32.totalorder %s15, 3
      %p98 = pnand %p96, %p97
      %p99 = pneg %p98
      // Predicated region
      $region9: #{tpu_custom_call.1} parent=5 // pred_check
        _
      $region10: #{tpu_custom_call.1} parent=5 // pred_check_branch
        %101 = sbr.rel (%p98) target = $region12
      $region11: #{tpu_custom_call.1} parent=5 // pred_region
        %s102 = ssub.s32 %s15, 1
        // Predicated region
        $region13: #{tpu_custom_call.1} parent=11 // pred_check
          %p103 = pneg %p62
        $region14: #{tpu_custom_call.1} parent=11 // pred_check_branch
          %105 = sbr.rel (%p103) target = $region16
        $region15: #{tpu_custom_call.1} parent=11 // pred_region
          %s107 = ssub.s32 512, 512
          %108 = vsyncadd [#allocation6], %s107
          %s109 = sshll.u32 [#allocation5], 4
          %s110 = int_to_ptr.vmem [resolvable:$true] %s109
          %115 = dma.hbm_to_vmem [thread:$0]  %s1, 512, %s110, [#allocation6], 128, 128, 8
        $region16: #{tpu_custom_call.1} parent=11 // pred_fallthru
          _
      $region12: #{tpu_custom_call.1} parent=5 // pred_fallthru
        _
      %p116 = scmp.lt.s32.totalorder %s15, 2
      // Predicated region
      $region17: #{tpu_custom_call.1} parent=5 // pred_check
        %p117 = pneg %p116
      $region18: #{tpu_custom_call.1} parent=5 // pred_check_branch
        %119 = sbr.rel (%p117) target = $region20
      $region19: #{tpu_custom_call.1} parent=5 // pred_region
        // Predicated region
        $region21: #{tpu_custom_call.1} parent=19 // pred_check
          %p120 = pneg %p35
        $region22: #{tpu_custom_call.1} parent=19 // pred_check_branch
          %122 = sbr.rel (%p120) target = $region24
        $region23: #{tpu_custom_call.1} parent=19 // pred_region
          %s123 = sand.u32 %s25, 1
          %s124 = scalar_lea.sflag [#allocation3], %s123
          %s125 = sand.u32 %s25, 1
          %s126 = smul.addr %s125, 4
          %s127 = scalar_lea.vmem [#allocation2], %s126
          %s128 = smul.u32 4, %s15
          %s130 = ssub.s32 64, 64
          %131 = vsyncadd %s124, %s130
          %s132 = smul.addr %s128, 16
          %s133 = scalar_lea.hbm %s0, %s132
          %s135 = sshll.u32 %s127, 4
          %s136 = int_to_ptr.vmem [resolvable:$true] %s135
          %138 = dma.hbm_to_vmem [thread:$0]  %s133, 64, %s136, %s124
        $region24: #{tpu_custom_call.1} parent=19 // pred_fallthru
          _
      $region20: #{tpu_custom_call.1} parent=5 // pred_fallthru
        _
      %p139 = scmp.le.s32.totalorder 1, %s15
      %p140 = scmp.lt.s32.totalorder %s15, 3
      %p141 = pnand %p139, %p140
      %p142 = pneg %p141
      // Predicated region
      $region25: #{tpu_custom_call.1} parent=5 // pred_check
        _
      $region26: #{tpu_custom_call.1} parent=5 // pred_check_branch
        %144 = sbr.rel (%p141) target = $region28
      $region27: #{tpu_custom_call.1} parent=5 // pred_region
        %s145 = ssub.s32 %s15, 1
        %s146 = sand.u32 %s28, 1
        %s147 = scalar_lea.sflag [#allocation3], %s146
        %s148 = sand.u32 %s28, 1
        %s149 = smul.addr %s148, 4
        %s150 = scalar_lea.vmem [#allocation2], %s149
        // Predicated region
        $region29: #{tpu_custom_call.1} parent=27 // pred_check
          %p151 = pneg %p41
        $region30: #{tpu_custom_call.1} parent=27 // pred_check_branch
          %153 = sbr.rel (%p151) target = $region32
        $region31: #{tpu_custom_call.1} parent=27 // pred_region
          %154 = dma.done %s147, 64
        $region32: #{tpu_custom_call.1} parent=27 // pred_fallthru
          _
        // Predicated region
        $region33: #{tpu_custom_call.1} parent=27 // pred_check
          %p155 = pneg %p62
        $region34: #{tpu_custom_call.1} parent=27 // pred_check_branch
          %157 = sbr.rel (%p155) target = $region36
        $region35: #{tpu_custom_call.1} parent=27 // pred_region
          %158 = dma.done [#allocation6], 512
        $region36: #{tpu_custom_call.1} parent=27 // pred_fallthru
          _
        %s159 = sand.u32 %s28, 1
        %s160 = scalar_lea.sflag [#allocation3], %s159
        %s161 = sand.u32 %s28, 1
        %s162 = smul.addr %s161, 4
        %s163 = scalar_lea.vmem [#allocation2], %s162
        %p164 = pneg %p41
        %p165 = pneg %p38
        %p166 = pneg %p62
        %p167 = pneg %p59
        %p168 = pneg %p88
        %p169 = pneg %p85
        %s170 = sand.u32 %s75, 1
        %s171 = scalar_lea.sflag [#allocation4], %s170
        %s172 = sand.u32 %s75, 1
        %s173 = smul.addr %s172, 4
        %s174 = scalar_lea.vmem [#allocation7], %s173
        %s175 = smul.u32 4, %s20
        %s176 = smul.u32 4, %s20
        %v177 = vld [vmem:[#allocation5] sm:$0xff]
        %v178 = vld [vmem:[#allocation5 + $0x8] sm:$0xff]
        %v179 = vld [vmem:[#allocation5 + $0x10] sm:$0xff]
        %v180 = vld [vmem:[#allocation5 + $0x18] sm:$0xff]
        %v181 = vld [vmem:[%s150] sm:$0xf]
        %183 = vset.pattern.permute.xlu0 96
        %184 = vperm.xlu0 %183, %v177
        %v185 = vpop.permute.xlu0 %184
        %188 = vset.pattern.permute.xlu0 96
        %189 = vperm.xlu0 %188, %v178
        %v190 = vpop.permute.xlu0 %189
        %193 = vset.pattern.permute.xlu0 96
        %194 = vperm.xlu0 %193, %v179
        %v195 = vpop.permute.xlu0 %194
        %198 = vset.pattern.permute.xlu0 96
        %199 = vperm.xlu0 %198, %v180
        %v200 = vpop.permute.xlu0 %199
        %v203 = vlaneseq
        %v204 = vshrl.u32 %v203, 7
        %v205 = vsub.s32 0, %v204
        %v206 = vrot.slane %v181, %v205
        %v207 = vlaneseq
        %v208 = vshrl.u32 %v207, 7
        %v209 = vsub.s32 1, %v208
        %v210 = vrot.slane %v181, %v209
        %v211 = vlaneseq
        %v212 = vshrl.u32 %v211, 7
        %v213 = vsub.s32 2, %v212
        %v214 = vrot.slane %v181, %v213
        %v215 = vlaneseq
        %v216 = vshrl.u32 %v215, 7
        %v217 = vsub.s32 3, %v216
        %v218 = vrot.slane %v181, %v217
        %v223 = vmul.f32 %v185, %v206
        %v224 = vmul.f32 %v185, %v210
        %v225 = vmul.f32 %v185, %v214
        %v226 = vmul.f32 %v185, %v218
        %v227 = vmul.f32 %v190, %v206
        %v228 = vmul.f32 %v190, %v210
        %v229 = vmul.f32 %v190, %v214
        %v230 = vmul.f32 %v190, %v218
        %v231 = vmul.f32 %v195, %v206
        %v232 = vmul.f32 %v195, %v210
        %v233 = vmul.f32 %v195, %v214
        %v234 = vmul.f32 %v195, %v218
        %v235 = vmul.f32 %v200, %v206
        %v236 = vmul.f32 %v200, %v210
        %v237 = vmul.f32 %v200, %v214
        %v238 = vmul.f32 %v200, %v218
        %239 = vset.pattern.permute.xlu0 97
        %240 = vperm.xlu0 %239, %v177
        %v241 = vpop.permute.xlu0 %240
        %243 = vset.pattern.permute.xlu0 97
        %244 = vperm.xlu0 %243, %v178
        %v245 = vpop.permute.xlu0 %244
        %247 = vset.pattern.permute.xlu0 97
        %248 = vperm.xlu0 %247, %v179
        %v249 = vpop.permute.xlu0 %248
        %251 = vset.pattern.permute.xlu0 97
        %252 = vperm.xlu0 %251, %v180
        %v253 = vpop.permute.xlu0 %252
        %v255 = vadd.f32 %v223, %v241
        %v256 = vadd.f32 %v224, %v241
        %v257 = vadd.f32 %v225, %v241
        %v258 = vadd.f32 %v226, %v241
        %v259 = vadd.f32 %v227, %v245
        %v260 = vadd.f32 %v228, %v245
        %v261 = vadd.f32 %v229, %v245
        %v262 = vadd.f32 %v230, %v245
        %v263 = vadd.f32 %v231, %v249
        %v264 = vadd.f32 %v232, %v249
        %v265 = vadd.f32 %v233, %v249
        %v266 = vadd.f32 %v234, %v249
        %v267 = vadd.f32 %v235, %v253
        %v268 = vadd.f32 %v236, %v253
        %v269 = vadd.f32 %v237, %v253
        %v270 = vadd.f32 %v238, %v253
        %v271 = vmax.f32 %v255, 0.0
        %v272 = vmax.f32 %v256, 0.0
        %v273 = vmax.f32 %v257, 0.0
        %v274 = vmax.f32 %v258, 0.0
        %v275 = vmax.f32 %v259, 0.0
        %v276 = vmax.f32 %v260, 0.0
        %v277 = vmax.f32 %v261, 0.0
        %v278 = vmax.f32 %v262, 0.0
        %v279 = vmax.f32 %v263, 0.0
        %v280 = vmax.f32 %v264, 0.0
        %v281 = vmax.f32 %v265, 0.0
        %v282 = vmax.f32 %v266, 0.0
        %v283 = vmax.f32 %v267, 0.0
        %v284 = vmax.f32 %v268, 0.0
        %v285 = vmax.f32 %v269, 0.0
        %v286 = vmax.f32 %v270, 0.0
        %287 = vset.pattern.permute.xlu0 98
        %288 = vperm.xlu0 %287, %v177
        %v289 = vpop.permute.xlu0 %288
        %291 = vset.pattern.permute.xlu0 98
        %292 = vperm.xlu0 %291, %v178
        %v293 = vpop.permute.xlu0 %292
        %295 = vset.pattern.permute.xlu0 98
        %296 = vperm.xlu0 %295, %v179
        %v297 = vpop.permute.xlu0 %296
        %299 = vset.pattern.permute.xlu0 98
        %300 = vperm.xlu0 %299, %v180
        %v301 = vpop.permute.xlu0 %300
        %vm303 = vcmask 261120
        %v304 = vsel %vm303, %v177, 0
        %v306 = vsel %vm303, %v178, 0
        %v308 = vsel %vm303, %v179, 0
        %v310 = vsel %vm303, %v180, 0
        %v312 = vand.u32 %v272, 4294901760
        %313 = vmatprep.subr.mxu0 %v312
        %v314 = vand.u32 %v271, 4294901760
        %315 = vmatpush1.msra.mxu0 %v314
        %v316 = vand.u32 %v276, 4294901760
        %317 = vmatprep.subr.mxu0 %v316
        %v318 = vand.u32 %v275, 4294901760
        %319 = vmatpush1.msra.mxu0 %v318
        %v320 = vand.u32 %v280, 4294901760
        %321 = vmatprep.subr.mxu0 %v320
        %v322 = vand.u32 %v279, 4294901760
        %323 = vmatpush1.msra.mxu0 %v322
        %v324 = vand.u32 %v284, 4294901760
        %325 = vmatprep.subr.mxu0 %v324
        %v326 = vand.u32 %v283, 4294901760
        %327 = vmatpush1.msra.mxu0 %v326
        %328 = vmatprep.subr.mxu0 0.0
        %329 = vmatpush1.msra.mxu0 0.0
        %330 = vmatprep.subr.mxu0 0.0
        %331 = vmatpush1.msra.mxu0 0.0
        %332 = vmatprep.subr.mxu0 0.0
        %333 = vmatpush1.msra.mxu0 0.0
        %334 = vmatprep.subr.mxu0 0.0
        %335 = vmatpush1.msra.mxu0 0.0
        %336 = vmatprep.subr.mxu0 0.0
        %337 = vmatpush1.msra.mxu0 0.0
        %338 = vmatprep.subr.mxu0 0.0
        %339 = vmatpush1.msra.mxu0 0.0
        %340 = vmatprep.subr.mxu0 0.0
        %341 = vmatpush1.msra.mxu0 0.0
        %342 = vmatprep.subr.mxu0 0.0
        %343 = vmatpush1.msra.mxu0 0.0
        %344 = vmatprep.subr.mxu0 0.0
        %345 = vmatpush1.msra.mxu0 0.0
        %346 = vmatprep.subr.mxu0 0.0
        %347 = vmatpush1.msra.mxu0 0.0
        %348 = vmatprep.subr.mxu0 0.0
        %349 = vmatpush1.msra.mxu0 0.0
        %350 = vmatprep.subr.mxu0 0.0
        %351 = vmatpush1.msra.mxu0 0.0
        %352 = vmatprep.subr.mxu0 0.0
        %353 = vmatpush1.msra.mxu0 0.0
        %354 = vmatprep.subr.mxu0 0.0
        %355 = vmatpush1.msra.mxu0 0.0
        %356 = vmatprep.subr.mxu0 0.0
        %357 = vmatpush1.msra.mxu0 0.0
        %358 = vmatprep.subr.mxu0 0.0
        %359 = vmatpush1.msra.mxu0 0.0
        %360 = vmatprep.subr.mxu0 0.0
        %361 = vmatpush1.msra.mxu0 0.0
        %362 = vmatprep.subr.mxu0 0.0
        %363 = vmatpush1.msra.mxu0 0.0
        %364 = vmatprep.subr.mxu0 0.0
        %365 = vmatpush1.msra.mxu0 0.0
        %366 = vmatprep.subr.mxu0 0.0
        %367 = vmatpush1.msra.mxu0 0.0
        %368 = vmatprep.subr.mxu0 0.0
        %369 = vmatpush1.msra.mxu0 0.0
        %370 = vmatprep.subr.mxu0 0.0
        %371 = vmatpush1.msra.mxu0 0.0
        %372 = vmatprep.subr.mxu0 0.0
        %373 = vmatpush1.msra.mxu0 0.0
        %374 = vmatprep.subr.mxu0 0.0
        %375 = vmatpush1.msra.mxu0 0.0
        %376 = vmatprep.subr.mxu0 0.0
        %377 = vmatpush1.msra.mxu0 0.0
        %378 = vmatprep.subr.mxu0 0.0
        %379 = vmatpush1.msra.mxu0 0.0
        %380 = vmatprep.subr.mxu0 0.0
        %381 = vmatpush1.msra.mxu0 0.0
        %382 = vmatprep.subr.mxu0 0.0
        %383 = vmatpush1.msra.mxu0 0.0
        %384 = vmatprep.mubr.f32.mxu0 0.0
        %v385 = vand.u32 %v304, 4294901760
        %v386 = vsub.f32 %v304, %v385
        %v387 = vand.u32 %v386, 4294901760
        %v388 = vsub.f32 %v386, %v387
        %v389 = vand.u32 %v388, 4294901760
        %390 = vmatmul.mubr.f32.gmra.mrb[0].mxu0 %v389
        %v391 = vpop.f32.mrb[0].mxu0
        %v392 = vadd.f32 %v289, %v391
        %v393 = vpop.f32.mrb[0].mxu0
        %v394 = vadd.f32 %v289, %v393
        %395 = vmatprep.mubr.f32.mxu0 0.0
        %v396 = vand.u32 %v306, 4294901760
        %v397 = vsub.f32 %v306, %v396
        %v398 = vand.u32 %v397, 4294901760
        %v399 = vsub.f32 %v397, %v398
        %v400 = vand.u32 %v399, 4294901760
        %401 = vmatmul.mubr.f32.gmra.mrb[0].mxu0 %v400
        %v402 = vpop.f32.mrb[0].mxu0
        %v403 = vadd.f32 %v293, %v402
        %v404 = vpop.f32.mrb[0].mxu0
        %v405 = vadd.f32 %v293, %v404
        %406 = vmatprep.mubr.f32.mxu0 0.0
        %v407 = vand.u32 %v308, 4294901760
        %v408 = vsub.f32 %v308, %v407
        %v409 = vand.u32 %v408, 4294901760
        %v410 = vsub.f32 %v408, %v409
        %v411 = vand.u32 %v410, 4294901760
        %412 = vmatmul.mubr.f32.gmra.mrb[0].mxu0 %v411
        %v413 = vpop.f32.mrb[0].mxu0
        %v414 = vadd.f32 %v297, %v413
        %v415 = vpop.f32.mrb[0].mxu0
        %v416 = vadd.f32 %v297, %v415
        %417 = vmatprep.mubr.f32.mxu0 0.0
        %v418 = vand.u32 %v310, 4294901760
        %v419 = vsub.f32 %v310, %v418
        %v420 = vand.u32 %v419, 4294901760
        %v421 = vsub.f32 %v419, %v420
        %v422 = vand.u32 %v421, 4294901760
        %423 = vmatmul.mubr.f32.gmra.mrb[0].mxu0 %v422
        %v424 = vpop.f32.mrb[0].mxu0
        %v425 = vadd.f32 %v301, %v424
        %v426 = vpop.f32.mrb[0].mxu0
        %v427 = vadd.f32 %v301, %v426
        %428 = vdwg.mxu0
        %v429 = vand.u32 %v272, 4294901760
        %v430 = vsub.f32 %v272, %v429
        %v431 = vand.u32 %v430, 4294901760
        %v432 = vsub.f32 %v430, %v431
        %v433 = vand.u32 %v432, 4294901760
        %434 = vmatprep.subr.mxu0 %v433
        %v435 = vand.u32 %v271, 4294901760
        %v436 = vsub.f32 %v271, %v435
        %v437 = vand.u32 %v436, 4294901760
        %v438 = vsub.f32 %v436, %v437
        %v439 = vand.u32 %v438, 4294901760
        %440 = vmatpush1.msra.mxu0 %v439
        %v441 = vand.u32 %v276, 4294901760
        %v442 = vsub.f32 %v276, %v441
        %v443 = vand.u32 %v442, 4294901760
        %v444 = vsub.f32 %v442, %v443
        %v445 = vand.u32 %v444, 4294901760
        %446 = vmatprep.subr.mxu0 %v445
        %v447 = vand.u32 %v275, 4294901760
        %v448 = vsub.f32 %v275, %v447
        %v449 = vand.u32 %v448, 4294901760
        %v450 = vsub.f32 %v448, %v449
        %v451 = vand.u32 %v450, 4294901760
        %452 = vmatpush1.msra.mxu0 %v451
        %v453 = vand.u32 %v280, 4294901760
        %v454 = vsub.f32 %v280, %v453
        %v455 = vand.u32 %v454, 4294901760
        %v456 = vsub.f32 %v454, %v455
        %v457 = vand.u32 %v456, 4294901760
        %458 = vmatprep.subr.mxu0 %v457
        %v459 = vand.u32 %v279, 4294901760
        %v460 = vsub.f32 %v279, %v459
        %v461 = vand.u32 %v460, 4294901760
        %v462 = vsub.f32 %v460, %v461
        %v463 = vand.u32 %v462, 4294901760
        %464 = vmatpush1.msra.mxu0 %v463
        %v465 = vand.u32 %v284, 4294901760
        %v466 = vsub.f32 %v284, %v465
        %v467 = vand.u32 %v466, 4294901760
        %v468 = vsub.f32 %v466, %v467
        %v469 = vand.u32 %v468, 4294901760
        %470 = vmatprep.subr.mxu0 %v469
        %v471 = vand.u32 %v283, 4294901760
        %v472 = vsub.f32 %v283, %v471
        %v473 = vand.u32 %v472, 4294901760
        %v474 = vsub.f32 %v472, %v473
        %v475 = vand.u32 %v474, 4294901760
        %476 = vmatpush1.msra.mxu0 %v475
        %477 = vmatprep.subr.mxu0 0.0
        %478 = vmatpush1.msra.mxu0 0.0
        %479 = vmatprep.subr.mxu0 0.0
        %480 = vmatpush1.msra.mxu0 0.0
        %481 = vmatprep.subr.mxu0 0.0
        %482 = vmatpush1.msra.mxu0 0.0
        %483 = vmatprep.subr.mxu0 0.0
        %484 = vmatpush1.msra.mxu0 0.0
        %485 = vmatprep.subr.mxu0 0.0
        %486 = vmatpush1.msra.mxu0 0.0
        %487 = vmatprep.subr.mxu0 0.0
        %488 = vmatpush1.msra.mxu0 0.0
        %489 = vmatprep.subr.mxu0 0.0
        %490 = vmatpush1.msra.mxu0 0.0
        %491 = vmatprep.subr.mxu0 0.0
        %492 = vmatpush1.msra.mxu0 0.0
        %493 = vmatprep.subr.mxu0 0.0
        %494 = vmatpush1.msra.mxu0 0.0
        %495 = vmatprep.subr.mxu0 0.0
        %496 = vmatpush1.msra.mxu0 0.0
        %497 = vmatprep.subr.mxu0 0.0
        %498 = vmatpush1.msra.mxu0 0.0
        %499 = vmatprep.subr.mxu0 0.0
        %500 = vmatpush1.msra.mxu0 0.0
        %501 = vmatprep.subr.mxu0 0.0
        %502 = vmatpush1.msra.mxu0 0.0
        %503 = vmatprep.subr.mxu0 0.0
        %504 = vmatpush1.msra.mxu0 0.0
        %505 = vmatprep.subr.mxu0 0.0
        %506 = vmatpush1.msra.mxu0 0.0
        %507 = vmatprep.subr.mxu0 0.0
        %508 = vmatpush1.msra.mxu0 0.0
        %509 = vmatprep.subr.mxu0 0.0
        %510 = vmatpush1.msra.mxu0 0.0
        %511 = vmatprep.subr.mxu0 0.0
        %512 = vmatpush1.msra.mxu0 0.0
        %513 = vmatprep.subr.mxu0 0.0
        %514 = vmatpush1.msra.mxu0 0.0
        %515 = vmatprep.subr.mxu0 0.0
        %516 = vmatpush1.msra.mxu0 0.0
        %517 = vmatprep.subr.mxu0 0.0
        %518 = vmatpush1.msra.mxu0 0.0
        %519 = vmatprep.subr.mxu0 0.0
        %520 = vmatpush1.msra.mxu0 0.0
        %521 = vmatprep.subr.mxu0 0.0
        %522 = vmatpush1.msra.mxu0 0.0
        %523 = vmatprep.subr.mxu0 0.0
        %524 = vmatpush1.msra.mxu0 0.0
        %525 = vmatprep.subr.mxu0 0.0
        %526 = vmatpush1.msra.mxu0 0.0
        %527 = vmatprep.subr.mxu0 0.0
        %528 = vmatpush1.msra.mxu0 0.0
        %529 = vmatprep.subr.mxu0 0.0
        %530 = vmatpush1.msra.mxu0 0.0
        %531 = vmatprep.subr.mxu0 0.0
        %532 = vmatpush1.msra.mxu0 0.0
        %533 = vmatprep.mubr.f32.mxu0 0.0
        %v534 = vand.u32 %v304, 4294901760
        %535 = vmatmul.mubr.f32.gmra.mrb[0].mxu0 %v534
        %v536 = vpop.f32.mrb[0].mxu0
        %v537 = vadd.f32 %v392, %v536
        %v538 = vpop.f32.mrb[0].mxu0
        %v539 = vadd.f32 %v394, %v538
        %540 = vmatprep.mubr.f32.mxu0 0.0
        %v541 = vand.u32 %v306, 4294901760
        %542 = vmatmul.mubr.f32.gmra.mrb[0].mxu0 %v541
        %v543 = vpop.f32.mrb[0].mxu0
        %v544 = vadd.f32 %v403, %v543
        %v545 = vpop.f32.mrb[0].mxu0
        %v546 = vadd.f32 %v405, %v545
        %547 = vmatprep.mubr.f32.mxu0 0.0
        %v548 = vand.u32 %v308, 4294901760
        %549 = vmatmul.mubr.f32.gmra.mrb[0].mxu0 %v548
        %v550 = vpop.f32.mrb[0].mxu0
        %v551 = vadd.f32 %v414, %v550
        %v552 = vpop.f32.mrb[0].mxu0
        %v553 = vadd.f32 %v416, %v552
        %554 = vmatprep.mubr.f32.mxu0 0.0
        %v555 = vand.u32 %v310, 4294901760
        %556 = vmatmul.mubr.f32.gmra.mrb[0].mxu0 %v555
        %v557 = vpop.f32.mrb[0].mxu0
        %v558 = vadd.f32 %v425, %v557
        %v559 = vpop.f32.mrb[0].mxu0
        %v560 = vadd.f32 %v427, %v559
        %561 = vdwg.mxu0
        %v562 = vand.u32 %v272, 4294901760
        %v563 = vsub.f32 %v272, %v562
        %564 = vmatprep.subr.mxu0 %v563
        %v565 = vand.u32 %v271, 4294901760
        %v566 = vsub.f32 %v271, %v565
        %567 = vmatpush1.msra.mxu0 %v566
        %v568 = vand.u32 %v276, 4294901760
        %v569 = vsub.f32 %v276, %v568
        %570 = vmatprep.subr.mxu0 %v569
        %v571 = vand.u32 %v275, 4294901760
        %v572 = vsub.f32 %v275, %v571
        %573 = vmatpush1.msra.mxu0 %v572
        %v574 = vand.u32 %v280, 4294901760
        %v575 = vsub.f32 %v280, %v574
        %576 = vmatprep.subr.mxu0 %v575
        %v577 = vand.u32 %v279, 4294901760
        %v578 = vsub.f32 %v279, %v577
        %579 = vmatpush1.msra.mxu0 %v578
        %v580 = vand.u32 %v284, 4294901760
        %v581 = vsub.f32 %v284, %v580
        %582 = vmatprep.subr.mxu0 %v581
        %v583 = vand.u32 %v283, 4294901760
        %v584 = vsub.f32 %v283, %v583
        %585 = vmatpush1.msra.mxu0 %v584
        %586 = vmatprep.subr.mxu0 0.0
        %587 = vmatpush1.msra.mxu0 0.0
        %588 = vmatprep.subr.mxu0 0.0
        %589 = vmatpush1.msra.mxu0 0.0
        %590 = vmatprep.subr.mxu0 0.0
        %591 = vmatpush1.msra.mxu0 0.0
        %592 = vmatprep.subr.mxu0 0.0
        %593 = vmatpush1.msra.mxu0 0.0
        %594 = vmatprep.subr.mxu0 0.0
        %595 = vmatpush1.msra.mxu0 0.0
        %596 = vmatprep.subr.mxu0 0.0
        %597 = vmatpush1.msra.mxu0 0.0
        %598 = vmatprep.subr.mxu0 0.0
        %599 = vmatpush1.msra.mxu0 0.0
        %600 = vmatprep.subr.mxu0 0.0
        %601 = vmatpush1.msra.mxu0 0.0
        %602 = vmatprep.subr.mxu0 0.0
        %603 = vmatpush1.msra.mxu0 0.0
        %604 = vmatprep.subr.mxu0 0.0
        %605 = vmatpush1.msra.mxu0 0.0
        %606 = vmatprep.subr.mxu0 0.0
        %607 = vmatpush1.msra.mxu0 0.0
        %608 = vmatprep.subr.mxu0 0.0
        %609 = vmatpush1.msra.mxu0 0.0
        %610 = vmatprep.subr.mxu0 0.0
        %611 = vmatpush1.msra.mxu0 0.0
        %612 = vmatprep.subr.mxu0 0.0
        %613 = vmatpush1.msra.mxu0 0.0
        %614 = vmatprep.subr.mxu0 0.0
        %615 = vmatpush1.msra.mxu0 0.0
        %616 = vmatprep.subr.mxu0 0.0
        %617 = vmatpush1.msra.mxu0 0.0
        %618 = vmatprep.subr.mxu0 0.0
        %619 = vmatpush1.msra.mxu0 0.0
        %620 = vmatprep.subr.mxu0 0.0
        %621 = vmatpush1.msra.mxu0 0.0
        %622 = vmatprep.subr.mxu0 0.0
        %623 = vmatpush1.msra.mxu0 0.0
        %624 = vmatprep.subr.mxu0 0.0
        %625 = vmatpush1.msra.mxu0 0.0
        %626 = vmatprep.subr.mxu0 0.0
        %627 = vmatpush1.msra.mxu0 0.0
        %628 = vmatprep.subr.mxu0 0.0
        %629 = vmatpush1.msra.mxu0 0.0
        %630 = vmatprep.subr.mxu0 0.0
        %631 = vmatpush1.msra.mxu0 0.0
        %632 = vmatprep.subr.mxu0 0.0
        %633 = vmatpush1.msra.mxu0 0.0
        %634 = vmatprep.subr.mxu0 0.0
        %635 = vmatpush1.msra.mxu0 0.0
        %636 = vmatprep.subr.mxu0 0.0
        %637 = vmatpush1.msra.mxu0 0.0
        %638 = vmatprep.subr.mxu0 0.0
        %639 = vmatpush1.msra.mxu0 0.0
        %640 = vmatprep.subr.mxu0 0.0
        %641 = vmatpush1.msra.mxu0 0.0
        %642 = vmatprep.mubr.f32.mxu0 0.0
        %v643 = vand.u32 %v304, 4294901760
        %v644 = vsub.f32 %v304, %v643
        %645 = vmatmul.mubr.f32.gmra.mrb[0].mxu0 %v644
        %v646 = vpop.f32.mrb[0].mxu0
        %v647 = vadd.f32 %v537, %v646
        %v648 = vpop.f32.mrb[0].mxu0
        %v649 = vadd.f32 %v539, %v648
        %650 = vmatprep.mubr.f32.mxu0 0.0
        %v651 = vand.u32 %v306, 4294901760
        %v652 = vsub.f32 %v306, %v651
        %653 = vmatmul.mubr.f32.gmra.mrb[0].mxu0 %v652
        %v654 = vpop.f32.mrb[0].mxu0
        %v655 = vadd.f32 %v544, %v654
        %v656 = vpop.f32.mrb[0].mxu0
        %v657 = vadd.f32 %v546, %v656
        %658 = vmatprep.mubr.f32.mxu0 0.0
        %v659 = vand.u32 %v308, 4294901760
        %v660 = vsub.f32 %v308, %v659
        %661 = vmatmul.mubr.f32.gmra.mrb[0].mxu0 %v660
        %v662 = vpop.f32.mrb[0].mxu0
        %v663 = vadd.f32 %v551, %v662
        %v664 = vpop.f32.mrb[0].mxu0
        %v665 = vadd.f32 %v553, %v664
        %666 = vmatprep.mubr.f32.mxu0 0.0
        %v667 = vand.u32 %v310, 4294901760
        %v668 = vsub.f32 %v310, %v667
        %669 = vmatmul.mubr.f32.gmra.mrb[0].mxu0 %v668
        %v670 = vpop.f32.mrb[0].mxu0
        %v671 = vadd.f32 %v558, %v670
        %v672 = vpop.f32.mrb[0].mxu0
        %v673 = vadd.f32 %v560, %v672
        %674 = vdwg.mxu0
        %v675 = vand.u32 %v272, 4294901760
        %676 = vmatprep.subr.mxu0 %v675
        %v677 = vand.u32 %v271, 4294901760
        %678 = vmatpush1.msra.mxu0 %v677
        %v679 = vand.u32 %v276, 4294901760
        %680 = vmatprep.subr.mxu0 %v679
        %v681 = vand.u32 %v275, 4294901760
        %682 = vmatpush1.msra.mxu0 %v681
        %v683 = vand.u32 %v280, 4294901760
        %684 = vmatprep.subr.mxu0 %v683
        %v685 = vand.u32 %v279, 4294901760
        %686 = vmatpush1.msra.mxu0 %v685
        %v687 = vand.u32 %v284, 4294901760
        %688 = vmatprep.subr.mxu0 %v687
        %v689 = vand.u32 %v283, 4294901760
        %690 = vmatpush1.msra.mxu0 %v689
        %691 = vmatprep.subr.mxu0 0.0
        %692 = vmatpush1.msra.mxu0 0.0
        %693 = vmatprep.subr.mxu0 0.0
        %694 = vmatpush1.msra.mxu0 0.0
        %695 = vmatprep.subr.mxu0 0.0
        %696 = vmatpush1.msra.mxu0 0.0
        %697 = vmatprep.subr.mxu0 0.0
        %698 = vmatpush1.msra.mxu0 0.0
        %699 = vmatprep.subr.mxu0 0.0
        %700 = vmatpush1.msra.mxu0 0.0
        %701 = vmatprep.subr.mxu0 0.0
        %702 = vmatpush1.msra.mxu0 0.0
        %703 = vmatprep.subr.mxu0 0.0
        %704 = vmatpush1.msra.mxu0 0.0
        %705 = vmatprep.subr.mxu0 0.0
        %706 = vmatpush1.msra.mxu0 0.0
        %707 = vmatprep.subr.mxu0 0.0
        %708 = vmatpush1.msra.mxu0 0.0
        %709 = vmatprep.subr.mxu0 0.0
        %710 = vmatpush1.msra.mxu0 0.0
        %711 = vmatprep.subr.mxu0 0.0
        %712 = vmatpush1.msra.mxu0 0.0
        %713 = vmatprep.subr.mxu0 0.0
        %714 = vmatpush1.msra.mxu0 0.0
        %715 = vmatprep.subr.mxu0 0.0
        %716 = vmatpush1.msra.mxu0 0.0
        %717 = vmatprep.subr.mxu0 0.0
        %718 = vmatpush1.msra.mxu0 0.0
        %719 = vmatprep.subr.mxu0 0.0
        %720 = vmatpush1.msra.mxu0 0.0
        %721 = vmatprep.subr.mxu0 0.0
        %722 = vmatpush1.msra.mxu0 0.0
        %723 = vmatprep.subr.mxu0 0.0
        %724 = vmatpush1.msra.mxu0 0.0
        %725 = vmatprep.subr.mxu0 0.0
        %726 = vmatpush1.msra.mxu0 0.0
        %727 = vmatprep.subr.mxu0 0.0
        %728 = vmatpush1.msra.mxu0 0.0
        %729 = vmatprep.subr.mxu0 0.0
        %730 = vmatpush1.msra.mxu0 0.0
        %731 = vmatprep.subr.mxu0 0.0
        %732 = vmatpush1.msra.mxu0 0.0
        %733 = vmatprep.subr.mxu0 0.0
        %734 = vmatpush1.msra.mxu0 0.0
        %735 = vmatprep.subr.mxu0 0.0
        %736 = vmatpush1.msra.mxu0 0.0
        %737 = vmatprep.subr.mxu0 0.0
        %738 = vmatpush1.msra.mxu0 0.0
        %739 = vmatprep.subr.mxu0 0.0
        %740 = vmatpush1.msra.mxu0 0.0
        %741 = vmatprep.subr.mxu0 0.0
        %742 = vmatpush1.msra.mxu0 0.0
        %743 = vmatprep.subr.mxu0 0.0
        %744 = vmatpush1.msra.mxu0 0.0
        %745 = vmatprep.subr.mxu0 0.0
        %746 = vmatpush1.msra.mxu0 0.0
        %747 = vmatprep.mubr.f32.mxu0 0.0
        %v748 = vand.u32 %v304, 4294901760
        %v749 = vsub.f32 %v304, %v748
        %v750 = vand.u32 %v749, 4294901760
        %751 = vmatmul.mubr.f32.gmra.mrb[0].mxu0 %v750
        %v752 = vpop.f32.mrb[0].mxu0
        %v753 = vadd.f32 %v647, %v752
        %v754 = vpop.f32.mrb[0].mxu0
        %v755 = vadd.f32 %v649, %v754
        %756 = vmatprep.mubr.f32.mxu0 0.0
        %v757 = vand.u32 %v306, 4294901760
        %v758 = vsub.f32 %v306, %v757
        %v759 = vand.u32 %v758, 4294901760
        %760 = vmatmul.mubr.f32.gmra.mrb[0].mxu0 %v759
        %v761 = vpop.f32.mrb[0].mxu0
        %v762 = vadd.f32 %v655, %v761
        %v763 = vpop.f32.mrb[0].mxu0
        %v764 = vadd.f32 %v657, %v763
        %765 = vmatprep.mubr.f32.mxu0 0.0
        %v766 = vand.u32 %v308, 4294901760
        %v767 = vsub.f32 %v308, %v766
        %v768 = vand.u32 %v767, 4294901760
        %769 = vmatmul.mubr.f32.gmra.mrb[0].mxu0 %v768
        %v770 = vpop.f32.mrb[0].mxu0
        %v771 = vadd.f32 %v663, %v770
        %v772 = vpop.f32.mrb[0].mxu0
        %v773 = vadd.f32 %v665, %v772
        %774 = vmatprep.mubr.f32.mxu0 0.0
        %v775 = vand.u32 %v310, 4294901760
        %v776 = vsub.f32 %v310, %v775
        %v777 = vand.u32 %v776, 4294901760
        %778 = vmatmul.mubr.f32.gmra.mrb[0].mxu0 %v777
        %v779 = vpop.f32.mrb[0].mxu0
        %v780 = vadd.f32 %v671, %v779
        %v781 = vpop.f32.mrb[0].mxu0
        %v782 = vadd.f32 %v673, %v781
        %783 = vdwg.mxu0
        %v784 = vand.u32 %v272, 4294901760
        %v785 = vsub.f32 %v272, %v784
        %v786 = vand.u32 %v785, 4294901760
        %787 = vmatprep.subr.mxu0 %v786
        %v788 = vand.u32 %v271, 4294901760
        %v789 = vsub.f32 %v271, %v788
        %v790 = vand.u32 %v789, 4294901760
        %791 = vmatpush1.msra.mxu0 %v790
        %v792 = vand.u32 %v276, 4294901760
        %v793 = vsub.f32 %v276, %v792
        %v794 = vand.u32 %v793, 4294901760
        %795 = vmatprep.subr.mxu0 %v794
        %v796 = vand.u32 %v275, 4294901760
        %v797 = vsub.f32 %v275, %v796
        %v798 = vand.u32 %v797, 4294901760
        %799 = vmatpush1.msra.mxu0 %v798
        %v800 = vand.u32 %v280, 4294901760
        %v801 = vsub.f32 %v280, %v800
        %v802 = vand.u32 %v801, 4294901760
        %803 = vmatprep.subr.mxu0 %v802
        %v804 = vand.u32 %v279, 4294901760
        %v805 = vsub.f32 %v279, %v804
        %v806 = vand.u32 %v805, 4294901760
        %807 = vmatpush1.msra.mxu0 %v806
        %v808 = vand.u32 %v284, 4294901760
        %v809 = vsub.f32 %v284, %v808
        %v810 = vand.u32 %v809, 4294901760
        %811 = vmatprep.subr.mxu0 %v810
        %v812 = vand.u32 %v283, 4294901760
        %v813 = vsub.f32 %v283, %v812
        %v814 = vand.u32 %v813, 4294901760
        %815 = vmatpush1.msra.mxu0 %v814
        %816 = vmatprep.subr.mxu0 0.0
        %817 = vmatpush1.msra.mxu0 0.0
        %818 = vmatprep.subr.mxu0 0.0
        %819 = vmatpush1.msra.mxu0 0.0
        %820 = vmatprep.subr.mxu0 0.0
        %821 = vmatpush1.msra.mxu0 0.0
        %822 = vmatprep.subr.mxu0 0.0
        %823 = vmatpush1.msra.mxu0 0.0
        %824 = vmatprep.subr.mxu0 0.0
        %825 = vmatpush1.msra.mxu0 0.0
        %826 = vmatprep.subr.mxu0 0.0
        %827 = vmatpush1.msra.mxu0 0.0
        %828 = vmatprep.subr.mxu0 0.0
        %829 = vmatpush1.msra.mxu0 0.0
        %830 = vmatprep.subr.mxu0 0.0
        %831 = vmatpush1.msra.mxu0 0.0
        %832 = vmatprep.subr.mxu0 0.0
        %833 = vmatpush1.msra.mxu0 0.0
        %834 = vmatprep.subr.mxu0 0.0
        %835 = vmatpush1.msra.mxu0 0.0
        %836 = vmatprep.subr.mxu0 0.0
        %837 = vmatpush1.msra.mxu0 0.0
        %838 = vmatprep.subr.mxu0 0.0
        %839 = vmatpush1.msra.mxu0 0.0
        %840 = vmatprep.subr.mxu0 0.0
        %841 = vmatpush1.msra.mxu0 0.0
        %842 = vmatprep.subr.mxu0 0.0
        %843 = vmatpush1.msra.mxu0 0.0
        %844 = vmatprep.subr.mxu0 0.0
        %845 = vmatpush1.msra.mxu0 0.0
        %846 = vmatprep.subr.mxu0 0.0
        %847 = vmatpush1.msra.mxu0 0.0
        %848 = vmatprep.subr.mxu0 0.0
        %849 = vmatpush1.msra.mxu0 0.0
        %850 = vmatprep.subr.mxu0 0.0
        %851 = vmatpush1.msra.mxu0 0.0
        %852 = vmatprep.subr.mxu0 0.0
        %853 = vmatpush1.msra.mxu0 0.0
        %854 = vmatprep.subr.mxu0 0.0
        %855 = vmatpush1.msra.mxu0 0.0
        %856 = vmatprep.subr.mxu0 0.0
        %857 = vmatpush1.msra.mxu0 0.0
        %858 = vmatprep.subr.mxu0 0.0
        %859 = vmatpush1.msra.mxu0 0.0
        %860 = vmatprep.subr.mxu0 0.0
        %861 = vmatpush1.msra.mxu0 0.0
        %862 = vmatprep.subr.mxu0 0.0
        %863 = vmatpush1.msra.mxu0 0.0
        %864 = vmatprep.subr.mxu0 0.0
        %865 = vmatpush1.msra.mxu0 0.0
        %866 = vmatprep.subr.mxu0 0.0
        %867 = vmatpush1.msra.mxu0 0.0
        %868 = vmatprep.subr.mxu0 0.0
        %869 = vmatpush1.msra.mxu0 0.0
        %870 = vmatprep.subr.mxu0 0.0
        %871 = vmatpush1.msra.mxu0 0.0
        %872 = vmatprep.mubr.f32.mxu0 0.0
        %v873 = vand.u32 %v304, 4294901760
        %874 = vmatmul.mubr.f32.gmra.mrb[0].mxu0 %v873
        %v875 = vpop.f32.mrb[0].mxu0
        %v876 = vadd.f32 %v753, %v875
        %v877 = vpop.f32.mrb[0].mxu0
        %v878 = vadd.f32 %v755, %v877
        %879 = vmatprep.mubr.f32.mxu0 0.0
        %v880 = vand.u32 %v306, 4294901760
        %881 = vmatmul.mubr.f32.gmra.mrb[0].mxu0 %v880
        %v882 = vpop.f32.mrb[0].mxu0
        %v883 = vadd.f32 %v762, %v882
        %v884 = vpop.f32.mrb[0].mxu0
        %v885 = vadd.f32 %v764, %v884
        %886 = vmatprep.mubr.f32.mxu0 0.0
        %v887 = vand.u32 %v308, 4294901760
        %888 = vmatmul.mubr.f32.gmra.mrb[0].mxu0 %v887
        %v889 = vpop.f32.mrb[0].mxu0
        %v890 = vadd.f32 %v771, %v889
        %v891 = vpop.f32.mrb[0].mxu0
        %v892 = vadd.f32 %v773, %v891
        %893 = vmatprep.mubr.f32.mxu0 0.0
        %v894 = vand.u32 %v310, 4294901760
        %895 = vmatmul.mubr.f32.gmra.mrb[0].mxu0 %v894
        %v896 = vpop.f32.mrb[0].mxu0
        %v897 = vadd.f32 %v780, %v896
        %v898 = vpop.f32.mrb[0].mxu0
        %v899 = vadd.f32 %v782, %v898
        %900 = vdwg.mxu0
        %v901 = vand.u32 %v272, 4294901760
        %902 = vmatprep.subr.mxu0 %v901
        %v903 = vand.u32 %v271, 4294901760
        %904 = vmatpush1.msra.mxu0 %v903
        %v905 = vand.u32 %v276, 4294901760
        %906 = vmatprep.subr.mxu0 %v905
        %v907 = vand.u32 %v275, 4294901760
        %908 = vmatpush1.msra.mxu0 %v907
        %v909 = vand.u32 %v280, 4294901760
        %910 = vmatprep.subr.mxu0 %v909
        %v911 = vand.u32 %v279, 4294901760
        %912 = vmatpush1.msra.mxu0 %v911
        %v913 = vand.u32 %v284, 4294901760
        %914 = vmatprep.subr.mxu0 %v913
        %v915 = vand.u32 %v283, 4294901760
        %916 = vmatpush1.msra.mxu0 %v915
        %917 = vmatprep.subr.mxu0 0.0
        %918 = vmatpush1.msra.mxu0 0.0
        %919 = vmatprep.subr.mxu0 0.0
        %920 = vmatpush1.msra.mxu0 0.0
        %921 = vmatprep.subr.mxu0 0.0
        %922 = vmatpush1.msra.mxu0 0.0
        %923 = vmatprep.subr.mxu0 0.0
        %924 = vmatpush1.msra.mxu0 0.0
        %925 = vmatprep.subr.mxu0 0.0
        %926 = vmatpush1.msra.mxu0 0.0
        %927 = vmatprep.subr.mxu0 0.0
        %928 = vmatpush1.msra.mxu0 0.0
        %929 = vmatprep.subr.mxu0 0.0
        %930 = vmatpush1.msra.mxu0 0.0
        %931 = vmatprep.subr.mxu0 0.0
        %932 = vmatpush1.msra.mxu0 0.0
        %933 = vmatprep.subr.mxu0 0.0
        %934 = vmatpush1.msra.mxu0 0.0
        %935 = vmatprep.subr.mxu0 0.0
        %936 = vmatpush1.msra.mxu0 0.0
        %937 = vmatprep.subr.mxu0 0.0
        %938 = vmatpush1.msra.mxu0 0.0
        %939 = vmatprep.subr.mxu0 0.0
        %940 = vmatpush1.msra.mxu0 0.0
        %941 = vmatprep.subr.mxu0 0.0
        %942 = vmatpush1.msra.mxu0 0.0
        %943 = vmatprep.subr.mxu0 0.0
        %944 = vmatpush1.msra.mxu0 0.0
        %945 = vmatprep.subr.mxu0 0.0
        %946 = vmatpush1.msra.mxu0 0.0
        %947 = vmatprep.subr.mxu0 0.0
        %948 = vmatpush1.msra.mxu0 0.0
        %949 = vmatprep.subr.mxu0 0.0
        %950 = vmatpush1.msra.mxu0 0.0
        %951 = vmatprep.subr.mxu0 0.0
        %952 = vmatpush1.msra.mxu0 0.0
        %953 = vmatprep.subr.mxu0 0.0
        %954 = vmatpush1.msra.mxu0 0.0
        %955 = vmatprep.subr.mxu0 0.0
        %956 = vmatpush1.msra.mxu0 0.0
        %957 = vmatprep.subr.mxu0 0.0
        %958 = vmatpush1.msra.mxu0 0.0
        %959 = vmatprep.subr.mxu0 0.0
        %960 = vmatpush1.msra.mxu0 0.0
        %961 = vmatprep.subr.mxu0 0.0
        %962 = vmatpush1.msra.mxu0 0.0
        %963 = vmatprep.subr.mxu0 0.0
        %964 = vmatpush1.msra.mxu0 0.0
        %965 = vmatprep.subr.mxu0 0.0
        %966 = vmatpush1.msra.mxu0 0.0
        %967 = vmatprep.subr.mxu0 0.0
        %968 = vmatpush1.msra.mxu0 0.0
        %969 = vmatprep.subr.mxu0 0.0
        %970 = vmatpush1.msra.mxu0 0.0
        %971 = vmatprep.subr.mxu0 0.0
        %972 = vmatpush1.msra.mxu0 0.0
        %973 = vmatprep.mubr.f32.mxu0 0.0
        %v974 = vand.u32 %v304, 4294901760
        %975 = vmatmul.mubr.f32.gmra.mrb[0].mxu0 %v974
        %v976 = vpop.f32.mrb[0].mxu0
        %v977 = vadd.f32 %v876, %v976
        %v978 = vpop.f32.mrb[0].mxu0
        %v979 = vadd.f32 %v878, %v978
        %980 = vmatprep.mubr.f32.mxu0 0.0
        %v981 = vand.u32 %v306, 4294901760
        %982 = vmatmul.mubr.f32.gmra.mrb[0].mxu0 %v981
        %v983 = vpop.f32.mrb[0].mxu0
        %v984 = vadd.f32 %v883, %v983
        %v985 = vpop.f32.mrb[0].mxu0
        %v986 = vadd.f32 %v885, %v985
        %987 = vmatprep.mubr.f32.mxu0 0.0
        %v988 = vand.u32 %v308, 4294901760
        %989 = vmatmul.mubr.f32.gmra.mrb[0].mxu0 %v988
        %v990 = vpop.f32.mrb[0].mxu0
        %v991 = vadd.f32 %v890, %v990
        %v992 = vpop.f32.mrb[0].mxu0
        %v993 = vadd.f32 %v892, %v992
        %994 = vmatprep.mubr.f32.mxu0 0.0
        %v995 = vand.u32 %v310, 4294901760
        %996 = vmatmul.mubr.f32.gmra.mrb[0].mxu0 %v995
        %v997 = vpop.f32.mrb[0].mxu0
        %v998 = vadd.f32 %v897, %v997
        %v999 = vpop.f32.mrb[0].mxu0
        %v1000 = vadd.f32 %v899, %v999
        %1001 = vdwg.mxu0
        %v1002 = vand.u32 %v274, 4294901760
        %1003 = vmatprep.subr.mxu0 %v1002
        %v1004 = vand.u32 %v273, 4294901760
        %1005 = vmatpush1.msra.mxu0 %v1004
        %v1006 = vand.u32 %v278, 4294901760
        %1007 = vmatprep.subr.mxu0 %v1006
        %v1008 = vand.u32 %v277, 4294901760
        %1009 = vmatpush1.msra.mxu0 %v1008
        %v1010 = vand.u32 %v282, 4294901760
        %1011 = vmatprep.subr.mxu0 %v1010
        %v1012 = vand.u32 %v281, 4294901760
        %1013 = vmatpush1.msra.mxu0 %v1012
        %v1014 = vand.u32 %v286, 4294901760
        %1015 = vmatprep.subr.mxu0 %v1014
        %v1016 = vand.u32 %v285, 4294901760
        %1017 = vmatpush1.msra.mxu0 %v1016
        %1018 = vmatprep.subr.mxu0 0.0
        %1019 = vmatpush1.msra.mxu0 0.0
        %1020 = vmatprep.subr.mxu0 0.0
        %1021 = vmatpush1.msra.mxu0 0.0
        %1022 = vmatprep.subr.mxu0 0.0
        %1023 = vmatpush1.msra.mxu0 0.0
        %1024 = vmatprep.subr.mxu0 0.0
        %1025 = vmatpush1.msra.mxu0 0.0
        %1026 = vmatprep.subr.mxu0 0.0
        %1027 = vmatpush1.msra.mxu0 0.0
        %1028 = vmatprep.subr.mxu0 0.0
        %1029 = vmatpush1.msra.mxu0 0.0
        %1030 = vmatprep.subr.mxu0 0.0
        %1031 = vmatpush1.msra.mxu0 0.0
        %1032 = vmatprep.subr.mxu0 0.0
        %1033 = vmatpush1.msra.mxu0 0.0
        %1034 = vmatprep.subr.mxu0 0.0
        %1035 = vmatpush1.msra.mxu0 0.0
        %1036 = vmatprep.subr.mxu0 0.0
        %1037 = vmatpush1.msra.mxu0 0.0
        %1038 = vmatprep.subr.mxu0 0.0
        %1039 = vmatpush1.msra.mxu0 0.0
        %1040 = vmatprep.subr.mxu0 0.0
        %1041 = vmatpush1.msra.mxu0 0.0
        %1042 = vmatprep.subr.mxu0 0.0
        %1043 = vmatpush1.msra.mxu0 0.0
        %1044 = vmatprep.subr.mxu0 0.0
        %1045 = vmatpush1.msra.mxu0 0.0
        %1046 = vmatprep.subr.mxu0 0.0
        %1047 = vmatpush1.msra.mxu0 0.0
        %1048 = vmatprep.subr.mxu0 0.0
        %1049 = vmatpush1.msra.mxu0 0.0
        %1050 = vmatprep.subr.mxu0 0.0
        %1051 = vmatpush1.msra.mxu0 0.0
        %1052 = vmatprep.subr.mxu0 0.0
        %1053 = vmatpush1.msra.mxu0 0.0
        %1054 = vmatprep.subr.mxu0 0.0
        %1055 = vmatpush1.msra.mxu0 0.0
        %1056 = vmatprep.subr.mxu0 0.0
        %1057 = vmatpush1.msra.mxu0 0.0
        %1058 = vmatprep.subr.mxu0 0.0
        %1059 = vmatpush1.msra.mxu0 0.0
        %1060 = vmatprep.subr.mxu0 0.0
        %1061 = vmatpush1.msra.mxu0 0.0
        %1062 = vmatprep.subr.mxu0 0.0
        %1063 = vmatpush1.msra.mxu0 0.0
        %1064 = vmatprep.subr.mxu0 0.0
        %1065 = vmatpush1.msra.mxu0 0.0
        %1066 = vmatprep.subr.mxu0 0.0
        %1067 = vmatpush1.msra.mxu0 0.0
        %1068 = vmatprep.subr.mxu0 0.0
        %1069 = vmatpush1.msra.mxu0 0.0
        %1070 = vmatprep.subr.mxu0 0.0
        %1071 = vmatpush1.msra.mxu0 0.0
        %1072 = vmatprep.subr.mxu0 0.0
        %1073 = vmatpush1.msra.mxu0 0.0
        %1074 = vmatprep.mubr.f32.mxu0 0.0
        %v1075 = vand.u32 %v304, 4294901760
        %v1076 = vsub.f32 %v304, %v1075
        %v1077 = vand.u32 %v1076, 4294901760
        %v1078 = vsub.f32 %v1076, %v1077
        %v1079 = vand.u32 %v1078, 4294901760
        %1080 = vmatmul.mubr.f32.gmra.mrb[0].mxu0 %v1079
        %v1081 = vpop.f32.mrb[0].mxu0
        %v1082 = vadd.f32 %v289, %v1081
        %v1083 = vpop.f32.mrb[0].mxu0
        %v1084 = vadd.f32 %v289, %v1083
        %1085 = vmatprep.mubr.f32.mxu0 0.0
        %v1086 = vand.u32 %v306, 4294901760
        %v1087 = vsub.f32 %v306, %v1086
        %v1088 = vand.u32 %v1087, 4294901760
        %v1089 = vsub.f32 %v1087, %v1088
        %v1090 = vand.u32 %v1089, 4294901760
        %1091 = vmatmul.mubr.f32.gmra.mrb[0].mxu0 %v1090
        %v1092 = vpop.f32.mrb[0].mxu0
        %v1093 = vadd.f32 %v293, %v1092
        %v1094 = vpop.f32.mrb[0].mxu0
        %v1095 = vadd.f32 %v293, %v1094
        %1096 = vmatprep.mubr.f32.mxu0 0.0
        %v1097 = vand.u32 %v308, 4294901760
        %v1098 = vsub.f32 %v308, %v1097
        %v1099 = vand.u32 %v1098, 4294901760
        %v1100 = vsub.f32 %v1098, %v1099
        %v1101 = vand.u32 %v1100, 4294901760
        %1102 = vmatmul.mubr.f32.gmra.mrb[0].mxu0 %v1101
        %v1103 = vpop.f32.mrb[0].mxu0
        %v1104 = vadd.f32 %v297, %v1103
        %v1105 = vpop.f32.mrb[0].mxu0
        %v1106 = vadd.f32 %v297, %v1105
        %1107 = vmatprep.mubr.f32.mxu0 0.0
        %v1108 = vand.u32 %v310, 4294901760
        %v1109 = vsub.f32 %v310, %v1108
        %v1110 = vand.u32 %v1109, 4294901760
        %v1111 = vsub.f32 %v1109, %v1110
        %v1112 = vand.u32 %v1111, 4294901760
        %1113 = vmatmul.mubr.f32.gmra.mrb[0].mxu0 %v1112
        %v1114 = vpop.f32.mrb[0].mxu0
        %v1115 = vadd.f32 %v301, %v1114
        %v1116 = vpop.f32.mrb[0].mxu0
        %v1117 = vadd.f32 %v301, %v1116
        %1118 = vdwg.mxu0
        %v1119 = vand.u32 %v274, 4294901760
        %v1120 = vsub.f32 %v274, %v1119
        %v1121 = vand.u32 %v1120, 4294901760
        %v1122 = vsub.f32 %v1120, %v1121
        %v1123 = vand.u32 %v1122, 4294901760
        %1124 = vmatprep.subr.mxu0 %v1123
        %v1125 = vand.u32 %v273, 4294901760
        %v1126 = vsub.f32 %v273, %v1125
        %v1127 = vand.u32 %v1126, 4294901760
        %v1128 = vsub.f32 %v1126, %v1127
        %v1129 = vand.u32 %v1128, 4294901760
        %1130 = vmatpush1.msra.mxu0 %v1129
        %v1131 = vand.u32 %v278, 4294901760
        %v1132 = vsub.f32 %v278, %v1131
        %v1133 = vand.u32 %v1132, 4294901760
        %v1134 = vsub.f32 %v1132, %v1133
        %v1135 = vand.u32 %v1134, 4294901760
        %1136 = vmatprep.subr.mxu0 %v1135
        %v1137 = vand.u32 %v277, 4294901760
        %v1138 = vsub.f32 %v277, %v1137
        %v1139 = vand.u32 %v1138, 4294901760
        %v1140 = vsub.f32 %v1138, %v1139
        %v1141 = vand.u32 %v1140, 4294901760
        %1142 = vmatpush1.msra.mxu0 %v1141
        %v1143 = vand.u32 %v282, 4294901760
        %v1144 = vsub.f32 %v282, %v1143
        %v1145 = vand.u32 %v1144, 4294901760
        %v1146 = vsub.f32 %v1144, %v1145
        %v1147 = vand.u32 %v1146, 4294901760
        %1148 = vmatprep.subr.mxu0 %v1147
        %v1149 = vand.u32 %v281, 4294901760
        %v1150 = vsub.f32 %v281, %v1149
        %v1151 = vand.u32 %v1150, 4294901760
        %v1152 = vsub.f32 %v1150, %v1151
        %v1153 = vand.u32 %v1152, 4294901760
        %1154 = vmatpush1.msra.mxu0 %v1153
        %v1155 = vand.u32 %v286, 4294901760
        %v1156 = vsub.f32 %v286, %v1155
        %v1157 = vand.u32 %v1156, 4294901760
        %v1158 = vsub.f32 %v1156, %v1157
        %v1159 = vand.u32 %v1158, 4294901760
        %1160 = vmatprep.subr.mxu0 %v1159
        %v1161 = vand.u32 %v285, 4294901760
        %v1162 = vsub.f32 %v285, %v1161
        %v1163 = vand.u32 %v1162, 4294901760
        %v1164 = vsub.f32 %v1162, %v1163
        %v1165 = vand.u32 %v1164, 4294901760
        %1166 = vmatpush1.msra.mxu0 %v1165
        %1167 = vmatprep.subr.mxu0 0.0
        %1168 = vmatpush1.msra.mxu0 0.0
        %1169 = vmatprep.subr.mxu0 0.0
        %1170 = vmatpush1.msra.mxu0 0.0
        %1171 = vmatprep.subr.mxu0 0.0
        %1172 = vmatpush1.msra.mxu0 0.0
        %1173 = vmatprep.subr.mxu0 0.0
        %1174 = vmatpush1.msra.mxu0 0.0
        %1175 = vmatprep.subr.mxu0 0.0
        %1176 = vmatpush1.msra.mxu0 0.0
        %1177 = vmatprep.subr.mxu0 0.0
        %1178 = vmatpush1.msra.mxu0 0.0
        %1179 = vmatprep.subr.mxu0 0.0
        %1180 = vmatpush1.msra.mxu0 0.0
        %1181 = vmatprep.subr.mxu0 0.0
        %1182 = vmatpush1.msra.mxu0 0.0
        %1183 = vmatprep.subr.mxu0 0.0
        %1184 = vmatpush1.msra.mxu0 0.0
        %1185 = vmatprep.subr.mxu0 0.0
        %1186 = vmatpush1.msra.mxu0 0.0
        %1187 = vmatprep.subr.mxu0 0.0
        %1188 = vmatpush1.msra.mxu0 0.0
        %1189 = vmatprep.subr.mxu0 0.0
        %1190 = vmatpush1.msra.mxu0 0.0
        %1191 = vmatprep.subr.mxu0 0.0
        %1192 = vmatpush1.msra.mxu0 0.0
        %1193 = vmatprep.subr.mxu0 0.0
        %1194 = vmatpush1.msra.mxu0 0.0
        %1195 = vmatprep.subr.mxu0 0.0
        %1196 = vmatpush1.msra.mxu0 0.0
        %1197 = vmatprep.subr.mxu0 0.0
        %1198 = vmatpush1.msra.mxu0 0.0
        %1199 = vmatprep.subr.mxu0 0.0
        %1200 = vmatpush1.msra.mxu0 0.0
        %1201 = vmatprep.subr.mxu0 0.0
        %1202 = vmatpush1.msra.mxu0 0.0
        %1203 = vmatprep.subr.mxu0 0.0
        %1204 = vmatpush1.msra.mxu0 0.0
        %1205 = vmatprep.subr.mxu0 0.0
        %1206 = vmatpush1.msra.mxu0 0.0
        %1207 = vmatprep.subr.mxu0 0.0
        %1208 = vmatpush1.msra.mxu0 0.0
        %1209 = vmatprep.subr.mxu0 0.0
        %1210 = vmatpush1.msra.mxu0 0.0
        %1211 = vmatprep.subr.mxu0 0.0
        %1212 = vmatpush1.msra.mxu0 0.0
        %1213 = vmatprep.subr.mxu0 0.0
        %1214 = vmatpush1.msra.mxu0 0.0
        %1215 = vmatprep.subr.mxu0 0.0
        %1216 = vmatpush1.msra.mxu0 0.0
        %1217 = vmatprep.subr.mxu0 0.0
        %1218 = vmatpush1.msra.mxu0 0.0
        %1219 = vmatprep.subr.mxu0 0.0
        %1220 = vmatpush1.msra.mxu0 0.0
        %1221 = vmatprep.subr.mxu0 0.0
        %1222 = vmatpush1.msra.mxu0 0.0
        %1223 = vmatprep.mubr.f32.mxu0 0.0
        %v1224 = vand.u32 %v304, 4294901760
        %1225 = vmatmul.mubr.f32.gmra.mrb[0].mxu0 %v1224
        %v1226 = vpop.f32.mrb[0].mxu0
        %v1227 = vadd.f32 %v1082, %v1226
        %v1228 = vpop.f32.mrb[0].mxu0
        %v1229 = vadd.f32 %v1084, %v1228
        %1230 = vmatprep.mubr.f32.mxu0 0.0
        %v1231 = vand.u32 %v306, 4294901760
        %1232 = vmatmul.mubr.f32.gmra.mrb[0].mxu0 %v1231
        %v1233 = vpop.f32.mrb[0].mxu0
        %v1234 = vadd.f32 %v1093, %v1233
        %v1235 = vpop.f32.mrb[0].mxu0
        %v1236 = vadd.f32 %v1095, %v1235
        %1237 = vmatprep.mubr.f32.mxu0 0.0
        %v1238 = vand.u32 %v308, 4294901760
        %1239 = vmatmul.mubr.f32.gmra.mrb[0].mxu0 %v1238
        %v1240 = vpop.f32.mrb[0].mxu0
        %v1241 = vadd.f32 %v1104, %v1240
        %v1242 = vpop.f32.mrb[0].mxu0
        %v1243 = vadd.f32 %v1106, %v1242
        %1244 = vmatprep.mubr.f32.mxu0 0.0
        %v1245 = vand.u32 %v310, 4294901760
        %1246 = vmatmul.mubr.f32.gmra.mrb[0].mxu0 %v1245
        %v1247 = vpop.f32.mrb[0].mxu0
        %v1248 = vadd.f32 %v1115, %v1247
        %v1249 = vpop.f32.mrb[0].mxu0
        %v1250 = vadd.f32 %v1117, %v1249
        %1251 = vdwg.mxu0
        %v1252 = vand.u32 %v274, 4294901760
        %v1253 = vsub.f32 %v274, %v1252
        %1254 = vmatprep.subr.mxu0 %v1253
        %v1255 = vand.u32 %v273, 4294901760
        %v1256 = vsub.f32 %v273, %v1255
        %1257 = vmatpush1.msra.mxu0 %v1256
        %v1258 = vand.u32 %v278, 4294901760
        %v1259 = vsub.f32 %v278, %v1258
        %1260 = vmatprep.subr.mxu0 %v1259
        %v1261 = vand.u32 %v277, 4294901760
        %v1262 = vsub.f32 %v277, %v1261
        %1263 = vmatpush1.msra.mxu0 %v1262
        %v1264 = vand.u32 %v282, 4294901760
        %v1265 = vsub.f32 %v282, %v1264
        %1266 = vmatprep.subr.mxu0 %v1265
        %v1267 = vand.u32 %v281, 4294901760
        %v1268 = vsub.f32 %v281, %v1267
        %1269 = vmatpush1.msra.mxu0 %v1268
        %v1270 = vand.u32 %v286, 4294901760
        %v1271 = vsub.f32 %v286, %v1270
        %1272 = vmatprep.subr.mxu0 %v1271
        %v1273 = vand.u32 %v285, 4294901760
        %v1274 = vsub.f32 %v285, %v1273
        %1275 = vmatpush1.msra.mxu0 %v1274
        %1276 = vmatprep.subr.mxu0 0.0
        %1277 = vmatpush1.msra.mxu0 0.0
        %1278 = vmatprep.subr.mxu0 0.0
        %1279 = vmatpush1.msra.mxu0 0.0
        %1280 = vmatprep.subr.mxu0 0.0
        %1281 = vmatpush1.msra.mxu0 0.0
        %1282 = vmatprep.subr.mxu0 0.0
        %1283 = vmatpush1.msra.mxu0 0.0
        %1284 = vmatprep.subr.mxu0 0.0
        %1285 = vmatpush1.msra.mxu0 0.0
        %1286 = vmatprep.subr.mxu0 0.0
        %1287 = vmatpush1.msra.mxu0 0.0
        %1288 = vmatprep.subr.mxu0 0.0
        %1289 = vmatpush1.msra.mxu0 0.0
        %1290 = vmatprep.subr.mxu0 0.0
        %1291 = vmatpush1.msra.mxu0 0.0
        %1292 = vmatprep.subr.mxu0 0.0
        %1293 = vmatpush1.msra.mxu0 0.0
        %1294 = vmatprep.subr.mxu0 0.0
        %1295 = vmatpush1.msra.mxu0 0.0
        %1296 = vmatprep.subr.mxu0 0.0
        %1297 = vmatpush1.msra.mxu0 0.0
        %1298 = vmatprep.subr.mxu0 0.0
        %1299 = vmatpush1.msra.mxu0 0.0
        %1300 = vmatprep.subr.mxu0 0.0
        %1301 = vmatpush1.msra.mxu0 0.0
        %1302 = vmatprep.subr.mxu0 0.0
        %1303 = vmatpush1.msra.mxu0 0.0
        %1304 = vmatprep.subr.mxu0 0.0
        %1305 = vmatpush1.msra.mxu0 0.0
        %1306 = vmatprep.subr.mxu0 0.0
        %1307 = vmatpush1.msra.mxu0 0.0
        %1308 = vmatprep.subr.mxu0 0.0
        %1309 = vmatpush1.msra.mxu0 0.0
        %1310 = vmatprep.subr.mxu0 0.0
        %1311 = vmatpush1.msra.mxu0 0.0
        %1312 = vmatprep.subr.mxu0 0.0
        %1313 = vmatpush1.msra.mxu0 0.0
        %1314 = vmatprep.subr.mxu0 0.0
        %1315 = vmatpush1.msra.mxu0 0.0
        %1316 = vmatprep.subr.mxu0 0.0
        %1317 = vmatpush1.msra.mxu0 0.0
        %1318 = vmatprep.subr.mxu0 0.0
        %1319 = vmatpush1.msra.mxu0 0.0
        %1320 = vmatprep.subr.mxu0 0.0
        %1321 = vmatpush1.msra.mxu0 0.0
        %1322 = vmatprep.subr.mxu0 0.0
        %1323 = vmatpush1.msra.mxu0 0.0
        %1324 = vmatprep.subr.mxu0 0.0
        %1325 = vmatpush1.msra.mxu0 0.0
        %1326 = vmatprep.subr.mxu0 0.0
        %1327 = vmatpush1.msra.mxu0 0.0
        %1328 = vmatprep.subr.mxu0 0.0
        %1329 = vmatpush1.msra.mxu0 0.0
        %1330 = vmatprep.subr.mxu0 0.0
        %1331 = vmatpush1.msra.mxu0 0.0
        %1332 = vmatprep.mubr.f32.mxu0 0.0
        %v1333 = vand.u32 %v304, 4294901760
        %v1334 = vsub.f32 %v304, %v1333
        %1335 = vmatmul.mubr.f32.gmra.mrb[0].mxu0 %v1334
        %v1336 = vpop.f32.mrb[0].mxu0
        %v1337 = vadd.f32 %v1227, %v1336
        %v1338 = vpop.f32.mrb[0].mxu0
        %v1339 = vadd.f32 %v1229, %v1338
        %1340 = vmatprep.mubr.f32.mxu0 0.0
        %v1341 = vand.u32 %v306, 4294901760
        %v1342 = vsub.f32 %v306, %v1341
        %1343 = vmatmul.mubr.f32.gmra.mrb[0].mxu0 %v1342
        %v1344 = vpop.f32.mrb[0].mxu0
        %v1345 = vadd.f32 %v1234, %v1344
        %v1346 = vpop.f32.mrb[0].mxu0
        %v1347 = vadd.f32 %v1236, %v1346
        %1348 = vmatprep.mubr.f32.mxu0 0.0
        %v1349 = vand.u32 %v308, 4294901760
        %v1350 = vsub.f32 %v308, %v1349
        %1351 = vmatmul.mubr.f32.gmra.mrb[0].mxu0 %v1350
        %v1352 = vpop.f32.mrb[0].mxu0
        %v1353 = vadd.f32 %v1241, %v1352
        %v1354 = vpop.f32.mrb[0].mxu0
        %v1355 = vadd.f32 %v1243, %v1354
        %1356 = vmatprep.mubr.f32.mxu0 0.0
        %v1357 = vand.u32 %v310, 4294901760
        %v1358 = vsub.f32 %v310, %v1357
        %1359 = vmatmul.mubr.f32.gmra.mrb[0].mxu0 %v1358
        %v1360 = vpop.f32.mrb[0].mxu0
        %v1361 = vadd.f32 %v1248, %v1360
        %v1362 = vpop.f32.mrb[0].mxu0
        %v1363 = vadd.f32 %v1250, %v1362
        %1364 = vdwg.mxu0
        %v1365 = vand.u32 %v274, 4294901760
        %1366 = vmatprep.subr.mxu0 %v1365
        %v1367 = vand.u32 %v273, 4294901760
        %1368 = vmatpush1.msra.mxu0 %v1367
        %v1369 = vand.u32 %v278, 4294901760
        %1370 = vmatprep.subr.mxu0 %v1369
        %v1371 = vand.u32 %v277, 4294901760
        %1372 = vmatpush1.msra.mxu0 %v1371
        %v1373 = vand.u32 %v282, 4294901760
        %1374 = vmatprep.subr.mxu0 %v1373
        %v1375 = vand.u32 %v281, 4294901760
        %1376 = vmatpush1.msra.mxu0 %v1375
        %v1377 = vand.u32 %v286, 4294901760
        %1378 = vmatprep.subr.mxu0 %v1377
        %v1379 = vand.u32 %v285, 4294901760
        %1380 = vmatpush1.msra.mxu0 %v1379
        %1381 = vmatprep.subr.mxu0 0.0
        %1382 = vmatpush1.msra.mxu0 0.0
        %1383 = vmatprep.subr.mxu0 0.0
        %1384 = vmatpush1.msra.mxu0 0.0
        %1385 = vmatprep.subr.mxu0 0.0
        %1386 = vmatpush1.msra.mxu0 0.0
        %1387 = vmatprep.subr.mxu0 0.0
        %1388 = vmatpush1.msra.mxu0 0.0
        %1389 = vmatprep.subr.mxu0 0.0
        %1390 = vmatpush1.msra.mxu0 0.0
        %1391 = vmatprep.subr.mxu0 0.0
        %1392 = vmatpush1.msra.mxu0 0.0
        %1393 = vmatprep.subr.mxu0 0.0
        %1394 = vmatpush1.msra.mxu0 0.0
        %1395 = vmatprep.subr.mxu0 0.0
        %1396 = vmatpush1.msra.mxu0 0.0
        %1397 = vmatprep.subr.mxu0 0.0
        %1398 = vmatpush1.msra.mxu0 0.0
        %1399 = vmatprep.subr.mxu0 0.0
        %1400 = vmatpush1.msra.mxu0 0.0
        %1401 = vmatprep.subr.mxu0 0.0
        %1402 = vmatpush1.msra.mxu0 0.0
        %1403 = vmatprep.subr.mxu0 0.0
        %1404 = vmatpush1.msra.mxu0 0.0
        %1405 = vmatprep.subr.mxu0 0.0
        %1406 = vmatpush1.msra.mxu0 0.0
        %1407 = vmatprep.subr.mxu0 0.0
        %1408 = vmatpush1.msra.mxu0 0.0
        %1409 = vmatprep.subr.mxu0 0.0
        %1410 = vmatpush1.msra.mxu0 0.0
        %1411 = vmatprep.subr.mxu0 0.0
        %1412 = vmatpush1.msra.mxu0 0.0
        %1413 = vmatprep.subr.mxu0 0.0
        %1414 = vmatpush1.msra.mxu0 0.0
        %1415 = vmatprep.subr.mxu0 0.0
        %1416 = vmatpush1.msra.mxu0 0.0
        %1417 = vmatprep.subr.mxu0 0.0
        %1418 = vmatpush1.msra.mxu0 0.0
        %1419 = vmatprep.subr.mxu0 0.0
        %1420 = vmatpush1.msra.mxu0 0.0
        %1421 = vmatprep.subr.mxu0 0.0
        %1422 = vmatpush1.msra.mxu0 0.0
        %1423 = vmatprep.subr.mxu0 0.0
        %1424 = vmatpush1.msra.mxu0 0.0
        %1425 = vmatprep.subr.mxu0 0.0
        %1426 = vmatpush1.msra.mxu0 0.0
        %1427 = vmatprep.subr.mxu0 0.0
        %1428 = vmatpush1.msra.mxu0 0.0
        %1429 = vmatprep.subr.mxu0 0.0
        %1430 = vmatpush1.msra.mxu0 0.0
        %1431 = vmatprep.subr.mxu0 0.0
        %1432 = vmatpush1.msra.mxu0 0.0
        %1433 = vmatprep.subr.mxu0 0.0
        %1434 = vmatpush1.msra.mxu0 0.0
        %1435 = vmatprep.subr.mxu0 0.0
        %1436 = vmatpush1.msra.mxu0 0.0
        %1437 = vmatprep.mubr.f32.mxu0 0.0
        %v1438 = vand.u32 %v304, 4294901760
        %v1439 = vsub.f32 %v304, %v1438
        %v1440 = vand.u32 %v1439, 4294901760
        %1441 = vmatmul.mubr.f32.gmra.mrb[0].mxu0 %v1440
        %v1442 = vpop.f32.mrb[0].mxu0
        %v1443 = vadd.f32 %v1337, %v1442
        %v1444 = vpop.f32.mrb[0].mxu0
        %v1445 = vadd.f32 %v1339, %v1444
        %1446 = vmatprep.mubr.f32.mxu0 0.0
        %v1447 = vand.u32 %v306, 4294901760
        %v1448 = vsub.f32 %v306, %v1447
        %v1449 = vand.u32 %v1448, 4294901760
        %1450 = vmatmul.mubr.f32.gmra.mrb[0].mxu0 %v1449
        %v1451 = vpop.f32.mrb[0].mxu0
        %v1452 = vadd.f32 %v1345, %v1451
        %v1453 = vpop.f32.mrb[0].mxu0
        %v1454 = vadd.f32 %v1347, %v1453
        %1455 = vmatprep.mubr.f32.mxu0 0.0
        %v1456 = vand.u32 %v308, 4294901760
        %v1457 = vsub.f32 %v308, %v1456
        %v1458 = vand.u32 %v1457, 4294901760
        %1459 = vmatmul.mubr.f32.gmra.mrb[0].mxu0 %v1458
        %v1460 = vpop.f32.mrb[0].mxu0
        %v1461 = vadd.f32 %v1353, %v1460
        %v1462 = vpop.f32.mrb[0].mxu0
        %v1463 = vadd.f32 %v1355, %v1462
        %1464 = vmatprep.mubr.f32.mxu0 0.0
        %v1465 = vand.u32 %v310, 4294901760
        %v1466 = vsub.f32 %v310, %v1465
        %v1467 = vand.u32 %v1466, 4294901760
        %1468 = vmatmul.mubr.f32.gmra.mrb[0].mxu0 %v1467
        %v1469 = vpop.f32.mrb[0].mxu0
        %v1470 = vadd.f32 %v1361, %v1469
        %v1471 = vpop.f32.mrb[0].mxu0
        %v1472 = vadd.f32 %v1363, %v1471
        %1473 = vdwg.mxu0
        %v1474 = vand.u32 %v274, 4294901760
        %v1475 = vsub.f32 %v274, %v1474
        %v1476 = vand.u32 %v1475, 4294901760
        %1477 = vmatprep.subr.mxu0 %v1476
        %v1478 = vand.u32 %v273, 4294901760
        %v1479 = vsub.f32 %v273, %v1478
        %v1480 = vand.u32 %v1479, 4294901760
        %1481 = vmatpush1.msra.mxu0 %v1480
        %v1482 = vand.u32 %v278, 4294901760
        %v1483 = vsub.f32 %v278, %v1482
        %v1484 = vand.u32 %v1483, 4294901760
        %1485 = vmatprep.subr.mxu0 %v1484
        %v1486 = vand.u32 %v277, 4294901760
        %v1487 = vsub.f32 %v277, %v1486
        %v1488 = vand.u32 %v1487, 4294901760
        %1489 = vmatpush1.msra.mxu0 %v1488
        %v1490 = vand.u32 %v282, 4294901760
        %v1491 = vsub.f32 %v282, %v1490
        %v1492 = vand.u32 %v1491, 4294901760
        %1493 = vmatprep.subr.mxu0 %v1492
        %v1494 = vand.u32 %v281, 4294901760
        %v1495 = vsub.f32 %v281, %v1494
        %v1496 = vand.u32 %v1495, 4294901760
        %1497 = vmatpush1.msra.mxu0 %v1496
        %v1498 = vand.u32 %v286, 4294901760
        %v1499 = vsub.f32 %v286, %v1498
        %v1500 = vand.u32 %v1499, 4294901760
        %1501 = vmatprep.subr.mxu0 %v1500
        %v1502 = vand.u32 %v285, 4294901760
        %v1503 = vsub.f32 %v285, %v1502
        %v1504 = vand.u32 %v1503, 4294901760
        %1505 = vmatpush1.msra.mxu0 %v1504
        %1506 = vmatprep.subr.mxu0 0.0
        %1507 = vmatpush1.msra.mxu0 0.0
        %1508 = vmatprep.subr.mxu0 0.0
        %1509 = vmatpush1.msra.mxu0 0.0
        %1510 = vmatprep.subr.mxu0 0.0
        %1511 = vmatpush1.msra.mxu0 0.0
        %1512 = vmatprep.subr.mxu0 0.0
        %1513 = vmatpush1.msra.mxu0 0.0
        %1514 = vmatprep.subr.mxu0 0.0
        %1515 = vmatpush1.msra.mxu0 0.0
        %1516 = vmatprep.subr.mxu0 0.0
        %1517 = vmatpush1.msra.mxu0 0.0
        %1518 = vmatprep.subr.mxu0 0.0
        %1519 = vmatpush1.msra.mxu0 0.0
        %1520 = vmatprep.subr.mxu0 0.0
        %1521 = vmatpush1.msra.mxu0 0.0
        %1522 = vmatprep.subr.mxu0 0.0
        %1523 = vmatpush1.msra.mxu0 0.0
        %1524 = vmatprep.subr.mxu0 0.0
        %1525 = vmatpush1.msra.mxu0 0.0
        %1526 = vmatprep.subr.mxu0 0.0
        %1527 = vmatpush1.msra.mxu0 0.0
        %1528 = vmatprep.subr.mxu0 0.0
        %1529 = vmatpush1.msra.mxu0 0.0
        %1530 = vmatprep.subr.mxu0 0.0
        %1531 = vmatpush1.msra.mxu0 0.0
        %1532 = vmatprep.subr.mxu0 0.0
        %1533 = vmatpush1.msra.mxu0 0.0
        %1534 = vmatprep.subr.mxu0 0.0
        %1535 = vmatpush1.msra.mxu0 0.0
        %1536 = vmatprep.subr.mxu0 0.0
        %1537 = vmatpush1.msra.mxu0 0.0
        %1538 = vmatprep.subr.mxu0 0.0
        %1539 = vmatpush1.msra.mxu0 0.0
        %1540 = vmatprep.subr.mxu0 0.0
        %1541 = vmatpush1.msra.mxu0 0.0
        %1542 = vmatprep.subr.mxu0 0.0
        %1543 = vmatpush1.msra.mxu0 0.0
        %1544 = vmatprep.subr.mxu0 0.0
        %1545 = vmatpush1.msra.mxu0 0.0
        %1546 = vmatprep.subr.mxu0 0.0
        %1547 = vmatpush1.msra.mxu0 0.0
        %1548 = vmatprep.subr.mxu0 0.0
        %1549 = vmatpush1.msra.mxu0 0.0
        %1550 = vmatprep.subr.mxu0 0.0
        %1551 = vmatpush1.msra.mxu0 0.0
        %1552 = vmatprep.subr.mxu0 0.0
        %1553 = vmatpush1.msra.mxu0 0.0
        %1554 = vmatprep.subr.mxu0 0.0
        %1555 = vmatpush1.msra.mxu0 0.0
        %1556 = vmatprep.subr.mxu0 0.0
        %1557 = vmatpush1.msra.mxu0 0.0
        %1558 = vmatprep.subr.mxu0 0.0
        %1559 = vmatpush1.msra.mxu0 0.0
        %1560 = vmatprep.subr.mxu0 0.0
        %1561 = vmatpush1.msra.mxu0 0.0
        %1562 = vmatprep.mubr.f32.mxu0 0.0
        %v1563 = vand.u32 %v304, 4294901760
        %1564 = vmatmul.mubr.f32.gmra.mrb[0].mxu0 %v1563
        %v1565 = vpop.f32.mrb[0].mxu0
        %v1566 = vadd.f32 %v1443, %v1565
        %v1567 = vpop.f32.mrb[0].mxu0
        %v1568 = vadd.f32 %v1445, %v1567
        %1569 = vmatprep.mubr.f32.mxu0 0.0
        %v1570 = vand.u32 %v306, 4294901760
        %1571 = vmatmul.mubr.f32.gmra.mrb[0].mxu0 %v1570
        %v1572 = vpop.f32.mrb[0].mxu0
        %v1573 = vadd.f32 %v1452, %v1572
        %v1574 = vpop.f32.mrb[0].mxu0
        %v1575 = vadd.f32 %v1454, %v1574
        %1576 = vmatprep.mubr.f32.mxu0 0.0
        %v1577 = vand.u32 %v308, 4294901760
        %1578 = vmatmul.mubr.f32.gmra.mrb[0].mxu0 %v1577
        %v1579 = vpop.f32.mrb[0].mxu0
        %v1580 = vadd.f32 %v1461, %v1579
        %v1581 = vpop.f32.mrb[0].mxu0
        %v1582 = vadd.f32 %v1463, %v1581
        %1583 = vmatprep.mubr.f32.mxu0 0.0
        %v1584 = vand.u32 %v310, 4294901760
        %1585 = vmatmul.mubr.f32.gmra.mrb[0].mxu0 %v1584
        %v1586 = vpop.f32.mrb[0].mxu0
        %v1587 = vadd.f32 %v1470, %v1586
        %v1588 = vpop.f32.mrb[0].mxu0
        %v1589 = vadd.f32 %v1472, %v1588
        %1590 = vdwg.mxu0
        %v1591 = vand.u32 %v274, 4294901760
        %1592 = vmatprep.subr.mxu0 %v1591
        %v1593 = vand.u32 %v273, 4294901760
        %1594 = vmatpush1.msra.mxu0 %v1593
        %v1595 = vand.u32 %v278, 4294901760
        %1596 = vmatprep.subr.mxu0 %v1595
        %v1597 = vand.u32 %v277, 4294901760
        %1598 = vmatpush1.msra.mxu0 %v1597
        %v1599 = vand.u32 %v282, 4294901760
        %1600 = vmatprep.subr.mxu0 %v1599
        %v1601 = vand.u32 %v281, 4294901760
        %1602 = vmatpush1.msra.mxu0 %v1601
        %v1603 = vand.u32 %v286, 4294901760
        %1604 = vmatprep.subr.mxu0 %v1603
        %v1605 = vand.u32 %v285, 4294901760
        %1606 = vmatpush1.msra.mxu0 %v1605
        %1607 = vmatprep.subr.mxu0 0.0
        %1608 = vmatpush1.msra.mxu0 0.0
        %1609 = vmatprep.subr.mxu0 0.0
        %1610 = vmatpush1.msra.mxu0 0.0
        %1611 = vmatprep.subr.mxu0 0.0
        %1612 = vmatpush1.msra.mxu0 0.0
        %1613 = vmatprep.subr.mxu0 0.0
        %1614 = vmatpush1.msra.mxu0 0.0
        %1615 = vmatprep.subr.mxu0 0.0
        %1616 = vmatpush1.msra.mxu0 0.0
        %1617 = vmatprep.subr.mxu0 0.0
        %1618 = vmatpush1.msra.mxu0 0.0
        %1619 = vmatprep.subr.mxu0 0.0
        %1620 = vmatpush1.msra.mxu0 0.0
        %1621 = vmatprep.subr.mxu0 0.0
        %1622 = vmatpush1.msra.mxu0 0.0
        %1623 = vmatprep.subr.mxu0 0.0
        %1624 = vmatpush1.msra.mxu0 0.0
        %1625 = vmatprep.subr.mxu0 0.0
        %1626 = vmatpush1.msra.mxu0 0.0
        %1627 = vmatprep.subr.mxu0 0.0
        %1628 = vmatpush1.msra.mxu0 0.0
        %1629 = vmatprep.subr.mxu0 0.0
        %1630 = vmatpush1.msra.mxu0 0.0
        %1631 = vmatprep.subr.mxu0 0.0
        %1632 = vmatpush1.msra.mxu0 0.0
        %1633 = vmatprep.subr.mxu0 0.0
        %1634 = vmatpush1.msra.mxu0 0.0
        %1635 = vmatprep.subr.mxu0 0.0
        %1636 = vmatpush1.msra.mxu0 0.0
        %1637 = vmatprep.subr.mxu0 0.0
        %1638 = vmatpush1.msra.mxu0 0.0
        %1639 = vmatprep.subr.mxu0 0.0
        %1640 = vmatpush1.msra.mxu0 0.0
        %1641 = vmatprep.subr.mxu0 0.0
        %1642 = vmatpush1.msra.mxu0 0.0
        %1643 = vmatprep.subr.mxu0 0.0
        %1644 = vmatpush1.msra.mxu0 0.0
        %1645 = vmatprep.subr.mxu0 0.0
        %1646 = vmatpush1.msra.mxu0 0.0
        %1647 = vmatprep.subr.mxu0 0.0
        %1648 = vmatpush1.msra.mxu0 0.0
        %1649 = vmatprep.subr.mxu0 0.0
        %1650 = vmatpush1.msra.mxu0 0.0
        %1651 = vmatprep.subr.mxu0 0.0
        %1652 = vmatpush1.msra.mxu0 0.0
        %1653 = vmatprep.subr.mxu0 0.0
        %1654 = vmatpush1.msra.mxu0 0.0
        %1655 = vmatprep.subr.mxu0 0.0
        %1656 = vmatpush1.msra.mxu0 0.0
        %1657 = vmatprep.subr.mxu0 0.0
        %1658 = vmatpush1.msra.mxu0 0.0
        %1659 = vmatprep.subr.mxu0 0.0
        %1660 = vmatpush1.msra.mxu0 0.0
        %1661 = vmatprep.subr.mxu0 0.0
        %1662 = vmatpush1.msra.mxu0 0.0
        %1663 = vmatprep.mubr.f32.mxu0 0.0
        %v1664 = vand.u32 %v304, 4294901760
        %1665 = vmatmul.mubr.f32.gmra.mrb[0].mxu0 %v1664
        %v1666 = vpop.f32.mrb[0].mxu0
        %v1667 = vadd.f32 %v1566, %v1666
        %v1668 = vpop.f32.mrb[0].mxu0
        %v1669 = vadd.f32 %v1568, %v1668
        %1670 = vmatprep.mubr.f32.mxu0 0.0
        %v1671 = vand.u32 %v306, 4294901760
        %1672 = vmatmul.mubr.f32.gmra.mrb[0].mxu0 %v1671
        %v1673 = vpop.f32.mrb[0].mxu0
        %v1674 = vadd.f32 %v1573, %v1673
        %v1675 = vpop.f32.mrb[0].mxu0
        %v1676 = vadd.f32 %v1575, %v1675
        %1677 = vmatprep.mubr.f32.mxu0 0.0
        %v1678 = vand.u32 %v308, 4294901760
        %1679 = vmatmul.mubr.f32.gmra.mrb[0].mxu0 %v1678
        %v1680 = vpop.f32.mrb[0].mxu0
        %v1681 = vadd.f32 %v1580, %v1680
        %v1682 = vpop.f32.mrb[0].mxu0
        %v1683 = vadd.f32 %v1582, %v1682
        %1684 = vmatprep.mubr.f32.mxu0 0.0
        %v1685 = vand.u32 %v310, 4294901760
        %1686 = vmatmul.mubr.f32.gmra.mrb[0].mxu0 %v1685
        %v1687 = vpop.f32.mrb[0].mxu0
        %v1688 = vadd.f32 %v1587, %v1687
        %v1689 = vpop.f32.mrb[0].mxu0
        %v1690 = vadd.f32 %v1589, %v1689
        %1691 = vdwg.mxu0
        %v1692 = vmax.f32 %v977, 0.0
        %v1693 = vmax.f32 %v979, 0.0
        %v1694 = vmax.f32 %v1667, 0.0
        %v1695 = vmax.f32 %v1669, 0.0
        %v1696 = vmax.f32 %v984, 0.0
        %v1697 = vmax.f32 %v986, 0.0
        %v1698 = vmax.f32 %v1674, 0.0
        %v1699 = vmax.f32 %v1676, 0.0
        %v1700 = vmax.f32 %v991, 0.0
        %v1701 = vmax.f32 %v993, 0.0
        %v1702 = vmax.f32 %v1681, 0.0
        %v1703 = vmax.f32 %v1683, 0.0
        %v1704 = vmax.f32 %v998, 0.0
        %v1705 = vmax.f32 %v1000, 0.0
        %v1706 = vmax.f32 %v1688, 0.0
        %v1707 = vmax.f32 %v1690, 0.0
        %1708 = vset.pattern.permute.xlu0 99
        %1709 = vperm.xlu0 %1708, %v177
        %v1710 = vpop.permute.xlu0 %1709
        %1712 = vset.pattern.permute.xlu0 99
        %1713 = vperm.xlu0 %1712, %v178
        %v1714 = vpop.permute.xlu0 %1713
        %1716 = vset.pattern.permute.xlu0 99
        %1717 = vperm.xlu0 %1716, %v179
        %v1718 = vpop.permute.xlu0 %1717
        %1720 = vset.pattern.permute.xlu0 99
        %1721 = vperm.xlu0 %1720, %v180
        %v1722 = vpop.permute.xlu0 %1721
        %1724 = vrot.lane.b32.xlu0 %v177, 96
        %v1725 = vpop.permute.xlu0 %1724
        %1726 = vrot.lane.b32.xlu0 %v178, 96
        %v1727 = vpop.permute.xlu0 %1726
        %1728 = vrot.lane.b32.xlu0 %v179, 96
        %v1729 = vpop.permute.xlu0 %1728
        %1730 = vrot.lane.b32.xlu0 %v180, 96
        %v1731 = vpop.permute.xlu0 %1730
        %v1732 = vsel %vm303, %v1725, 0
        %v1734 = vsel %vm303, %v1727, 0
        %v1736 = vsel %vm303, %v1729, 0
        %v1738 = vsel %vm303, %v1731, 0
        %v1740 = vand.u32 %v1693, 4294901760
        %1741 = vmatprep.subr.mxu0 %v1740
        %v1742 = vand.u32 %v1692, 4294901760
        %1743 = vmatpush1.msra.mxu0 %v1742
        %v1744 = vand.u32 %v1697, 4294901760
        %1745 = vmatprep.subr.mxu0 %v1744
        %v1746 = vand.u32 %v1696, 4294901760
        %1747 = vmatpush1.msra.mxu0 %v1746
        %v1748 = vand.u32 %v1701, 4294901760
        %1749 = vmatprep.subr.mxu0 %v1748
        %v1750 = vand.u32 %v1700, 4294901760
        %1751 = vmatpush1.msra.mxu0 %v1750
        %v1752 = vand.u32 %v1705, 4294901760
        %1753 = vmatprep.subr.mxu0 %v1752
        %v1754 = vand.u32 %v1704, 4294901760
        %1755 = vmatpush1.msra.mxu0 %v1754
        %1756 = vmatprep.subr.mxu0 0.0
        %1757 = vmatpush1.msra.mxu0 0.0
        %1758 = vmatprep.subr.mxu0 0.0
        %1759 = vmatpush1.msra.mxu0 0.0
        %1760 = vmatprep.subr.mxu0 0.0
        %1761 = vmatpush1.msra.mxu0 0.0
        %1762 = vmatprep.subr.mxu0 0.0
        %1763 = vmatpush1.msra.mxu0 0.0
        %1764 = vmatprep.subr.mxu0 0.0
        %1765 = vmatpush1.msra.mxu0 0.0
        %1766 = vmatprep.subr.mxu0 0.0
        %1767 = vmatpush1.msra.mxu0 0.0
        %1768 = vmatprep.subr.mxu0 0.0
        %1769 = vmatpush1.msra.mxu0 0.0
        %1770 = vmatprep.subr.mxu0 0.0
        %1771 = vmatpush1.msra.mxu0 0.0
        %1772 = vmatprep.subr.mxu0 0.0
        %1773 = vmatpush1.msra.mxu0 0.0
        %1774 = vmatprep.subr.mxu0 0.0
        %1775 = vmatpush1.msra.mxu0 0.0
        %1776 = vmatprep.subr.mxu0 0.0
        %1777 = vmatpush1.msra.mxu0 0.0
        %1778 = vmatprep.subr.mxu0 0.0
        %1779 = vmatpush1.msra.mxu0 0.0
        %1780 = vmatprep.subr.mxu0 0.0
        %1781 = vmatpush1.msra.mxu0 0.0
        %1782 = vmatprep.subr.mxu0 0.0
        %1783 = vmatpush1.msra.mxu0 0.0
        %1784 = vmatprep.subr.mxu0 0.0
        %1785 = vmatpush1.msra.mxu0 0.0
        %1786 = vmatprep.subr.mxu0 0.0
        %1787 = vmatpush1.msra.mxu0 0.0
        %1788 = vmatprep.subr.mxu0 0.0
        %1789 = vmatpush1.msra.mxu0 0.0
        %1790 = vmatprep.subr.mxu0 0.0
        %1791 = vmatpush1.msra.mxu0 0.0
        %1792 = vmatprep.subr.mxu0 0.0
        %1793 = vmatpush1.msra.mxu0 0.0
        %1794 = vmatprep.subr.mxu0 0.0
        %1795 = vmatpush1.msra.mxu0 0.0
        %1796 = vmatprep.subr.mxu0 0.0
        %1797 = vmatpush1.msra.mxu0 0.0
        %1798 = vmatprep.subr.mxu0 0.0
        %1799 = vmatpush1.msra.mxu0 0.0
        %1800 = vmatprep.subr.mxu0 0.0
        %1801 = vmatpush1.msra.mxu0 0.0
        %1802 = vmatprep.subr.mxu0 0.0
        %1803 = vmatpush1.msra.mxu0 0.0
        %1804 = vmatprep.subr.mxu0 0.0
        %1805 = vmatpush1.msra.mxu0 0.0
        %1806 = vmatprep.subr.mxu0 0.0
        %1807 = vmatpush1.msra.mxu0 0.0
        %1808 = vmatprep.subr.mxu0 0.0
        %1809 = vmatpush1.msra.mxu0 0.0
        %1810 = vmatprep.subr.mxu0 0.0
        %1811 = vmatpush1.msra.mxu0 0.0
        %1812 = vmatprep.mubr.f32.mxu0 0.0
        %v1813 = vand.u32 %v1732, 4294901760
        %v1814 = vsub.f32 %v1732, %v1813
        %v1815 = vand.u32 %v1814, 4294901760
        %v1816 = vsub.f32 %v1814, %v1815
        %v1817 = vand.u32 %v1816, 4294901760
        %1818 = vmatmul.mubr.f32.gmra.mrb[0].mxu0 %v1817
        %v1819 = vpop.f32.mrb[0].mxu0
        %v1820 = vadd.f32 %v1710, %v1819
        %v1821 = vpop.f32.mrb[0].mxu0
        %v1822 = vadd.f32 %v1710, %v1821
        %1823 = vmatprep.mubr.f32.mxu0 0.0
        %v1824 = vand.u32 %v1734, 4294901760
        %v1825 = vsub.f32 %v1734, %v1824
        %v1826 = vand.u32 %v1825, 4294901760
        %v1827 = vsub.f32 %v1825, %v1826
        %v1828 = vand.u32 %v1827, 4294901760
        %1829 = vmatmul.mubr.f32.gmra.mrb[0].mxu0 %v1828
        %v1830 = vpop.f32.mrb[0].mxu0
        %v1831 = vadd.f32 %v1714, %v1830
        %v1832 = vpop.f32.mrb[0].mxu0
        %v1833 = vadd.f32 %v1714, %v1832
        %1834 = vmatprep.mubr.f32.mxu0 0.0
        %v1835 = vand.u32 %v1736, 4294901760
        %v1836 = vsub.f32 %v1736, %v1835
        %v1837 = vand.u32 %v1836, 4294901760
        %v1838 = vsub.f32 %v1836, %v1837
        %v1839 = vand.u32 %v1838, 4294901760
        %1840 = vmatmul.mubr.f32.gmra.mrb[0].mxu0 %v1839
        %v1841 = vpop.f32.mrb[0].mxu0
        %v1842 = vadd.f32 %v1718, %v1841
        %v1843 = vpop.f32.mrb[0].mxu0
        %v1844 = vadd.f32 %v1718, %v1843
        %1845 = vmatprep.mubr.f32.mxu0 0.0
        %v1846 = vand.u32 %v1738, 4294901760
        %v1847 = vsub.f32 %v1738, %v1846
        %v1848 = vand.u32 %v1847, 4294901760
        %v1849 = vsub.f32 %v1847, %v1848
        %v1850 = vand.u32 %v1849, 4294901760
        %1851 = vmatmul.mubr.f32.gmra.mrb[0].mxu0 %v1850
        %v1852 = vpop.f32.mrb[0].mxu0
        %v1853 = vadd.f32 %v1722, %v1852
        %v1854 = vpop.f32.mrb[0].mxu0
        %v1855 = vadd.f32 %v1722, %v1854
        %1856 = vdwg.mxu0
        %v1857 = vand.u32 %v1693, 4294901760
        %v1858 = vsub.f32 %v1693, %v1857
        %v1859 = vand.u32 %v1858, 4294901760
        %v1860 = vsub.f32 %v1858, %v1859
        %v1861 = vand.u32 %v1860, 4294901760
        %1862 = vmatprep.subr.mxu0 %v1861
        %v1863 = vand.u32 %v1692, 4294901760
        %v1864 = vsub.f32 %v1692, %v1863
        %v1865 = vand.u32 %v1864, 4294901760
        %v1866 = vsub.f32 %v1864, %v1865
        %v1867 = vand.u32 %v1866, 4294901760
        %1868 = vmatpush1.msra.mxu0 %v1867
        %v1869 = vand.u32 %v1697, 4294901760
        %v1870 = vsub.f32 %v1697, %v1869
        %v1871 = vand.u32 %v1870, 4294901760
        %v1872 = vsub.f32 %v1870, %v1871
        %v1873 = vand.u32 %v1872, 4294901760
        %1874 = vmatprep.subr.mxu0 %v1873
        %v1875 = vand.u32 %v1696, 4294901760
        %v1876 = vsub.f32 %v1696, %v1875
        %v1877 = vand.u32 %v1876, 4294901760
        %v1878 = vsub.f32 %v1876, %v1877
        %v1879 = vand.u32 %v1878, 4294901760
        %1880 = vmatpush1.msra.mxu0 %v1879
        %v1881 = vand.u32 %v1701, 4294901760
        %v1882 = vsub.f32 %v1701, %v1881
        %v1883 = vand.u32 %v1882, 4294901760
        %v1884 = vsub.f32 %v1882, %v1883
        %v1885 = vand.u32 %v1884, 4294901760
        %1886 = vmatprep.subr.mxu0 %v1885
        %v1887 = vand.u32 %v1700, 4294901760
        %v1888 = vsub.f32 %v1700, %v1887
        %v1889 = vand.u32 %v1888, 4294901760
        %v1890 = vsub.f32 %v1888, %v1889
        %v1891 = vand.u32 %v1890, 4294901760
        %1892 = vmatpush1.msra.mxu0 %v1891
        %v1893 = vand.u32 %v1705, 4294901760
        %v1894 = vsub.f32 %v1705, %v1893
        %v1895 = vand.u32 %v1894, 4294901760
        %v1896 = vsub.f32 %v1894, %v1895
        %v1897 = vand.u32 %v1896, 4294901760
        %1898 = vmatprep.subr.mxu0 %v1897
        %v1899 = vand.u32 %v1704, 4294901760
        %v1900 = vsub.f32 %v1704, %v1899
        %v1901 = vand.u32 %v1900, 4294901760
        %v1902 = vsub.f32 %v1900, %v1901
        %v1903 = vand.u32 %v1902, 4294901760
        %1904 = vmatpush1.msra.mxu0 %v1903
        %1905 = vmatprep.subr.mxu0 0.0
        %1906 = vmatpush1.msra.mxu0 0.0
        %1907 = vmatprep.subr.mxu0 0.0
        %1908 = vmatpush1.msra.mxu0 0.0
        %1909 = vmatprep.subr.mxu0 0.0
        %1910 = vmatpush1.msra.mxu0 0.0
        %1911 = vmatprep.subr.mxu0 0.0
        %1912 = vmatpush1.msra.mxu0 0.0
        %1913 = vmatprep.subr.mxu0 0.0
        %1914 = vmatpush1.msra.mxu0 0.0
        %1915 = vmatprep.subr.mxu0 0.0
        %1916 = vmatpush1.msra.mxu0 0.0
        %1917 = vmatprep.subr.mxu0 0.0
        %1918 = vmatpush1.msra.mxu0 0.0
        %1919 = vmatprep.subr.mxu0 0.0
        %1920 = vmatpush1.msra.mxu0 0.0
        %1921 = vmatprep.subr.mxu0 0.0
        %1922 = vmatpush1.msra.mxu0 0.0
        %1923 = vmatprep.subr.mxu0 0.0
        %1924 = vmatpush1.msra.mxu0 0.0
        %1925 = vmatprep.subr.mxu0 0.0
        %1926 = vmatpush1.msra.mxu0 0.0
        %1927 = vmatprep.subr.mxu0 0.0
        %1928 = vmatpush1.msra.mxu0 0.0
        %1929 = vmatprep.subr.mxu0 0.0
        %1930 = vmatpush1.msra.mxu0 0.0
        %1931 = vmatprep.subr.mxu0 0.0
        %1932 = vmatpush1.msra.mxu0 0.0
        %1933 = vmatprep.subr.mxu0 0.0
        %1934 = vmatpush1.msra.mxu0 0.0
        %1935 = vmatprep.subr.mxu0 0.0
        %1936 = vmatpush1.msra.mxu0 0.0
        %1937 = vmatprep.subr.mxu0 0.0
        %1938 = vmatpush1.msra.mxu0 0.0
        %1939 = vmatprep.subr.mxu0 0.0
        %1940 = vmatpush1.msra.mxu0 0.0
        %1941 = vmatprep.subr.mxu0 0.0
        %1942 = vmatpush1.msra.mxu0 0.0
        %1943 = vmatprep.subr.mxu0 0.0
        %1944 = vmatpush1.msra.mxu0 0.0
        %1945 = vmatprep.subr.mxu0 0.0
        %1946 = vmatpush1.msra.mxu0 0.0
        %1947 = vmatprep.subr.mxu0 0.0
        %1948 = vmatpush1.msra.mxu0 0.0
        %1949 = vmatprep.subr.mxu0 0.0
        %1950 = vmatpush1.msra.mxu0 0.0
        %1951 = vmatprep.subr.mxu0 0.0
        %1952 = vmatpush1.msra.mxu0 0.0
        %1953 = vmatprep.subr.mxu0 0.0
        %1954 = vmatpush1.msra.mxu0 0.0
        %1955 = vmatprep.subr.mxu0 0.0
        %1956 = vmatpush1.msra.mxu0 0.0
        %1957 = vmatprep.subr.mxu0 0.0
        %1958 = vmatpush1.msra.mxu0 0.0
        %1959 = vmatprep.subr.mxu0 0.0
        %1960 = vmatpush1.msra.mxu0 0.0
        %1961 = vmatprep.mubr.f32.mxu0 0.0
        %v1962 = vand.u32 %v1732, 4294901760
        %1963 = vmatmul.mubr.f32.gmra.mrb[0].mxu0 %v1962
        %v1964 = vpop.f32.mrb[0].mxu0
        %v1965 = vadd.f32 %v1820, %v1964
        %v1966 = vpop.f32.mrb[0].mxu0
        %v1967 = vadd.f32 %v1822, %v1966
        %1968 = vmatprep.mubr.f32.mxu0 0.0
        %v1969 = vand.u32 %v1734, 4294901760
        %1970 = vmatmul.mubr.f32.gmra.mrb[0].mxu0 %v1969
        %v1971 = vpop.f32.mrb[0].mxu0
        %v1972 = vadd.f32 %v1831, %v1971
        %v1973 = vpop.f32.mrb[0].mxu0
        %v1974 = vadd.f32 %v1833, %v1973
        %1975 = vmatprep.mubr.f32.mxu0 0.0
        %v1976 = vand.u32 %v1736, 4294901760
        %1977 = vmatmul.mubr.f32.gmra.mrb[0].mxu0 %v1976
        %v1978 = vpop.f32.mrb[0].mxu0
        %v1979 = vadd.f32 %v1842, %v1978
        %v1980 = vpop.f32.mrb[0].mxu0
        %v1981 = vadd.f32 %v1844, %v1980
        %1982 = vmatprep.mubr.f32.mxu0 0.0
        %v1983 = vand.u32 %v1738, 4294901760
        %1984 = vmatmul.mubr.f32.gmra.mrb[0].mxu0 %v1983
        %v1985 = vpop.f32.mrb[0].mxu0
        %v1986 = vadd.f32 %v1853, %v1985
        %v1987 = vpop.f32.mrb[0].mxu0
        %v1988 = vadd.f32 %v1855, %v1987
        %1989 = vdwg.mxu0
        %v1990 = vand.u32 %v1693, 4294901760
        %v1991 = vsub.f32 %v1693, %v1990
        %1992 = vmatprep.subr.mxu0 %v1991
        %v1993 = vand.u32 %v1692, 4294901760
        %v1994 = vsub.f32 %v1692, %v1993
        %1995 = vmatpush1.msra.mxu0 %v1994
        %v1996 = vand.u32 %v1697, 4294901760
        %v1997 = vsub.f32 %v1697, %v1996
        %1998 = vmatprep.subr.mxu0 %v1997
        %v1999 = vand.u32 %v1696, 4294901760
        %v2000 = vsub.f32 %v1696, %v1999
        %2001 = vmatpush1.msra.mxu0 %v2000
        %v2002 = vand.u32 %v1701, 4294901760
        %v2003 = vsub.f32 %v1701, %v2002
        %2004 = vmatprep.subr.mxu0 %v2003
        %v2005 = vand.u32 %v1700, 4294901760
        %v2006 = vsub.f32 %v1700, %v2005
        %2007 = vmatpush1.msra.mxu0 %v2006
        %v2008 = vand.u32 %v1705, 4294901760
        %v2009 = vsub.f32 %v1705, %v2008
        %2010 = vmatprep.subr.mxu0 %v2009
        %v2011 = vand.u32 %v1704, 4294901760
        %v2012 = vsub.f32 %v1704, %v2011
        %2013 = vmatpush1.msra.mxu0 %v2012
        %2014 = vmatprep.subr.mxu0 0.0
        %2015 = vmatpush1.msra.mxu0 0.0
        %2016 = vmatprep.subr.mxu0 0.0
        %2017 = vmatpush1.msra.mxu0 0.0
        %2018 = vmatprep.subr.mxu0 0.0
        %2019 = vmatpush1.msra.mxu0 0.0
        %2020 = vmatprep.subr.mxu0 0.0
        %2021 = vmatpush1.msra.mxu0 0.0
        %2022 = vmatprep.subr.mxu0 0.0
        %2023 = vmatpush1.msra.mxu0 0.0
        %2024 = vmatprep.subr.mxu0 0.0
        %2025 = vmatpush1.msra.mxu0 0.0
        %2026 = vmatprep.subr.mxu0 0.0
        %2027 = vmatpush1.msra.mxu0 0.0
        %2028 = vmatprep.subr.mxu0 0.0
        %2029 = vmatpush1.msra.mxu0 0.0
        %2030 = vmatprep.subr.mxu0 0.0
        %2031 = vmatpush1.msra.mxu0 0.0
        %2032 = vmatprep.subr.mxu0 0.0
        %2033 = vmatpush1.msra.mxu0 0.0
        %2034 = vmatprep.subr.mxu0 0.0
        %2035 = vmatpush1.msra.mxu0 0.0
        %2036 = vmatprep.subr.mxu0 0.0
        %2037 = vmatpush1.msra.mxu0 0.0
        %2038 = vmatprep.subr.mxu0 0.0
        %2039 = vmatpush1.msra.mxu0 0.0
        %2040 = vmatprep.subr.mxu0 0.0
        %2041 = vmatpush1.msra.mxu0 0.0
        %2042 = vmatprep.subr.mxu0 0.0
        %2043 = vmatpush1.msra.mxu0 0.0
        %2044 = vmatprep.subr.mxu0 0.0
        %2045 = vmatpush1.msra.mxu0 0.0
        %2046 = vmatprep.subr.mxu0 0.0
        %2047 = vmatpush1.msra.mxu0 0.0
        %2048 = vmatprep.subr.mxu0 0.0
        %2049 = vmatpush1.msra.mxu0 0.0
        %2050 = vmatprep.subr.mxu0 0.0
        %2051 = vmatpush1.msra.mxu0 0.0
        %2052 = vmatprep.subr.mxu0 0.0
        %2053 = vmatpush1.msra.mxu0 0.0
        %2054 = vmatprep.subr.mxu0 0.0
        %2055 = vmatpush1.msra.mxu0 0.0
        %2056 = vmatprep.subr.mxu0 0.0
        %2057 = vmatpush1.msra.mxu0 0.0
        %2058 = vmatprep.subr.mxu0 0.0
        %2059 = vmatpush1.msra.mxu0 0.0
        %2060 = vmatprep.subr.mxu0 0.0
        %2061 = vmatpush1.msra.mxu0 0.0
        %2062 = vmatprep.subr.mxu0 0.0
        %2063 = vmatpush1.msra.mxu0 0.0
        %2064 = vmatprep.subr.mxu0 0.0
        %2065 = vmatpush1.msra.mxu0 0.0
        %2066 = vmatprep.subr.mxu0 0.0
        %2067 = vmatpush1.msra.mxu0 0.0
        %2068 = vmatprep.subr.mxu0 0.0
        %2069 = vmatpush1.msra.mxu0 0.0
        %2070 = vmatprep.mubr.f32.mxu0 0.0
        %v2071 = vand.u32 %v1732, 4294901760
        %v2072 = vsub.f32 %v1732, %v2071
        %2073 = vmatmul.mubr.f32.gmra.mrb[0].mxu0 %v2072
        %v2074 = vpop.f32.mrb[0].mxu0
        %v2075 = vadd.f32 %v1965, %v2074
        %v2076 = vpop.f32.mrb[0].mxu0
        %v2077 = vadd.f32 %v1967, %v2076
        %2078 = vmatprep.mubr.f32.mxu0 0.0
        %v2079 = vand.u32 %v1734, 4294901760
        %v2080 = vsub.f32 %v1734, %v2079
        %2081 = vmatmul.mubr.f32.gmra.mrb[0].mxu0 %v2080
        %v2082 = vpop.f32.mrb[0].mxu0
        %v2083 = vadd.f32 %v1972, %v2082
        %v2084 = vpop.f32.mrb[0].mxu0
        %v2085 = vadd.f32 %v1974, %v2084
        %2086 = vmatprep.mubr.f32.mxu0 0.0
        %v2087 = vand.u32 %v1736, 4294901760
        %v2088 = vsub.f32 %v1736, %v2087
        %2089 = vmatmul.mubr.f32.gmra.mrb[0].mxu0 %v2088
        %v2090 = vpop.f32.mrb[0].mxu0
        %v2091 = vadd.f32 %v1979, %v2090
        %v2092 = vpop.f32.mrb[0].mxu0
        %v2093 = vadd.f32 %v1981, %v2092
        %2094 = vmatprep.mubr.f32.mxu0 0.0
        %v2095 = vand.u32 %v1738, 4294901760
        %v2096 = vsub.f32 %v1738, %v2095
        %2097 = vmatmul.mubr.f32.gmra.mrb[0].mxu0 %v2096
        %v2098 = vpop.f32.mrb[0].mxu0
        %v2099 = vadd.f32 %v1986, %v2098
        %v2100 = vpop.f32.mrb[0].mxu0
        %v2101 = vadd.f32 %v1988, %v2100
        %2102 = vdwg.mxu0
        %v2103 = vand.u32 %v1693, 4294901760
        %2104 = vmatprep.subr.mxu0 %v2103
        %v2105 = vand.u32 %v1692, 4294901760
        %2106 = vmatpush1.msra.mxu0 %v2105
        %v2107 = vand.u32 %v1697, 4294901760
        %2108 = vmatprep.subr.mxu0 %v2107
        %v2109 = vand.u32 %v1696, 4294901760
        %2110 = vmatpush1.msra.mxu0 %v2109
        %v2111 = vand.u32 %v1701, 4294901760
        %2112 = vmatprep.subr.mxu0 %v2111
        %v2113 = vand.u32 %v1700, 4294901760
        %2114 = vmatpush1.msra.mxu0 %v2113
        %v2115 = vand.u32 %v1705, 4294901760
        %2116 = vmatprep.subr.mxu0 %v2115
        %v2117 = vand.u32 %v1704, 4294901760
        %2118 = vmatpush1.msra.mxu0 %v2117
        %2119 = vmatprep.subr.mxu0 0.0
        %2120 = vmatpush1.msra.mxu0 0.0
        %2121 = vmatprep.subr.mxu0 0.0
        %2122 = vmatpush1.msra.mxu0 0.0
        %2123 = vmatprep.subr.mxu0 0.0
        %2124 = vmatpush1.msra.mxu0 0.0
        %2125 = vmatprep.subr.mxu0 0.0
        %2126 = vmatpush1.msra.mxu0 0.0
        %2127 = vmatprep.subr.mxu0 0.0
        %2128 = vmatpush1.msra.mxu0 0.0
        %2129 = vmatprep.subr.mxu0 0.0
        %2130 = vmatpush1.msra.mxu0 0.0
        %2131 = vmatprep.subr.mxu0 0.0
        %2132 = vmatpush1.msra.mxu0 0.0
        %2133 = vmatprep.subr.mxu0 0.0
        %2134 = vmatpush1.msra.mxu0 0.0
        %2135 = vmatprep.subr.mxu0 0.0
        %2136 = vmatpush1.msra.mxu0 0.0
        %2137 = vmatprep.subr.mxu0 0.0
        %2138 = vmatpush1.msra.mxu0 0.0
        %2139 = vmatprep.subr.mxu0 0.0
        %2140 = vmatpush1.msra.mxu0 0.0
        %2141 = vmatprep.subr.mxu0 0.0
        %2142 = vmatpush1.msra.mxu0 0.0
        %2143 = vmatprep.subr.mxu0 0.0
        %2144 = vmatpush1.msra.mxu0 0.0
        %2145 = vmatprep.subr.mxu0 0.0
        %2146 = vmatpush1.msra.mxu0 0.0
        %2147 = vmatprep.subr.mxu0 0.0
        %2148 = vmatpush1.msra.mxu0 0.0
        %2149 = vmatprep.subr.mxu0 0.0
        %2150 = vmatpush1.msra.mxu0 0.0
        %2151 = vmatprep.subr.mxu0 0.0
        %2152 = vmatpush1.msra.mxu0 0.0
        %2153 = vmatprep.subr.mxu0 0.0
        %2154 = vmatpush1.msra.mxu0 0.0
        %2155 = vmatprep.subr.mxu0 0.0
        %2156 = vmatpush1.msra.mxu0 0.0
        %2157 = vmatprep.subr.mxu0 0.0
        %2158 = vmatpush1.msra.mxu0 0.0
        %2159 = vmatprep.subr.mxu0 0.0
        %2160 = vmatpush1.msra.mxu0 0.0
        %2161 = vmatprep.subr.mxu0 0.0
        %2162 = vmatpush1.msra.mxu0 0.0
        %2163 = vmatprep.subr.mxu0 0.0
        %2164 = vmatpush1.msra.mxu0 0.0
        %2165 = vmatprep.subr.mxu0 0.0
        %2166 = vmatpush1.msra.mxu0 0.0
        %2167 = vmatprep.subr.mxu0 0.0
        %2168 = vmatpush1.msra.mxu0 0.0
        %2169 = vmatprep.subr.mxu0 0.0
        %2170 = vmatpush1.msra.mxu0 0.0
        %2171 = vmatprep.subr.mxu0 0.0
        %2172 = vmatpush1.msra.mxu0 0.0
        %2173 = vmatprep.subr.mxu0 0.0
        %2174 = vmatpush1.msra.mxu0 0.0
        %2175 = vmatprep.mubr.f32.mxu0 0.0
        %v2176 = vand.u32 %v1732, 4294901760
        %v2177 = vsub.f32 %v1732, %v2176
        %v2178 = vand.u32 %v2177, 4294901760
        %2179 = vmatmul.mubr.f32.gmra.mrb[0].mxu0 %v2178
        %v2180 = vpop.f32.mrb[0].mxu0
        %v2181 = vadd.f32 %v2075, %v2180
        %v2182 = vpop.f32.mrb[0].mxu0
        %v2183 = vadd.f32 %v2077, %v2182
        %2184 = vmatprep.mubr.f32.mxu0 0.0
        %v2185 = vand.u32 %v1734, 4294901760
        %v2186 = vsub.f32 %v1734, %v2185
        %v2187 = vand.u32 %v2186, 4294901760
        %2188 = vmatmul.mubr.f32.gmra.mrb[0].mxu0 %v2187
        %v2189 = vpop.f32.mrb[0].mxu0
        %v2190 = vadd.f32 %v2083, %v2189
        %v2191 = vpop.f32.mrb[0].mxu0
        %v2192 = vadd.f32 %v2085, %v2191
        %2193 = vmatprep.mubr.f32.mxu0 0.0
        %v2194 = vand.u32 %v1736, 4294901760
        %v2195 = vsub.f32 %v1736, %v2194
        %v2196 = vand.u32 %v2195, 4294901760
        %2197 = vmatmul.mubr.f32.gmra.mrb[0].mxu0 %v2196
        %v2198 = vpop.f32.mrb[0].mxu0
        %v2199 = vadd.f32 %v2091, %v2198
        %v2200 = vpop.f32.mrb[0].mxu0
        %v2201 = vadd.f32 %v2093, %v2200
        %2202 = vmatprep.mubr.f32.mxu0 0.0
        %v2203 = vand.u32 %v1738, 4294901760
        %v2204 = vsub.f32 %v1738, %v2203
        %v2205 = vand.u32 %v2204, 4294901760
        %2206 = vmatmul.mubr.f32.gmra.mrb[0].mxu0 %v2205
        %v2207 = vpop.f32.mrb[0].mxu0
        %v2208 = vadd.f32 %v2099, %v2207
        %v2209 = vpop.f32.mrb[0].mxu0
        %v2210 = vadd.f32 %v2101, %v2209
        %2211 = vdwg.mxu0
        %v2212 = vand.u32 %v1693, 4294901760
        %v2213 = vsub.f32 %v1693, %v2212
        %v2214 = vand.u32 %v2213, 4294901760
        %2215 = vmatprep.subr.mxu0 %v2214
        %v2216 = vand.u32 %v1692, 4294901760
        %v2217 = vsub.f32 %v1692, %v2216
        %v2218 = vand.u32 %v2217, 4294901760
        %2219 = vmatpush1.msra.mxu0 %v2218
        %v2220 = vand.u32 %v1697, 4294901760
        %v2221 = vsub.f32 %v1697, %v2220
        %v2222 = vand.u32 %v2221, 4294901760
        %2223 = vmatprep.subr.mxu0 %v2222
        %v2224 = vand.u32 %v1696, 4294901760
        %v2225 = vsub.f32 %v1696, %v2224
        %v2226 = vand.u32 %v2225, 4294901760
        %2227 = vmatpush1.msra.mxu0 %v2226
        %v2228 = vand.u32 %v1701, 4294901760
        %v2229 = vsub.f32 %v1701, %v2228
        %v2230 = vand.u32 %v2229, 4294901760
        %2231 = vmatprep.subr.mxu0 %v2230
        %v2232 = vand.u32 %v1700, 4294901760
        %v2233 = vsub.f32 %v1700, %v2232
        %v2234 = vand.u32 %v2233, 4294901760
        %2235 = vmatpush1.msra.mxu0 %v2234
        %v2236 = vand.u32 %v1705, 4294901760
        %v2237 = vsub.f32 %v1705, %v2236
        %v2238 = vand.u32 %v2237, 4294901760
        %2239 = vmatprep.subr.mxu0 %v2238
        %v2240 = vand.u32 %v1704, 4294901760
        %v2241 = vsub.f32 %v1704, %v2240
        %v2242 = vand.u32 %v2241, 4294901760
        %2243 = vmatpush1.msra.mxu0 %v2242
        %2244 = vmatprep.subr.mxu0 0.0
        %2245 = vmatpush1.msra.mxu0 0.0
        %2246 = vmatprep.subr.mxu0 0.0
        %2247 = vmatpush1.msra.mxu0 0.0
        %2248 = vmatprep.subr.mxu0 0.0
        %2249 = vmatpush1.msra.mxu0 0.0
        %2250 = vmatprep.subr.mxu0 0.0
        %2251 = vmatpush1.msra.mxu0 0.0
        %2252 = vmatprep.subr.mxu0 0.0
        %2253 = vmatpush1.msra.mxu0 0.0
        %2254 = vmatprep.subr.mxu0 0.0
        %2255 = vmatpush1.msra.mxu0 0.0
        %2256 = vmatprep.subr.mxu0 0.0
        %2257 = vmatpush1.msra.mxu0 0.0
        %2258 = vmatprep.subr.mxu0 0.0
        %2259 = vmatpush1.msra.mxu0 0.0
        %2260 = vmatprep.subr.mxu0 0.0
        %2261 = vmatpush1.msra.mxu0 0.0
        %2262 = vmatprep.subr.mxu0 0.0
        %2263 = vmatpush1.msra.mxu0 0.0
        %2264 = vmatprep.subr.mxu0 0.0
        %2265 = vmatpush1.msra.mxu0 0.0
        %2266 = vmatprep.subr.mxu0 0.0
        %2267 = vmatpush1.msra.mxu0 0.0
        %2268 = vmatprep.subr.mxu0 0.0
        %2269 = vmatpush1.msra.mxu0 0.0
        %2270 = vmatprep.subr.mxu0 0.0
        %2271 = vmatpush1.msra.mxu0 0.0
        %2272 = vmatprep.subr.mxu0 0.0
        %2273 = vmatpush1.msra.mxu0 0.0
        %2274 = vmatprep.subr.mxu0 0.0
        %2275 = vmatpush1.msra.mxu0 0.0
        %2276 = vmatprep.subr.mxu0 0.0
        %2277 = vmatpush1.msra.mxu0 0.0
        %2278 = vmatprep.subr.mxu0 0.0
        %2279 = vmatpush1.msra.mxu0 0.0
        %2280 = vmatprep.subr.mxu0 0.0
        %2281 = vmatpush1.msra.mxu0 0.0
        %2282 = vmatprep.subr.mxu0 0.0
        %2283 = vmatpush1.msra.mxu0 0.0
        %2284 = vmatprep.subr.mxu0 0.0
        %2285 = vmatpush1.msra.mxu0 0.0
        %2286 = vmatprep.subr.mxu0 0.0
        %2287 = vmatpush1.msra.mxu0 0.0
        %2288 = vmatprep.subr.mxu0 0.0
        %2289 = vmatpush1.msra.mxu0 0.0
        %2290 = vmatprep.subr.mxu0 0.0
        %2291 = vmatpush1.msra.mxu0 0.0
        %2292 = vmatprep.subr.mxu0 0.0
        %2293 = vmatpush1.msra.mxu0 0.0
        %2294 = vmatprep.subr.mxu0 0.0
        %2295 = vmatpush1.msra.mxu0 0.0
        %2296 = vmatprep.subr.mxu0 0.0
        %2297 = vmatpush1.msra.mxu0 0.0
        %2298 = vmatprep.subr.mxu0 0.0
        %2299 = vmatpush1.msra.mxu0 0.0
        %2300 = vmatprep.mubr.f32.mxu0 0.0
        %v2301 = vand.u32 %v1732, 4294901760
        %2302 = vmatmul.mubr.f32.gmra.mrb[0].mxu0 %v2301
        %v2303 = vpop.f32.mrb[0].mxu0
        %v2304 = vadd.f32 %v2181, %v2303
        %v2305 = vpop.f32.mrb[0].mxu0
        %v2306 = vadd.f32 %v2183, %v2305
        %2307 = vmatprep.mubr.f32.mxu0 0.0
        %v2308 = vand.u32 %v1734, 4294901760
        %2309 = vmatmul.mubr.f32.gmra.mrb[0].mxu0 %v2308
        %v2310 = vpop.f32.mrb[0].mxu0
        %v2311 = vadd.f32 %v2190, %v2310
        %v2312 = vpop.f32.mrb[0].mxu0
        %v2313 = vadd.f32 %v2192, %v2312
        %2314 = vmatprep.mubr.f32.mxu0 0.0
        %v2315 = vand.u32 %v1736, 4294901760
        %2316 = vmatmul.mubr.f32.gmra.mrb[0].mxu0 %v2315
        %v2317 = vpop.f32.mrb[0].mxu0
        %v2318 = vadd.f32 %v2199, %v2317
        %v2319 = vpop.f32.mrb[0].mxu0
        %v2320 = vadd.f32 %v2201, %v2319
        %2321 = vmatprep.mubr.f32.mxu0 0.0
        %v2322 = vand.u32 %v1738, 4294901760
        %2323 = vmatmul.mubr.f32.gmra.mrb[0].mxu0 %v2322
        %v2324 = vpop.f32.mrb[0].mxu0
        %v2325 = vadd.f32 %v2208, %v2324
        %v2326 = vpop.f32.mrb[0].mxu0
        %v2327 = vadd.f32 %v2210, %v2326
        %2328 = vdwg.mxu0
        %v2329 = vand.u32 %v1693, 4294901760
        %2330 = vmatprep.subr.mxu0 %v2329
        %v2331 = vand.u32 %v1692, 4294901760
        %2332 = vmatpush1.msra.mxu0 %v2331
        %v2333 = vand.u32 %v1697, 4294901760
        %2334 = vmatprep.subr.mxu0 %v2333
        %v2335 = vand.u32 %v1696, 4294901760
        %2336 = vmatpush1.msra.mxu0 %v2335
        %v2337 = vand.u32 %v1701, 4294901760
        %2338 = vmatprep.subr.mxu0 %v2337
        %v2339 = vand.u32 %v1700, 4294901760
        %2340 = vmatpush1.msra.mxu0 %v2339
        %v2341 = vand.u32 %v1705, 4294901760
        %2342 = vmatprep.subr.mxu0 %v2341
        %v2343 = vand.u32 %v1704, 4294901760
        %2344 = vmatpush1.msra.mxu0 %v2343
        %2345 = vmatprep.subr.mxu0 0.0
        %2346 = vmatpush1.msra.mxu0 0.0
        %2347 = vmatprep.subr.mxu0 0.0
        %2348 = vmatpush1.msra.mxu0 0.0
        %2349 = vmatprep.subr.mxu0 0.0
        %2350 = vmatpush1.msra.mxu0 0.0
        %2351 = vmatprep.subr.mxu0 0.0
        %2352 = vmatpush1.msra.mxu0 0.0
        %2353 = vmatprep.subr.mxu0 0.0
        %2354 = vmatpush1.msra.mxu0 0.0
        %2355 = vmatprep.subr.mxu0 0.0
        %2356 = vmatpush1.msra.mxu0 0.0
        %2357 = vmatprep.subr.mxu0 0.0
        %2358 = vmatpush1.msra.mxu0 0.0
        %2359 = vmatprep.subr.mxu0 0.0
        %2360 = vmatpush1.msra.mxu0 0.0
        %2361 = vmatprep.subr.mxu0 0.0
        %2362 = vmatpush1.msra.mxu0 0.0
        %2363 = vmatprep.subr.mxu0 0.0
        %2364 = vmatpush1.msra.mxu0 0.0
        %2365 = vmatprep.subr.mxu0 0.0
        %2366 = vmatpush1.msra.mxu0 0.0
        %2367 = vmatprep.subr.mxu0 0.0
        %2368 = vmatpush1.msra.mxu0 0.0
        %2369 = vmatprep.subr.mxu0 0.0
        %2370 = vmatpush1.msra.mxu0 0.0
        %2371 = vmatprep.subr.mxu0 0.0
        %2372 = vmatpush1.msra.mxu0 0.0
        %2373 = vmatprep.subr.mxu0 0.0
        %2374 = vmatpush1.msra.mxu0 0.0
        %2375 = vmatprep.subr.mxu0 0.0
        %2376 = vmatpush1.msra.mxu0 0.0
        %2377 = vmatprep.subr.mxu0 0.0
        %2378 = vmatpush1.msra.mxu0 0.0
        %2379 = vmatprep.subr.mxu0 0.0
        %2380 = vmatpush1.msra.mxu0 0.0
        %2381 = vmatprep.subr.mxu0 0.0
        %2382 = vmatpush1.msra.mxu0 0.0
        %2383 = vmatprep.subr.mxu0 0.0
        %2384 = vmatpush1.msra.mxu0 0.0
        %2385 = vmatprep.subr.mxu0 0.0
        %2386 = vmatpush1.msra.mxu0 0.0
        %2387 = vmatprep.subr.mxu0 0.0
        %2388 = vmatpush1.msra.mxu0 0.0
        %2389 = vmatprep.subr.mxu0 0.0
        %2390 = vmatpush1.msra.mxu0 0.0
        %2391 = vmatprep.subr.mxu0 0.0
        %2392 = vmatpush1.msra.mxu0 0.0
        %2393 = vmatprep.subr.mxu0 0.0
        %2394 = vmatpush1.msra.mxu0 0.0
        %2395 = vmatprep.subr.mxu0 0.0
        %2396 = vmatpush1.msra.mxu0 0.0
        %2397 = vmatprep.subr.mxu0 0.0
        %2398 = vmatpush1.msra.mxu0 0.0
        %2399 = vmatprep.subr.mxu0 0.0
        %2400 = vmatpush1.msra.mxu0 0.0
        %2401 = vmatprep.mubr.f32.mxu0 0.0
        %v2402 = vand.u32 %v1732, 4294901760
        %2403 = vmatmul.mubr.f32.gmra.mrb[0].mxu0 %v2402
        %v2404 = vpop.f32.mrb[0].mxu0
        %v2405 = vadd.f32 %v2304, %v2404
        %v2406 = vpop.f32.mrb[0].mxu0
        %v2407 = vadd.f32 %v2306, %v2406
        %2408 = vmatprep.mubr.f32.mxu0 0.0
        %v2409 = vand.u32 %v1734, 4294901760
        %2410 = vmatmul.mubr.f32.gmra.mrb[0].mxu0 %v2409
        %v2411 = vpop.f32.mrb[0].mxu0
        %v2412 = vadd.f32 %v2311, %v2411
        %v2413 = vpop.f32.mrb[0].mxu0
        %v2414 = vadd.f32 %v2313, %v2413
        %2415 = vmatprep.mubr.f32.mxu0 0.0
        %v2416 = vand.u32 %v1736, 4294901760
        %2417 = vmatmul.mubr.f32.gmra.mrb[0].mxu0 %v2416
        %v2418 = vpop.f32.mrb[0].mxu0
        %v2419 = vadd.f32 %v2318, %v2418
        %v2420 = vpop.f32.mrb[0].mxu0
        %v2421 = vadd.f32 %v2320, %v2420
        %2422 = vmatprep.mubr.f32.mxu0 0.0
        %v2423 = vand.u32 %v1738, 4294901760
        %2424 = vmatmul.mubr.f32.gmra.mrb[0].mxu0 %v2423
        %v2425 = vpop.f32.mrb[0].mxu0
        %v2426 = vadd.f32 %v2325, %v2425
        %v2427 = vpop.f32.mrb[0].mxu0
        %v2428 = vadd.f32 %v2327, %v2427
        %2429 = vdwg.mxu0
        %v2430 = vand.u32 %v1695, 4294901760
        %2431 = vmatprep.subr.mxu0 %v2430
        %v2432 = vand.u32 %v1694, 4294901760
        %2433 = vmatpush1.msra.mxu0 %v2432
        %v2434 = vand.u32 %v1699, 4294901760
        %2435 = vmatprep.subr.mxu0 %v2434
        %v2436 = vand.u32 %v1698, 4294901760
        %2437 = vmatpush1.msra.mxu0 %v2436
        %v2438 = vand.u32 %v1703, 4294901760
        %2439 = vmatprep.subr.mxu0 %v2438
        %v2440 = vand.u32 %v1702, 4294901760
        %2441 = vmatpush1.msra.mxu0 %v2440
        %v2442 = vand.u32 %v1707, 4294901760
        %2443 = vmatprep.subr.mxu0 %v2442
        %v2444 = vand.u32 %v1706, 4294901760
        %2445 = vmatpush1.msra.mxu0 %v2444
        %2446 = vmatprep.subr.mxu0 0.0
        %2447 = vmatpush1.msra.mxu0 0.0
        %2448 = vmatprep.subr.mxu0 0.0
        %2449 = vmatpush1.msra.mxu0 0.0
        %2450 = vmatprep.subr.mxu0 0.0
        %2451 = vmatpush1.msra.mxu0 0.0
        %2452 = vmatprep.subr.mxu0 0.0
        %2453 = vmatpush1.msra.mxu0 0.0
        %2454 = vmatprep.subr.mxu0 0.0
        %2455 = vmatpush1.msra.mxu0 0.0
        %2456 = vmatprep.subr.mxu0 0.0
        %2457 = vmatpush1.msra.mxu0 0.0
        %2458 = vmatprep.subr.mxu0 0.0
        %2459 = vmatpush1.msra.mxu0 0.0
        %2460 = vmatprep.subr.mxu0 0.0
        %2461 = vmatpush1.msra.mxu0 0.0
        %2462 = vmatprep.subr.mxu0 0.0
        %2463 = vmatpush1.msra.mxu0 0.0
        %2464 = vmatprep.subr.mxu0 0.0
        %2465 = vmatpush1.msra.mxu0 0.0
        %2466 = vmatprep.subr.mxu0 0.0
        %2467 = vmatpush1.msra.mxu0 0.0
        %2468 = vmatprep.subr.mxu0 0.0
        %2469 = vmatpush1.msra.mxu0 0.0
        %2470 = vmatprep.subr.mxu0 0.0
        %2471 = vmatpush1.msra.mxu0 0.0
        %2472 = vmatprep.subr.mxu0 0.0
        %2473 = vmatpush1.msra.mxu0 0.0
        %2474 = vmatprep.subr.mxu0 0.0
        %2475 = vmatpush1.msra.mxu0 0.0
        %2476 = vmatprep.subr.mxu0 0.0
        %2477 = vmatpush1.msra.mxu0 0.0
        %2478 = vmatprep.subr.mxu0 0.0
        %2479 = vmatpush1.msra.mxu0 0.0
        %2480 = vmatprep.subr.mxu0 0.0
        %2481 = vmatpush1.msra.mxu0 0.0
        %2482 = vmatprep.subr.mxu0 0.0
        %2483 = vmatpush1.msra.mxu0 0.0
        %2484 = vmatprep.subr.mxu0 0.0
        %2485 = vmatpush1.msra.mxu0 0.0
        %2486 = vmatprep.subr.mxu0 0.0
        %2487 = vmatpush1.msra.mxu0 0.0
        %2488 = vmatprep.subr.mxu0 0.0
        %2489 = vmatpush1.msra.mxu0 0.0
        %2490 = vmatprep.subr.mxu0 0.0
        %2491 = vmatpush1.msra.mxu0 0.0
        %2492 = vmatprep.subr.mxu0 0.0
        %2493 = vmatpush1.msra.mxu0 0.0
        %2494 = vmatprep.subr.mxu0 0.0
        %2495 = vmatpush1.msra.mxu0 0.0
        %2496 = vmatprep.subr.mxu0 0.0
        %2497 = vmatpush1.msra.mxu0 0.0
        %2498 = vmatprep.subr.mxu0 0.0
        %2499 = vmatpush1.msra.mxu0 0.0
        %2500 = vmatprep.subr.mxu0 0.0
        %2501 = vmatpush1.msra.mxu0 0.0
        %2502 = vmatprep.mubr.f32.mxu0 0.0
        %v2503 = vand.u32 %v1732, 4294901760
        %v2504 = vsub.f32 %v1732, %v2503
        %v2505 = vand.u32 %v2504, 4294901760
        %v2506 = vsub.f32 %v2504, %v2505
        %v2507 = vand.u32 %v2506, 4294901760
        %2508 = vmatmul.mubr.f32.gmra.mrb[0].mxu0 %v2507
        %v2509 = vpop.f32.mrb[0].mxu0
        %v2510 = vadd.f32 %v1710, %v2509
        %v2511 = vpop.f32.mrb[0].mxu0
        %v2512 = vadd.f32 %v1710, %v2511
        %2513 = vmatprep.mubr.f32.mxu0 0.0
        %v2514 = vand.u32 %v1734, 4294901760
        %v2515 = vsub.f32 %v1734, %v2514
        %v2516 = vand.u32 %v2515, 4294901760
        %v2517 = vsub.f32 %v2515, %v2516
        %v2518 = vand.u32 %v2517, 4294901760
        %2519 = vmatmul.mubr.f32.gmra.mrb[0].mxu0 %v2518
        %v2520 = vpop.f32.mrb[0].mxu0
        %v2521 = vadd.f32 %v1714, %v2520
        %v2522 = vpop.f32.mrb[0].mxu0
        %v2523 = vadd.f32 %v1714, %v2522
        %2524 = vmatprep.mubr.f32.mxu0 0.0
        %v2525 = vand.u32 %v1736, 4294901760
        %v2526 = vsub.f32 %v1736, %v2525
        %v2527 = vand.u32 %v2526, 4294901760
        %v2528 = vsub.f32 %v2526, %v2527
        %v2529 = vand.u32 %v2528, 4294901760
        %2530 = vmatmul.mubr.f32.gmra.mrb[0].mxu0 %v2529
        %v2531 = vpop.f32.mrb[0].mxu0
        %v2532 = vadd.f32 %v1718, %v2531
        %v2533 = vpop.f32.mrb[0].mxu0
        %v2534 = vadd.f32 %v1718, %v2533
        %2535 = vmatprep.mubr.f32.mxu0 0.0
        %v2536 = vand.u32 %v1738, 4294901760
        %v2537 = vsub.f32 %v1738, %v2536
        %v2538 = vand.u32 %v2537, 4294901760
        %v2539 = vsub.f32 %v2537, %v2538
        %v2540 = vand.u32 %v2539, 4294901760
        %2541 = vmatmul.mubr.f32.gmra.mrb[0].mxu0 %v2540
        %v2542 = vpop.f32.mrb[0].mxu0
        %v2543 = vadd.f32 %v1722, %v2542
        %v2544 = vpop.f32.mrb[0].mxu0
        %v2545 = vadd.f32 %v1722, %v2544
        %2546 = vdwg.mxu0
        %v2547 = vand.u32 %v1695, 4294901760
        %v2548 = vsub.f32 %v1695, %v2547
        %v2549 = vand.u32 %v2548, 4294901760
        %v2550 = vsub.f32 %v2548, %v2549
        %v2551 = vand.u32 %v2550, 4294901760
        %2552 = vmatprep.subr.mxu0 %v2551
        %v2553 = vand.u32 %v1694, 4294901760
        %v2554 = vsub.f32 %v1694, %v2553
        %v2555 = vand.u32 %v2554, 4294901760
        %v2556 = vsub.f32 %v2554, %v2555
        %v2557 = vand.u32 %v2556, 4294901760
        %2558 = vmatpush1.msra.mxu0 %v2557
        %v2559 = vand.u32 %v1699, 4294901760
        %v2560 = vsub.f32 %v1699, %v2559
        %v2561 = vand.u32 %v2560, 4294901760
        %v2562 = vsub.f32 %v2560, %v2561
        %v2563 = vand.u32 %v2562, 4294901760
        %2564 = vmatprep.subr.mxu0 %v2563
        %v2565 = vand.u32 %v1698, 4294901760
        %v2566 = vsub.f32 %v1698, %v2565
        %v2567 = vand.u32 %v2566, 4294901760
        %v2568 = vsub.f32 %v2566, %v2567
        %v2569 = vand.u32 %v2568, 4294901760
        %2570 = vmatpush1.msra.mxu0 %v2569
        %v2571 = vand.u32 %v1703, 4294901760
        %v2572 = vsub.f32 %v1703, %v2571
        %v2573 = vand.u32 %v2572, 4294901760
        %v2574 = vsub.f32 %v2572, %v2573
        %v2575 = vand.u32 %v2574, 4294901760
        %2576 = vmatprep.subr.mxu0 %v2575
        %v2577 = vand.u32 %v1702, 4294901760
        %v2578 = vsub.f32 %v1702, %v2577
        %v2579 = vand.u32 %v2578, 4294901760
        %v2580 = vsub.f32 %v2578, %v2579
        %v2581 = vand.u32 %v2580, 4294901760
        %2582 = vmatpush1.msra.mxu0 %v2581
        %v2583 = vand.u32 %v1707, 4294901760
        %v2584 = vsub.f32 %v1707, %v2583
        %v2585 = vand.u32 %v2584, 4294901760
        %v2586 = vsub.f32 %v2584, %v2585
        %v2587 = vand.u32 %v2586, 4294901760
        %2588 = vmatprep.subr.mxu0 %v2587
        %v2589 = vand.u32 %v1706, 4294901760
        %v2590 = vsub.f32 %v1706, %v2589
        %v2591 = vand.u32 %v2590, 4294901760
        %v2592 = vsub.f32 %v2590, %v2591
        %v2593 = vand.u32 %v2592, 4294901760
        %2594 = vmatpush1.msra.mxu0 %v2593
        %2595 = vmatprep.subr.mxu0 0.0
        %2596 = vmatpush1.msra.mxu0 0.0
        %2597 = vmatprep.subr.mxu0 0.0
        %2598 = vmatpush1.msra.mxu0 0.0
        %2599 = vmatprep.subr.mxu0 0.0
        %2600 = vmatpush1.msra.mxu0 0.0
        %2601 = vmatprep.subr.mxu0 0.0
        %2602 = vmatpush1.msra.mxu0 0.0
        %2603 = vmatprep.subr.mxu0 0.0
        %2604 = vmatpush1.msra.mxu0 0.0
        %2605 = vmatprep.subr.mxu0 0.0
        %2606 = vmatpush1.msra.mxu0 0.0
        %2607 = vmatprep.subr.mxu0 0.0
        %2608 = vmatpush1.msra.mxu0 0.0
        %2609 = vmatprep.subr.mxu0 0.0
        %2610 = vmatpush1.msra.mxu0 0.0
        %2611 = vmatprep.subr.mxu0 0.0
        %2612 = vmatpush1.msra.mxu0 0.0
        %2613 = vmatprep.subr.mxu0 0.0
        %2614 = vmatpush1.msra.mxu0 0.0
        %2615 = vmatprep.subr.mxu0 0.0
        %2616 = vmatpush1.msra.mxu0 0.0
        %2617 = vmatprep.subr.mxu0 0.0
        %2618 = vmatpush1.msra.mxu0 0.0
        %2619 = vmatprep.subr.mxu0 0.0
        %2620 = vmatpush1.msra.mxu0 0.0
        %2621 = vmatprep.subr.mxu0 0.0
        %2622 = vmatpush1.msra.mxu0 0.0
        %2623 = vmatprep.subr.mxu0 0.0
        %2624 = vmatpush1.msra.mxu0 0.0
        %2625 = vmatprep.subr.mxu0 0.0
        %2626 = vmatpush1.msra.mxu0 0.0
        %2627 = vmatprep.subr.mxu0 0.0
        %2628 = vmatpush1.msra.mxu0 0.0
        %2629 = vmatprep.subr.mxu0 0.0
        %2630 = vmatpush1.msra.mxu0 0.0
        %2631 = vmatprep.subr.mxu0 0.0
        %2632 = vmatpush1.msra.mxu0 0.0
        %2633 = vmatprep.subr.mxu0 0.0
        %2634 = vmatpush1.msra.mxu0 0.0
        %2635 = vmatprep.subr.mxu0 0.0
        %2636 = vmatpush1.msra.mxu0 0.0
        %2637 = vmatprep.subr.mxu0 0.0
        %2638 = vmatpush1.msra.mxu0 0.0
        %2639 = vmatprep.subr.mxu0 0.0
        %2640 = vmatpush1.msra.mxu0 0.0
        %2641 = vmatprep.subr.mxu0 0.0
        %2642 = vmatpush1.msra.mxu0 0.0
        %2643 = vmatprep.subr.mxu0 0.0
        %2644 = vmatpush1.msra.mxu0 0.0
        %2645 = vmatprep.subr.mxu0 0.0
        %2646 = vmatpush1.msra.mxu0 0.0
        %2647 = vmatprep.subr.mxu0 0.0
        %2648 = vmatpush1.msra.mxu0 0.0
        %2649 = vmatprep.subr.mxu0 0.0
        %2650 = vmatpush1.msra.mxu0 0.0
        %2651 = vmatprep.mubr.f32.mxu0 0.0
        %v2652 = vand.u32 %v1732, 4294901760
        %2653 = vmatmul.mubr.f32.gmra.mrb[0].mxu0 %v2652
        %v2654 = vpop.f32.mrb[0].mxu0
        %v2655 = vadd.f32 %v2510, %v2654
        %v2656 = vpop.f32.mrb[0].mxu0
        %v2657 = vadd.f32 %v2512, %v2656
        %2658 = vmatprep.mubr.f32.mxu0 0.0
        %v2659 = vand.u32 %v1734, 4294901760
        %2660 = vmatmul.mubr.f32.gmra.mrb[0].mxu0 %v2659
        %v2661 = vpop.f32.mrb[0].mxu0
        %v2662 = vadd.f32 %v2521, %v2661
        %v2663 = vpop.f32.mrb[0].mxu0
        %v2664 = vadd.f32 %v2523, %v2663
        %2665 = vmatprep.mubr.f32.mxu0 0.0
        %v2666 = vand.u32 %v1736, 4294901760
        %2667 = vmatmul.mubr.f32.gmra.mrb[0].mxu0 %v2666
        %v2668 = vpop.f32.mrb[0].mxu0
        %v2669 = vadd.f32 %v2532, %v2668
        %v2670 = vpop.f32.mrb[0].mxu0
        %v2671 = vadd.f32 %v2534, %v2670
        %2672 = vmatprep.mubr.f32.mxu0 0.0
        %v2673 = vand.u32 %v1738, 4294901760
        %2674 = vmatmul.mubr.f32.gmra.mrb[0].mxu0 %v2673
        %v2675 = vpop.f32.mrb[0].mxu0
        %v2676 = vadd.f32 %v2543, %v2675
        %v2677 = vpop.f32.mrb[0].mxu0
        %v2678 = vadd.f32 %v2545, %v2677
        %2679 = vdwg.mxu0
        %v2680 = vand.u32 %v1695, 4294901760
        %v2681 = vsub.f32 %v1695, %v2680
        %2682 = vmatprep.subr.mxu0 %v2681
        %v2683 = vand.u32 %v1694, 4294901760
        %v2684 = vsub.f32 %v1694, %v2683
        %2685 = vmatpush1.msra.mxu0 %v2684
        %v2686 = vand.u32 %v1699, 4294901760
        %v2687 = vsub.f32 %v1699, %v2686
        %2688 = vmatprep.subr.mxu0 %v2687
        %v2689 = vand.u32 %v1698, 4294901760
        %v2690 = vsub.f32 %v1698, %v2689
        %2691 = vmatpush1.msra.mxu0 %v2690
        %v2692 = vand.u32 %v1703, 4294901760
        %v2693 = vsub.f32 %v1703, %v2692
        %2694 = vmatprep.subr.mxu0 %v2693
        %v2695 = vand.u32 %v1702, 4294901760
        %v2696 = vsub.f32 %v1702, %v2695
        %2697 = vmatpush1.msra.mxu0 %v2696
        %v2698 = vand.u32 %v1707, 4294901760
        %v2699 = vsub.f32 %v1707, %v2698
        %2700 = vmatprep.subr.mxu0 %v2699
        %v2701 = vand.u32 %v1706, 4294901760
        %v2702 = vsub.f32 %v1706, %v2701
        %2703 = vmatpush1.msra.mxu0 %v2702
        %2704 = vmatprep.subr.mxu0 0.0
        %2705 = vmatpush1.msra.mxu0 0.0
        %2706 = vmatprep.subr.mxu0 0.0
        %2707 = vmatpush1.msra.mxu0 0.0
        %2708 = vmatprep.subr.mxu0 0.0
        %2709 = vmatpush1.msra.mxu0 0.0
        %2710 = vmatprep.subr.mxu0 0.0
        %2711 = vmatpush1.msra.mxu0 0.0
        %2712 = vmatprep.subr.mxu0 0.0
        %2713 = vmatpush1.msra.mxu0 0.0
        %2714 = vmatprep.subr.mxu0 0.0
        %2715 = vmatpush1.msra.mxu0 0.0
        %2716 = vmatprep.subr.mxu0 0.0
        %2717 = vmatpush1.msra.mxu0 0.0
        %2718 = vmatprep.subr.mxu0 0.0
        %2719 = vmatpush1.msra.mxu0 0.0
        %2720 = vmatprep.subr.mxu0 0.0
        %2721 = vmatpush1.msra.mxu0 0.0
        %2722 = vmatprep.subr.mxu0 0.0
        %2723 = vmatpush1.msra.mxu0 0.0
        %2724 = vmatprep.subr.mxu0 0.0
        %2725 = vmatpush1.msra.mxu0 0.0
        %2726 = vmatprep.subr.mxu0 0.0
        %2727 = vmatpush1.msra.mxu0 0.0
        %2728 = vmatprep.subr.mxu0 0.0
        %2729 = vmatpush1.msra.mxu0 0.0
        %2730 = vmatprep.subr.mxu0 0.0
        %2731 = vmatpush1.msra.mxu0 0.0
        %2732 = vmatprep.subr.mxu0 0.0
        %2733 = vmatpush1.msra.mxu0 0.0
        %2734 = vmatprep.subr.mxu0 0.0
        %2735 = vmatpush1.msra.mxu0 0.0
        %2736 = vmatprep.subr.mxu0 0.0
        %2737 = vmatpush1.msra.mxu0 0.0
        %2738 = vmatprep.subr.mxu0 0.0
        %2739 = vmatpush1.msra.mxu0 0.0
        %2740 = vmatprep.subr.mxu0 0.0
        %2741 = vmatpush1.msra.mxu0 0.0
        %2742 = vmatprep.subr.mxu0 0.0
        %2743 = vmatpush1.msra.mxu0 0.0
        %2744 = vmatprep.subr.mxu0 0.0
        %2745 = vmatpush1.msra.mxu0 0.0
        %2746 = vmatprep.subr.mxu0 0.0
        %2747 = vmatpush1.msra.mxu0 0.0
        %2748 = vmatprep.subr.mxu0 0.0
        %2749 = vmatpush1.msra.mxu0 0.0
        %2750 = vmatprep.subr.mxu0 0.0
        %2751 = vmatpush1.msra.mxu0 0.0
        %2752 = vmatprep.subr.mxu0 0.0
        %2753 = vmatpush1.msra.mxu0 0.0
        %2754 = vmatprep.subr.mxu0 0.0
        %2755 = vmatpush1.msra.mxu0 0.0
        %2756 = vmatprep.subr.mxu0 0.0
        %2757 = vmatpush1.msra.mxu0 0.0
        %2758 = vmatprep.subr.mxu0 0.0
        %2759 = vmatpush1.msra.mxu0 0.0
        %2760 = vmatprep.mubr.f32.mxu0 0.0
        %v2761 = vand.u32 %v1732, 4294901760
        %v2762 = vsub.f32 %v1732, %v2761
        %2763 = vmatmul.mubr.f32.gmra.mrb[0].mxu0 %v2762
        %v2764 = vpop.f32.mrb[0].mxu0
        %v2765 = vadd.f32 %v2655, %v2764
        %v2766 = vpop.f32.mrb[0].mxu0
        %v2767 = vadd.f32 %v2657, %v2766
        %2768 = vmatprep.mubr.f32.mxu0 0.0
        %v2769 = vand.u32 %v1734, 4294901760
        %v2770 = vsub.f32 %v1734, %v2769
        %2771 = vmatmul.mubr.f32.gmra.mrb[0].mxu0 %v2770
        %v2772 = vpop.f32.mrb[0].mxu0
        %v2773 = vadd.f32 %v2662, %v2772
        %v2774 = vpop.f32.mrb[0].mxu0
        %v2775 = vadd.f32 %v2664, %v2774
        %2776 = vmatprep.mubr.f32.mxu0 0.0
        %v2777 = vand.u32 %v1736, 4294901760
        %v2778 = vsub.f32 %v1736, %v2777
        %2779 = vmatmul.mubr.f32.gmra.mrb[0].mxu0 %v2778
        %v2780 = vpop.f32.mrb[0].mxu0
        %v2781 = vadd.f32 %v2669, %v2780
        %v2782 = vpop.f32.mrb[0].mxu0
        %v2783 = vadd.f32 %v2671, %v2782
        %2784 = vmatprep.mubr.f32.mxu0 0.0
        %v2785 = vand.u32 %v1738, 4294901760
        %v2786 = vsub.f32 %v1738, %v2785
        %2787 = vmatmul.mubr.f32.gmra.mrb[0].mxu0 %v2786
        %v2788 = vpop.f32.mrb[0].mxu0
        %v2789 = vadd.f32 %v2676, %v2788
        %v2790 = vpop.f32.mrb[0].mxu0
        %v2791 = vadd.f32 %v2678, %v2790
        %2792 = vdwg.mxu0
        %v2793 = vand.u32 %v1695, 4294901760
        %2794 = vmatprep.subr.mxu0 %v2793
        %v2795 = vand.u32 %v1694, 4294901760
        %2796 = vmatpush1.msra.mxu0 %v2795
        %v2797 = vand.u32 %v1699, 4294901760
        %2798 = vmatprep.subr.mxu0 %v2797
        %v2799 = vand.u32 %v1698, 4294901760
        %2800 = vmatpush1.msra.mxu0 %v2799
        %v2801 = vand.u32 %v1703, 4294901760
        %2802 = vmatprep.subr.mxu0 %v2801
        %v2803 = vand.u32 %v1702, 4294901760
        %2804 = vmatpush1.msra.mxu0 %v2803
        %v2805 = vand.u32 %v1707, 4294901760
        %2806 = vmatprep.subr.mxu0 %v2805
        %v2807 = vand.u32 %v1706, 4294901760
        %2808 = vmatpush1.msra.mxu0 %v2807
        %2809 = vmatprep.subr.mxu0 0.0
        %2810 = vmatpush1.msra.mxu0 0.0
        %2811 = vmatprep.subr.mxu0 0.0
        %2812 = vmatpush1.msra.mxu0 0.0
        %2813 = vmatprep.subr.mxu0 0.0
        %2814 = vmatpush1.msra.mxu0 0.0
        %2815 = vmatprep.subr.mxu0 0.0
        %2816 = vmatpush1.msra.mxu0 0.0
        %2817 = vmatprep.subr.mxu0 0.0
        %2818 = vmatpush1.msra.mxu0 0.0
        %2819 = vmatprep.subr.mxu0 0.0
        %2820 = vmatpush1.msra.mxu0 0.0
        %2821 = vmatprep.subr.mxu0 0.0
        %2822 = vmatpush1.msra.mxu0 0.0
        %2823 = vmatprep.subr.mxu0 0.0
        %2824 = vmatpush1.msra.mxu0 0.0
        %2825 = vmatprep.subr.mxu0 0.0
        %2826 = vmatpush1.msra.mxu0 0.0
        %2827 = vmatprep.subr.mxu0 0.0
        %2828 = vmatpush1.msra.mxu0 0.0
        %2829 = vmatprep.subr.mxu0 0.0
        %2830 = vmatpush1.msra.mxu0 0.0
        %2831 = vmatprep.subr.mxu0 0.0
        %2832 = vmatpush1.msra.mxu0 0.0
        %2833 = vmatprep.subr.mxu0 0.0
        %2834 = vmatpush1.msra.mxu0 0.0
        %2835 = vmatprep.subr.mxu0 0.0
        %2836 = vmatpush1.msra.mxu0 0.0
        %2837 = vmatprep.subr.mxu0 0.0
        %2838 = vmatpush1.msra.mxu0 0.0
        %2839 = vmatprep.subr.mxu0 0.0
        %2840 = vmatpush1.msra.mxu0 0.0
        %2841 = vmatprep.subr.mxu0 0.0
        %2842 = vmatpush1.msra.mxu0 0.0
        %2843 = vmatprep.subr.mxu0 0.0
        %2844 = vmatpush1.msra.mxu0 0.0
        %2845 = vmatprep.subr.mxu0 0.0
        %2846 = vmatpush1.msra.mxu0 0.0
        %2847 = vmatprep.subr.mxu0 0.0
        %2848 = vmatpush1.msra.mxu0 0.0
        %2849 = vmatprep.subr.mxu0 0.0
        %2850 = vmatpush1.msra.mxu0 0.0
        %2851 = vmatprep.subr.mxu0 0.0
        %2852 = vmatpush1.msra.mxu0 0.0
        %2853 = vmatprep.subr.mxu0 0.0
        %2854 = vmatpush1.msra.mxu0 0.0
        %2855 = vmatprep.subr.mxu0 0.0
        %2856 = vmatpush1.msra.mxu0 0.0
        %2857 = vmatprep.subr.mxu0 0.0
        %2858 = vmatpush1.msra.mxu0 0.0
        %2859 = vmatprep.subr.mxu0 0.0
        %2860 = vmatpush1.msra.mxu0 0.0
        %2861 = vmatprep.subr.mxu0 0.0
        %2862 = vmatpush1.msra.mxu0 0.0
        %2863 = vmatprep.subr.mxu0 0.0
        %2864 = vmatpush1.msra.mxu0 0.0
        %2865 = vmatprep.mubr.f32.mxu0 0.0
        %v2866 = vand.u32 %v1732, 4294901760
        %v2867 = vsub.f32 %v1732, %v2866
        %v2868 = vand.u32 %v2867, 4294901760
        %2869 = vmatmul.mubr.f32.gmra.mrb[0].mxu0 %v2868
        %v2870 = vpop.f32.mrb[0].mxu0
        %v2871 = vadd.f32 %v2765, %v2870
        %v2872 = vpop.f32.mrb[0].mxu0
        %v2873 = vadd.f32 %v2767, %v2872
        %2874 = vmatprep.mubr.f32.mxu0 0.0
        %v2875 = vand.u32 %v1734, 4294901760
        %v2876 = vsub.f32 %v1734, %v2875
        %v2877 = vand.u32 %v2876, 4294901760
        %2878 = vmatmul.mubr.f32.gmra.mrb[0].mxu0 %v2877
        %v2879 = vpop.f32.mrb[0].mxu0
        %v2880 = vadd.f32 %v2773, %v2879
        %v2881 = vpop.f32.mrb[0].mxu0
        %v2882 = vadd.f32 %v2775, %v2881
        %2883 = vmatprep.mubr.f32.mxu0 0.0
        %v2884 = vand.u32 %v1736, 4294901760
        %v2885 = vsub.f32 %v1736, %v2884
        %v2886 = vand.u32 %v2885, 4294901760
        %2887 = vmatmul.mubr.f32.gmra.mrb[0].mxu0 %v2886
        %v2888 = vpop.f32.mrb[0].mxu0
        %v2889 = vadd.f32 %v2781, %v2888
        %v2890 = vpop.f32.mrb[0].mxu0
        %v2891 = vadd.f32 %v2783, %v2890
        %2892 = vmatprep.mubr.f32.mxu0 0.0
        %v2893 = vand.u32 %v1738, 4294901760
        %v2894 = vsub.f32 %v1738, %v2893
        %v2895 = vand.u32 %v2894, 4294901760
        %2896 = vmatmul.mubr.f32.gmra.mrb[0].mxu0 %v2895
        %v2897 = vpop.f32.mrb[0].mxu0
        %v2898 = vadd.f32 %v2789, %v2897
        %v2899 = vpop.f32.mrb[0].mxu0
        %v2900 = vadd.f32 %v2791, %v2899
        %2901 = vdwg.mxu0
        %v2902 = vand.u32 %v1695, 4294901760
        %v2903 = vsub.f32 %v1695, %v2902
        %v2904 = vand.u32 %v2903, 4294901760
        %2905 = vmatprep.subr.mxu0 %v2904
        %v2906 = vand.u32 %v1694, 4294901760
        %v2907 = vsub.f32 %v1694, %v2906
        %v2908 = vand.u32 %v2907, 4294901760
        %2909 = vmatpush1.msra.mxu0 %v2908
        %v2910 = vand.u32 %v1699, 4294901760
        %v2911 = vsub.f32 %v1699, %v2910
        %v2912 = vand.u32 %v2911, 4294901760
        %2913 = vmatprep.subr.mxu0 %v2912
        %v2914 = vand.u32 %v1698, 4294901760
        %v2915 = vsub.f32 %v1698, %v2914
        %v2916 = vand.u32 %v2915, 4294901760
        %2917 = vmatpush1.msra.mxu0 %v2916
        %v2918 = vand.u32 %v1703, 4294901760
        %v2919 = vsub.f32 %v1703, %v2918
        %v2920 = vand.u32 %v2919, 4294901760
        %2921 = vmatprep.subr.mxu0 %v2920
        %v2922 = vand.u32 %v1702, 4294901760
        %v2923 = vsub.f32 %v1702, %v2922
        %v2924 = vand.u32 %v2923, 4294901760
        %2925 = vmatpush1.msra.mxu0 %v2924
        %v2926 = vand.u32 %v1707, 4294901760
        %v2927 = vsub.f32 %v1707, %v2926
        %v2928 = vand.u32 %v2927, 4294901760
        %2929 = vmatprep.subr.mxu0 %v2928
        %v2930 = vand.u32 %v1706, 4294901760
        %v2931 = vsub.f32 %v1706, %v2930
        %v2932 = vand.u32 %v2931, 4294901760
        %2933 = vmatpush1.msra.mxu0 %v2932
        %2934 = vmatprep.subr.mxu0 0.0
        %2935 = vmatpush1.msra.mxu0 0.0
        %2936 = vmatprep.subr.mxu0 0.0
        %2937 = vmatpush1.msra.mxu0 0.0
        %2938 = vmatprep.subr.mxu0 0.0
        %2939 = vmatpush1.msra.mxu0 0.0
        %2940 = vmatprep.subr.mxu0 0.0
        %2941 = vmatpush1.msra.mxu0 0.0
        %2942 = vmatprep.subr.mxu0 0.0
        %2943 = vmatpush1.msra.mxu0 0.0
        %2944 = vmatprep.subr.mxu0 0.0
        %2945 = vmatpush1.msra.mxu0 0.0
        %2946 = vmatprep.subr.mxu0 0.0
        %2947 = vmatpush1.msra.mxu0 0.0
        %2948 = vmatprep.subr.mxu0 0.0
        %2949 = vmatpush1.msra.mxu0 0.0
        %2950 = vmatprep.subr.mxu0 0.0
        %2951 = vmatpush1.msra.mxu0 0.0
        %2952 = vmatprep.subr.mxu0 0.0
        %2953 = vmatpush1.msra.mxu0 0.0
        %2954 = vmatprep.subr.mxu0 0.0
        %2955 = vmatpush1.msra.mxu0 0.0
        %2956 = vmatprep.subr.mxu0 0.0
        %2957 = vmatpush1.msra.mxu0 0.0
        %2958 = vmatprep.subr.mxu0 0.0
        %2959 = vmatpush1.msra.mxu0 0.0
        %2960 = vmatprep.subr.mxu0 0.0
        %2961 = vmatpush1.msra.mxu0 0.0
        %2962 = vmatprep.subr.mxu0 0.0
        %2963 = vmatpush1.msra.mxu0 0.0
        %2964 = vmatprep.subr.mxu0 0.0
        %2965 = vmatpush1.msra.mxu0 0.0
        %2966 = vmatprep.subr.mxu0 0.0
        %2967 = vmatpush1.msra.mxu0 0.0
        %2968 = vmatprep.subr.mxu0 0.0
        %2969 = vmatpush1.msra.mxu0 0.0
        %2970 = vmatprep.subr.mxu0 0.0
        %2971 = vmatpush1.msra.mxu0 0.0
        %2972 = vmatprep.subr.mxu0 0.0
        %2973 = vmatpush1.msra.mxu0 0.0
        %2974 = vmatprep.subr.mxu0 0.0
        %2975 = vmatpush1.msra.mxu0 0.0
        %2976 = vmatprep.subr.mxu0 0.0
        %2977 = vmatpush1.msra.mxu0 0.0
        %2978 = vmatprep.subr.mxu0 0.0
        %2979 = vmatpush1.msra.mxu0 0.0
        %2980 = vmatprep.subr.mxu0 0.0
        %2981 = vmatpush1.msra.mxu0 0.0
        %2982 = vmatprep.subr.mxu0 0.0
        %2983 = vmatpush1.msra.mxu0 0.0
        %2984 = vmatprep.subr.mxu0 0.0
        %2985 = vmatpush1.msra.mxu0 0.0
        %2986 = vmatprep.subr.mxu0 0.0
        %2987 = vmatpush1.msra.mxu0 0.0
        %2988 = vmatprep.subr.mxu0 0.0
        %2989 = vmatpush1.msra.mxu0 0.0
        %2990 = vmatprep.mubr.f32.mxu0 0.0
        %v2991 = vand.u32 %v1732, 4294901760
        %2992 = vmatmul.mubr.f32.gmra.mrb[0].mxu0 %v2991
        %v2993 = vpop.f32.mrb[0].mxu0
        %v2994 = vadd.f32 %v2871, %v2993
        %v2995 = vpop.f32.mrb[0].mxu0
        %v2996 = vadd.f32 %v2873, %v2995
        %2997 = vmatprep.mubr.f32.mxu0 0.0
        %v2998 = vand.u32 %v1734, 4294901760
        %2999 = vmatmul.mubr.f32.gmra.mrb[0].mxu0 %v2998
        %v3000 = vpop.f32.mrb[0].mxu0
        %v3001 = vadd.f32 %v2880, %v3000
        %v3002 = vpop.f32.mrb[0].mxu0
        %v3003 = vadd.f32 %v2882, %v3002
        %3004 = vmatprep.mubr.f32.mxu0 0.0
        %v3005 = vand.u32 %v1736, 4294901760
        %3006 = vmatmul.mubr.f32.gmra.mrb[0].mxu0 %v3005
        %v3007 = vpop.f32.mrb[0].mxu0
        %v3008 = vadd.f32 %v2889, %v3007
        %v3009 = vpop.f32.mrb[0].mxu0
        %v3010 = vadd.f32 %v2891, %v3009
        %3011 = vmatprep.mubr.f32.mxu0 0.0
        %v3012 = vand.u32 %v1738, 4294901760
        %3013 = vmatmul.mubr.f32.gmra.mrb[0].mxu0 %v3012
        %v3014 = vpop.f32.mrb[0].mxu0
        %v3015 = vadd.f32 %v2898, %v3014
        %v3016 = vpop.f32.mrb[0].mxu0
        %v3017 = vadd.f32 %v2900, %v3016
        %3018 = vdwg.mxu0
        %v3019 = vand.u32 %v1695, 4294901760
        %3020 = vmatprep.subr.mxu0 %v3019
        %v3021 = vand.u32 %v1694, 4294901760
        %3022 = vmatpush1.msra.mxu0 %v3021
        %v3023 = vand.u32 %v1699, 4294901760
        %3024 = vmatprep.subr.mxu0 %v3023
        %v3025 = vand.u32 %v1698, 4294901760
        %3026 = vmatpush1.msra.mxu0 %v3025
        %v3027 = vand.u32 %v1703, 4294901760
        %3028 = vmatprep.subr.mxu0 %v3027
        %v3029 = vand.u32 %v1702, 4294901760
        %3030 = vmatpush1.msra.mxu0 %v3029
        %v3031 = vand.u32 %v1707, 4294901760
        %3032 = vmatprep.subr.mxu0 %v3031
        %v3033 = vand.u32 %v1706, 4294901760
        %3034 = vmatpush1.msra.mxu0 %v3033
        %3035 = vmatprep.subr.mxu0 0.0
        %3036 = vmatpush1.msra.mxu0 0.0
        %3037 = vmatprep.subr.mxu0 0.0
        %3038 = vmatpush1.msra.mxu0 0.0
        %3039 = vmatprep.subr.mxu0 0.0
        %3040 = vmatpush1.msra.mxu0 0.0
        %3041 = vmatprep.subr.mxu0 0.0
        %3042 = vmatpush1.msra.mxu0 0.0
        %3043 = vmatprep.subr.mxu0 0.0
        %3044 = vmatpush1.msra.mxu0 0.0
        %3045 = vmatprep.subr.mxu0 0.0
        %3046 = vmatpush1.msra.mxu0 0.0
        %3047 = vmatprep.subr.mxu0 0.0
        %3048 = vmatpush1.msra.mxu0 0.0
        %3049 = vmatprep.subr.mxu0 0.0
        %3050 = vmatpush1.msra.mxu0 0.0
        %3051 = vmatprep.subr.mxu0 0.0
        %3052 = vmatpush1.msra.mxu0 0.0
        %3053 = vmatprep.subr.mxu0 0.0
        %3054 = vmatpush1.msra.mxu0 0.0
        %3055 = vmatprep.subr.mxu0 0.0
        %3056 = vmatpush1.msra.mxu0 0.0
        %3057 = vmatprep.subr.mxu0 0.0
        %3058 = vmatpush1.msra.mxu0 0.0
        %3059 = vmatprep.subr.mxu0 0.0
        %3060 = vmatpush1.msra.mxu0 0.0
        %3061 = vmatprep.subr.mxu0 0.0
        %3062 = vmatpush1.msra.mxu0 0.0
        %3063 = vmatprep.subr.mxu0 0.0
        %3064 = vmatpush1.msra.mxu0 0.0
        %3065 = vmatprep.subr.mxu0 0.0
        %3066 = vmatpush1.msra.mxu0 0.0
        %3067 = vmatprep.subr.mxu0 0.0
        %3068 = vmatpush1.msra.mxu0 0.0
        %3069 = vmatprep.subr.mxu0 0.0
        %3070 = vmatpush1.msra.mxu0 0.0
        %3071 = vmatprep.subr.mxu0 0.0
        %3072 = vmatpush1.msra.mxu0 0.0
        %3073 = vmatprep.subr.mxu0 0.0
        %3074 = vmatpush1.msra.mxu0 0.0
        %3075 = vmatprep.subr.mxu0 0.0
        %3076 = vmatpush1.msra.mxu0 0.0
        %3077 = vmatprep.subr.mxu0 0.0
        %3078 = vmatpush1.msra.mxu0 0.0
        %3079 = vmatprep.subr.mxu0 0.0
        %3080 = vmatpush1.msra.mxu0 0.0
        %3081 = vmatprep.subr.mxu0 0.0
        %3082 = vmatpush1.msra.mxu0 0.0
        %3083 = vmatprep.subr.mxu0 0.0
        %3084 = vmatpush1.msra.mxu0 0.0
        %3085 = vmatprep.subr.mxu0 0.0
        %3086 = vmatpush1.msra.mxu0 0.0
        %3087 = vmatprep.subr.mxu0 0.0
        %3088 = vmatpush1.msra.mxu0 0.0
        %3089 = vmatprep.subr.mxu0 0.0
        %3090 = vmatpush1.msra.mxu0 0.0
        %3091 = vmatprep.mubr.f32.mxu0 0.0
        %v3092 = vand.u32 %v1732, 4294901760
        %3093 = vmatmul.mubr.f32.gmra.mrb[0].mxu0 %v3092
        %v3094 = vpop.f32.mrb[0].mxu0
        %v3095 = vadd.f32 %v2994, %v3094
        %v3096 = vpop.f32.mrb[0].mxu0
        %v3097 = vadd.f32 %v2996, %v3096
        %3098 = vmatprep.mubr.f32.mxu0 0.0
        %v3099 = vand.u32 %v1734, 4294901760
        %3100 = vmatmul.mubr.f32.gmra.mrb[0].mxu0 %v3099
        %v3101 = vpop.f32.mrb[0].mxu0
        %v3102 = vadd.f32 %v3001, %v3101
        %v3103 = vpop.f32.mrb[0].mxu0
        %v3104 = vadd.f32 %v3003, %v3103
        %3105 = vmatprep.mubr.f32.mxu0 0.0
        %v3106 = vand.u32 %v1736, 4294901760
        %3107 = vmatmul.mubr.f32.gmra.mrb[0].mxu0 %v3106
        %v3108 = vpop.f32.mrb[0].mxu0
        %v3109 = vadd.f32 %v3008, %v3108
        %v3110 = vpop.f32.mrb[0].mxu0
        %v3111 = vadd.f32 %v3010, %v3110
        %3112 = vmatprep.mubr.f32.mxu0 0.0
        %v3113 = vand.u32 %v1738, 4294901760
        %3114 = vmatmul.mubr.f32.gmra.mrb[0].mxu0 %v3113
        %v3115 = vpop.f32.mrb[0].mxu0
        %v3116 = vadd.f32 %v3015, %v3115
        %v3117 = vpop.f32.mrb[0].mxu0
        %v3118 = vadd.f32 %v3017, %v3117
        %3119 = vdwg.mxu0
        %v3120 = vmax.f32 %v2405, 0.0
        %v3121 = vmax.f32 %v2407, 0.0
        %v3122 = vmax.f32 %v3095, 0.0
        %v3123 = vmax.f32 %v3097, 0.0
        %v3124 = vmax.f32 %v2412, 0.0
        %v3125 = vmax.f32 %v2414, 0.0
        %v3126 = vmax.f32 %v3102, 0.0
        %v3127 = vmax.f32 %v3104, 0.0
        %v3128 = vmax.f32 %v2419, 0.0
        %v3129 = vmax.f32 %v2421, 0.0
        %v3130 = vmax.f32 %v3109, 0.0
        %v3131 = vmax.f32 %v3111, 0.0
        %v3132 = vmax.f32 %v2426, 0.0
        %v3133 = vmax.f32 %v2428, 0.0
        %v3134 = vmax.f32 %v3116, 0.0
        %v3135 = vmax.f32 %v3118, 0.0
        %3136 = vset.pattern.permute.xlu0 100
        %3137 = vperm.xlu0 %3136, %v177
        %v3138 = vpop.permute.xlu0 %3137
        %3140 = vset.pattern.permute.xlu0 100
        %3141 = vperm.xlu0 %3140, %v178
        %v3142 = vpop.permute.xlu0 %3141
        %3144 = vset.pattern.permute.xlu0 100
        %3145 = vperm.xlu0 %3144, %v179
        %v3146 = vpop.permute.xlu0 %3145
        %3148 = vset.pattern.permute.xlu0 100
        %3149 = vperm.xlu0 %3148, %v180
        %v3150 = vpop.permute.xlu0 %3149
        %3152 = vrot.lane.b32.xlu0 %v177, 64
        %v3153 = vpop.permute.xlu0 %3152
        %3154 = vrot.lane.b32.xlu0 %v178, 64
        %v3155 = vpop.permute.xlu0 %3154
        %3156 = vrot.lane.b32.xlu0 %v179, 64
        %v3157 = vpop.permute.xlu0 %3156
        %3158 = vrot.lane.b32.xlu0 %v180, 64
        %v3159 = vpop.permute.xlu0 %3158
        %v3160 = vsel %vm303, %v3153, 0
        %v3162 = vsel %vm303, %v3155, 0
        %v3164 = vsel %vm303, %v3157, 0
        %v3166 = vsel %vm303, %v3159, 0
        %v3168 = vand.u32 %v3121, 4294901760
        %3169 = vmatprep.subr.mxu0 %v3168
        %v3170 = vand.u32 %v3120, 4294901760
        %3171 = vmatpush1.msra.mxu0 %v3170
        %v3172 = vand.u32 %v3125, 4294901760
        %3173 = vmatprep.subr.mxu0 %v3172
        %v3174 = vand.u32 %v3124, 4294901760
        %3175 = vmatpush1.msra.mxu0 %v3174
        %v3176 = vand.u32 %v3129, 4294901760
        %3177 = vmatprep.subr.mxu0 %v3176
        %v3178 = vand.u32 %v3128, 4294901760
        %3179 = vmatpush1.msra.mxu0 %v3178
        %v3180 = vand.u32 %v3133, 4294901760
        %3181 = vmatprep.subr.mxu0 %v3180
        %v3182 = vand.u32 %v3132, 4294901760
        %3183 = vmatpush1.msra.mxu0 %v3182
        %3184 = vmatprep.subr.mxu0 0.0
        %3185 = vmatpush1.msra.mxu0 0.0
        %3186 = vmatprep.subr.mxu0 0.0
        %3187 = vmatpush1.msra.mxu0 0.0
        %3188 = vmatprep.subr.mxu0 0.0
        %3189 = vmatpush1.msra.mxu0 0.0
        %3190 = vmatprep.subr.mxu0 0.0
        %3191 = vmatpush1.msra.mxu0 0.0
        %3192 = vmatprep.subr.mxu0 0.0
        %3193 = vmatpush1.msra.mxu0 0.0
        %3194 = vmatprep.subr.mxu0 0.0
        %3195 = vmatpush1.msra.mxu0 0.0
        %3196 = vmatprep.subr.mxu0 0.0
        %3197 = vmatpush1.msra.mxu0 0.0
        %3198 = vmatprep.subr.mxu0 0.0
        %3199 = vmatpush1.msra.mxu0 0.0
        %3200 = vmatprep.subr.mxu0 0.0
        %3201 = vmatpush1.msra.mxu0 0.0
        %3202 = vmatprep.subr.mxu0 0.0
        %3203 = vmatpush1.msra.mxu0 0.0
        %3204 = vmatprep.subr.mxu0 0.0
        %3205 = vmatpush1.msra.mxu0 0.0
        %3206 = vmatprep.subr.mxu0 0.0
        %3207 = vmatpush1.msra.mxu0 0.0
        %3208 = vmatprep.subr.mxu0 0.0
        %3209 = vmatpush1.msra.mxu0 0.0
        %3210 = vmatprep.subr.mxu0 0.0
        %3211 = vmatpush1.msra.mxu0 0.0
        %3212 = vmatprep.subr.mxu0 0.0
        %3213 = vmatpush1.msra.mxu0 0.0
        %3214 = vmatprep.subr.mxu0 0.0
        %3215 = vmatpush1.msra.mxu0 0.0
        %3216 = vmatprep.subr.mxu0 0.0
        %3217 = vmatpush1.msra.mxu0 0.0
        %3218 = vmatprep.subr.mxu0 0.0
        %3219 = vmatpush1.msra.mxu0 0.0
        %3220 = vmatprep.subr.mxu0 0.0
        %3221 = vmatpush1.msra.mxu0 0.0
        %3222 = vmatprep.subr.mxu0 0.0
        %3223 = vmatpush1.msra.mxu0 0.0
        %3224 = vmatprep.subr.mxu0 0.0
        %3225 = vmatpush1.msra.mxu0 0.0
        %3226 = vmatprep.subr.mxu0 0.0
        %3227 = vmatpush1.msra.mxu0 0.0
        %3228 = vmatprep.subr.mxu0 0.0
        %3229 = vmatpush1.msra.mxu0 0.0
        %3230 = vmatprep.subr.mxu0 0.0
        %3231 = vmatpush1.msra.mxu0 0.0
        %3232 = vmatprep.subr.mxu0 0.0
        %3233 = vmatpush1.msra.mxu0 0.0
        %3234 = vmatprep.subr.mxu0 0.0
        %3235 = vmatpush1.msra.mxu0 0.0
        %3236 = vmatprep.subr.mxu0 0.0
        %3237 = vmatpush1.msra.mxu0 0.0
        %3238 = vmatprep.subr.mxu0 0.0
        %3239 = vmatpush1.msra.mxu0 0.0
        %3240 = vmatprep.mubr.f32.mxu0 0.0
        %v3241 = vand.u32 %v3160, 4294901760
        %v3242 = vsub.f32 %v3160, %v3241
        %v3243 = vand.u32 %v3242, 4294901760
        %v3244 = vsub.f32 %v3242, %v3243
        %v3245 = vand.u32 %v3244, 4294901760
        %3246 = vmatmul.mubr.f32.gmra.mrb[0].mxu0 %v3245
        %v3247 = vpop.f32.mrb[0].mxu0
        %v3248 = vadd.f32 %v3138, %v3247
        %v3249 = vpop.f32.mrb[0].mxu0
        %v3250 = vadd.f32 %v3138, %v3249
        %3251 = vmatprep.mubr.f32.mxu0 0.0
        %v3252 = vand.u32 %v3162, 4294901760
        %v3253 = vsub.f32 %v3162, %v3252
        %v3254 = vand.u32 %v3253, 4294901760
        %v3255 = vsub.f32 %v3253, %v3254
        %v3256 = vand.u32 %v3255, 4294901760
        %3257 = vmatmul.mubr.f32.gmra.mrb[0].mxu0 %v3256
        %v3258 = vpop.f32.mrb[0].mxu0
        %v3259 = vadd.f32 %v3142, %v3258
        %v3260 = vpop.f32.mrb[0].mxu0
        %v3261 = vadd.f32 %v3142, %v3260
        %3262 = vmatprep.mubr.f32.mxu0 0.0
        %v3263 = vand.u32 %v3164, 4294901760
        %v3264 = vsub.f32 %v3164, %v3263
        %v3265 = vand.u32 %v3264, 4294901760
        %v3266 = vsub.f32 %v3264, %v3265
        %v3267 = vand.u32 %v3266, 4294901760
        %3268 = vmatmul.mubr.f32.gmra.mrb[0].mxu0 %v3267
        %v3269 = vpop.f32.mrb[0].mxu0
        %v3270 = vadd.f32 %v3146, %v3269
        %v3271 = vpop.f32.mrb[0].mxu0
        %v3272 = vadd.f32 %v3146, %v3271
        %3273 = vmatprep.mubr.f32.mxu0 0.0
        %v3274 = vand.u32 %v3166, 4294901760
        %v3275 = vsub.f32 %v3166, %v3274
        %v3276 = vand.u32 %v3275, 4294901760
        %v3277 = vsub.f32 %v3275, %v3276
        %v3278 = vand.u32 %v3277, 4294901760
        %3279 = vmatmul.mubr.f32.gmra.mrb[0].mxu0 %v3278
        %v3280 = vpop.f32.mrb[0].mxu0
        %v3281 = vadd.f32 %v3150, %v3280
        %v3282 = vpop.f32.mrb[0].mxu0
        %v3283 = vadd.f32 %v3150, %v3282
        %3284 = vdwg.mxu0
        %v3285 = vand.u32 %v3121, 4294901760
        %v3286 = vsub.f32 %v3121, %v3285
        %v3287 = vand.u32 %v3286, 4294901760
        %v3288 = vsub.f32 %v3286, %v3287
        %v3289 = vand.u32 %v3288, 4294901760
        %3290 = vmatprep.subr.mxu0 %v3289
        %v3291 = vand.u32 %v3120, 4294901760
        %v3292 = vsub.f32 %v3120, %v3291
        %v3293 = vand.u32 %v3292, 4294901760
        %v3294 = vsub.f32 %v3292, %v3293
        %v3295 = vand.u32 %v3294, 4294901760
        %3296 = vmatpush1.msra.mxu0 %v3295
        %v3297 = vand.u32 %v3125, 4294901760
        %v3298 = vsub.f32 %v3125, %v3297
        %v3299 = vand.u32 %v3298, 4294901760
        %v3300 = vsub.f32 %v3298, %v3299
        %v3301 = vand.u32 %v3300, 4294901760
        %3302 = vmatprep.subr.mxu0 %v3301
        %v3303 = vand.u32 %v3124, 4294901760
        %v3304 = vsub.f32 %v3124, %v3303
        %v3305 = vand.u32 %v3304, 4294901760
        %v3306 = vsub.f32 %v3304, %v3305
        %v3307 = vand.u32 %v3306, 4294901760
        %3308 = vmatpush1.msra.mxu0 %v3307
        %v3309 = vand.u32 %v3129, 4294901760
        %v3310 = vsub.f32 %v3129, %v3309
        %v3311 = vand.u32 %v3310, 4294901760
        %v3312 = vsub.f32 %v3310, %v3311
        %v3313 = vand.u32 %v3312, 4294901760
        %3314 = vmatprep.subr.mxu0 %v3313
        %v3315 = vand.u32 %v3128, 4294901760
        %v3316 = vsub.f32 %v3128, %v3315
        %v3317 = vand.u32 %v3316, 4294901760
        %v3318 = vsub.f32 %v3316, %v3317
        %v3319 = vand.u32 %v3318, 4294901760
        %3320 = vmatpush1.msra.mxu0 %v3319
        %v3321 = vand.u32 %v3133, 4294901760
        %v3322 = vsub.f32 %v3133, %v3321
        %v3323 = vand.u32 %v3322, 4294901760
        %v3324 = vsub.f32 %v3322, %v3323
        %v3325 = vand.u32 %v3324, 4294901760
        %3326 = vmatprep.subr.mxu0 %v3325
        %v3327 = vand.u32 %v3132, 4294901760
        %v3328 = vsub.f32 %v3132, %v3327
        %v3329 = vand.u32 %v3328, 4294901760
        %v3330 = vsub.f32 %v3328, %v3329
        %v3331 = vand.u32 %v3330, 4294901760
        %3332 = vmatpush1.msra.mxu0 %v3331
        %3333 = vmatprep.subr.mxu0 0.0
        %3334 = vmatpush1.msra.mxu0 0.0
        %3335 = vmatprep.subr.mxu0 0.0
        %3336 = vmatpush1.msra.mxu0 0.0
        %3337 = vmatprep.subr.mxu0 0.0
        %3338 = vmatpush1.msra.mxu0 0.0
        %3339 = vmatprep.subr.mxu0 0.0
        %3340 = vmatpush1.msra.mxu0 0.0
        %3341 = vmatprep.subr.mxu0 0.0
        %3342 = vmatpush1.msra.mxu0 0.0
        %3343 = vmatprep.subr.mxu0 0.0
        %3344 = vmatpush1.msra.mxu0 0.0
        %3345 = vmatprep.subr.mxu0 0.0
        %3346 = vmatpush1.msra.mxu0 0.0
        %3347 = vmatprep.subr.mxu0 0.0
        %3348 = vmatpush1.msra.mxu0 0.0
        %3349 = vmatprep.subr.mxu0 0.0
        %3350 = vmatpush1.msra.mxu0 0.0
        %3351 = vmatprep.subr.mxu0 0.0
        %3352 = vmatpush1.msra.mxu0 0.0
        %3353 = vmatprep.subr.mxu0 0.0
        %3354 = vmatpush1.msra.mxu0 0.0
        %3355 = vmatprep.subr.mxu0 0.0
        %3356 = vmatpush1.msra.mxu0 0.0
        %3357 = vmatprep.subr.mxu0 0.0
        %3358 = vmatpush1.msra.mxu0 0.0
        %3359 = vmatprep.subr.mxu0 0.0
        %3360 = vmatpush1.msra.mxu0 0.0
        %3361 = vmatprep.subr.mxu0 0.0
        %3362 = vmatpush1.msra.mxu0 0.0
        %3363 = vmatprep.subr.mxu0 0.0
        %3364 = vmatpush1.msra.mxu0 0.0
        %3365 = vmatprep.subr.mxu0 0.0
        %3366 = vmatpush1.msra.mxu0 0.0
        %3367 = vmatprep.subr.mxu0 0.0
        %3368 = vmatpush1.msra.mxu0 0.0
        %3369 = vmatprep.subr.mxu0 0.0
        %3370 = vmatpush1.msra.mxu0 0.0
        %3371 = vmatprep.subr.mxu0 0.0
        %3372 = vmatpush1.msra.mxu0 0.0
        %3373 = vmatprep.subr.mxu0 0.0
        %3374 = vmatpush1.msra.mxu0 0.0
        %3375 = vmatprep.subr.mxu0 0.0
        %3376 = vmatpush1.msra.mxu0 0.0
        %3377 = vmatprep.subr.mxu0 0.0
        %3378 = vmatpush1.msra.mxu0 0.0
        %3379 = vmatprep.subr.mxu0 0.0
        %3380 = vmatpush1.msra.mxu0 0.0
        %3381 = vmatprep.subr.mxu0 0.0
        %3382 = vmatpush1.msra.mxu0 0.0
        %3383 = vmatprep.subr.mxu0 0.0
        %3384 = vmatpush1.msra.mxu0 0.0
        %3385 = vmatprep.subr.mxu0 0.0
        %3386 = vmatpush1.msra.mxu0 0.0
        %3387 = vmatprep.subr.mxu0 0.0
        %3388 = vmatpush1.msra.mxu0 0.0
        %3389 = vmatprep.mubr.f32.mxu0 0.0
        %v3390 = vand.u32 %v3160, 4294901760
        %3391 = vmatmul.mubr.f32.gmra.mrb[0].mxu0 %v3390
        %v3392 = vpop.f32.mrb[0].mxu0
        %v3393 = vadd.f32 %v3248, %v3392
        %v3394 = vpop.f32.mrb[0].mxu0
        %v3395 = vadd.f32 %v3250, %v3394
        %3396 = vmatprep.mubr.f32.mxu0 0.0
        %v3397 = vand.u32 %v3162, 4294901760
        %3398 = vmatmul.mubr.f32.gmra.mrb[0].mxu0 %v3397
        %v3399 = vpop.f32.mrb[0].mxu0
        %v3400 = vadd.f32 %v3259, %v3399
        %v3401 = vpop.f32.mrb[0].mxu0
        %v3402 = vadd.f32 %v3261, %v3401
        %3403 = vmatprep.mubr.f32.mxu0 0.0
        %v3404 = vand.u32 %v3164, 4294901760
        %3405 = vmatmul.mubr.f32.gmra.mrb[0].mxu0 %v3404
        %v3406 = vpop.f32.mrb[0].mxu0
        %v3407 = vadd.f32 %v3270, %v3406
        %v3408 = vpop.f32.mrb[0].mxu0
        %v3409 = vadd.f32 %v3272, %v3408
        %3410 = vmatprep.mubr.f32.mxu0 0.0
        %v3411 = vand.u32 %v3166, 4294901760
        %3412 = vmatmul.mubr.f32.gmra.mrb[0].mxu0 %v3411
        %v3413 = vpop.f32.mrb[0].mxu0
        %v3414 = vadd.f32 %v3281, %v3413
        %v3415 = vpop.f32.mrb[0].mxu0
        %v3416 = vadd.f32 %v3283, %v3415
        %3417 = vdwg.mxu0
        %v3418 = vand.u32 %v3121, 4294901760
        %v3419 = vsub.f32 %v3121, %v3418
        %3420 = vmatprep.subr.mxu0 %v3419
        %v3421 = vand.u32 %v3120, 4294901760
        %v3422 = vsub.f32 %v3120, %v3421
        %3423 = vmatpush1.msra.mxu0 %v3422
        %v3424 = vand.u32 %v3125, 4294901760
        %v3425 = vsub.f32 %v3125, %v3424
        %3426 = vmatprep.subr.mxu0 %v3425
        %v3427 = vand.u32 %v3124, 4294901760
        %v3428 = vsub.f32 %v3124, %v3427
        %3429 = vmatpush1.msra.mxu0 %v3428
        %v3430 = vand.u32 %v3129, 4294901760
        %v3431 = vsub.f32 %v3129, %v3430
        %3432 = vmatprep.subr.mxu0 %v3431
        %v3433 = vand.u32 %v3128, 4294901760
        %v3434 = vsub.f32 %v3128, %v3433
        %3435 = vmatpush1.msra.mxu0 %v3434
        %v3436 = vand.u32 %v3133, 4294901760
        %v3437 = vsub.f32 %v3133, %v3436
        %3438 = vmatprep.subr.mxu0 %v3437
        %v3439 = vand.u32 %v3132, 4294901760
        %v3440 = vsub.f32 %v3132, %v3439
        %3441 = vmatpush1.msra.mxu0 %v3440
        %3442 = vmatprep.subr.mxu0 0.0
        %3443 = vmatpush1.msra.mxu0 0.0
        %3444 = vmatprep.subr.mxu0 0.0
        %3445 = vmatpush1.msra.mxu0 0.0
        %3446 = vmatprep.subr.mxu0 0.0
        %3447 = vmatpush1.msra.mxu0 0.0
        %3448 = vmatprep.subr.mxu0 0.0
        %3449 = vmatpush1.msra.mxu0 0.0
        %3450 = vmatprep.subr.mxu0 0.0
        %3451 = vmatpush1.msra.mxu0 0.0
        %3452 = vmatprep.subr.mxu0 0.0
        %3453 = vmatpush1.msra.mxu0 0.0
        %3454 = vmatprep.subr.mxu0 0.0
        %3455 = vmatpush1.msra.mxu0 0.0
        %3456 = vmatprep.subr.mxu0 0.0
        %3457 = vmatpush1.msra.mxu0 0.0
        %3458 = vmatprep.subr.mxu0 0.0
        %3459 = vmatpush1.msra.mxu0 0.0
        %3460 = vmatprep.subr.mxu0 0.0
        %3461 = vmatpush1.msra.mxu0 0.0
        %3462 = vmatprep.subr.mxu0 0.0
        %3463 = vmatpush1.msra.mxu0 0.0
        %3464 = vmatprep.subr.mxu0 0.0
        %3465 = vmatpush1.msra.mxu0 0.0
        %3466 = vmatprep.subr.mxu0 0.0
        %3467 = vmatpush1.msra.mxu0 0.0
        %3468 = vmatprep.subr.mxu0 0.0
        %3469 = vmatpush1.msra.mxu0 0.0
        %3470 = vmatprep.subr.mxu0 0.0
        %3471 = vmatpush1.msra.mxu0 0.0
        %3472 = vmatprep.subr.mxu0 0.0
        %3473 = vmatpush1.msra.mxu0 0.0
        %3474 = vmatprep.subr.mxu0 0.0
        %3475 = vmatpush1.msra.mxu0 0.0
        %3476 = vmatprep.subr.mxu0 0.0
        %3477 = vmatpush1.msra.mxu0 0.0
        %3478 = vmatprep.subr.mxu0 0.0
        %3479 = vmatpush1.msra.mxu0 0.0
        %3480 = vmatprep.subr.mxu0 0.0
        %3481 = vmatpush1.msra.mxu0 0.0
        %3482 = vmatprep.subr.mxu0 0.0
        %3483 = vmatpush1.msra.mxu0 0.0
        %3484 = vmatprep.subr.mxu0 0.0
        %3485 = vmatpush1.msra.mxu0 0.0
        %3486 = vmatprep.subr.mxu0 0.0
        %3487 = vmatpush1.msra.mxu0 0.0
        %3488 = vmatprep.subr.mxu0 0.0
        %3489 = vmatpush1.msra.mxu0 0.0
        %3490 = vmatprep.subr.mxu0 0.0
        %3491 = vmatpush1.msra.mxu0 0.0
        %3492 = vmatprep.subr.mxu0 0.0
        %3493 = vmatpush1.msra.mxu0 0.0
        %3494 = vmatprep.subr.mxu0 0.0
        %3495 = vmatpush1.msra.mxu0 0.0
        %3496 = vmatprep.subr.mxu0 0.0
        %3497 = vmatpush1.msra.mxu0 0.0
        %3498 = vmatprep.mubr.f32.mxu0 0.0
        %v3499 = vand.u32 %v3160, 4294901760
        %v3500 = vsub.f32 %v3160, %v3499
        %3501 = vmatmul.mubr.f32.gmra.mrb[0].mxu0 %v3500
        %v3502 = vpop.f32.mrb[0].mxu0
        %v3503 = vadd.f32 %v3393, %v3502
        %v3504 = vpop.f32.mrb[0].mxu0
        %v3505 = vadd.f32 %v3395, %v3504
        %3506 = vmatprep.mubr.f32.mxu0 0.0
        %v3507 = vand.u32 %v3162, 4294901760
        %v3508 = vsub.f32 %v3162, %v3507
        %3509 = vmatmul.mubr.f32.gmra.mrb[0].mxu0 %v3508
        %v3510 = vpop.f32.mrb[0].mxu0
        %v3511 = vadd.f32 %v3400, %v3510
        %v3512 = vpop.f32.mrb[0].mxu0
        %v3513 = vadd.f32 %v3402, %v3512
        %3514 = vmatprep.mubr.f32.mxu0 0.0
        %v3515 = vand.u32 %v3164, 4294901760
        %v3516 = vsub.f32 %v3164, %v3515
        %3517 = vmatmul.mubr.f32.gmra.mrb[0].mxu0 %v3516
        %v3518 = vpop.f32.mrb[0].mxu0
        %v3519 = vadd.f32 %v3407, %v3518
        %v3520 = vpop.f32.mrb[0].mxu0
        %v3521 = vadd.f32 %v3409, %v3520
        %3522 = vmatprep.mubr.f32.mxu0 0.0
        %v3523 = vand.u32 %v3166, 4294901760
        %v3524 = vsub.f32 %v3166, %v3523
        %3525 = vmatmul.mubr.f32.gmra.mrb[0].mxu0 %v3524
        %v3526 = vpop.f32.mrb[0].mxu0
        %v3527 = vadd.f32 %v3414, %v3526
        %v3528 = vpop.f32.mrb[0].mxu0
        %v3529 = vadd.f32 %v3416, %v3528
        %3530 = vdwg.mxu0
        %v3531 = vand.u32 %v3121, 4294901760
        %3532 = vmatprep.subr.mxu0 %v3531
        %v3533 = vand.u32 %v3120, 4294901760
        %3534 = vmatpush1.msra.mxu0 %v3533
        %v3535 = vand.u32 %v3125, 4294901760
        %3536 = vmatprep.subr.mxu0 %v3535
        %v3537 = vand.u32 %v3124, 4294901760
        %3538 = vmatpush1.msra.mxu0 %v3537
        %v3539 = vand.u32 %v3129, 4294901760
        %3540 = vmatprep.subr.mxu0 %v3539
        %v3541 = vand.u32 %v3128, 4294901760
        %3542 = vmatpush1.msra.mxu0 %v3541
        %v3543 = vand.u32 %v3133, 4294901760
        %3544 = vmatprep.subr.mxu0 %v3543
        %v3545 = vand.u32 %v3132, 4294901760
        %3546 = vmatpush1.msra.mxu0 %v3545
        %3547 = vmatprep.subr.mxu0 0.0
        %3548 = vmatpush1.msra.mxu0 0.0
        %3549 = vmatprep.subr.mxu0 0.0
        %3550 = vmatpush1.msra.mxu0 0.0
        %3551 = vmatprep.subr.mxu0 0.0
        %3552 = vmatpush1.msra.mxu0 0.0
        %3553 = vmatprep.subr.mxu0 0.0
        %3554 = vmatpush1.msra.mxu0 0.0
        %3555 = vmatprep.subr.mxu0 0.0
        %3556 = vmatpush1.msra.mxu0 0.0
        %3557 = vmatprep.subr.mxu0 0.0
        %3558 = vmatpush1.msra.mxu0 0.0
        %3559 = vmatprep.subr.mxu0 0.0
        %3560 = vmatpush1.msra.mxu0 0.0
        %3561 = vmatprep.subr.mxu0 0.0
        %3562 = vmatpush1.msra.mxu0 0.0
        %3563 = vmatprep.subr.mxu0 0.0
        %3564 = vmatpush1.msra.mxu0 0.0
        %3565 = vmatprep.subr.mxu0 0.0
        %3566 = vmatpush1.msra.mxu0 0.0
        %3567 = vmatprep.subr.mxu0 0.0
        %3568 = vmatpush1.msra.mxu0 0.0
        %3569 = vmatprep.subr.mxu0 0.0
        %3570 = vmatpush1.msra.mxu0 0.0
        %3571 = vmatprep.subr.mxu0 0.0
        %3572 = vmatpush1.msra.mxu0 0.0
        %3573 = vmatprep.subr.mxu0 0.0
        %3574 = vmatpush1.msra.mxu0 0.0
        %3575 = vmatprep.subr.mxu0 0.0
        %3576 = vmatpush1.msra.mxu0 0.0
        %3577 = vmatprep.subr.mxu0 0.0
        %3578 = vmatpush1.msra.mxu0 0.0
        %3579 = vmatprep.subr.mxu0 0.0
        %3580 = vmatpush1.msra.mxu0 0.0
        %3581 = vmatprep.subr.mxu0 0.0
        %3582 = vmatpush1.msra.mxu0 0.0
        %3583 = vmatprep.subr.mxu0 0.0
        %3584 = vmatpush1.msra.mxu0 0.0
        %3585 = vmatprep.subr.mxu0 0.0
        %3586 = vmatpush1.msra.mxu0 0.0
        %3587 = vmatprep.subr.mxu0 0.0
        %3588 = vmatpush1.msra.mxu0 0.0
        %3589 = vmatprep.subr.mxu0 0.0
        %3590 = vmatpush1.msra.mxu0 0.0
        %3591 = vmatprep.subr.mxu0 0.0
        %3592 = vmatpush1.msra.mxu0 0.0
        %3593 = vmatprep.subr.mxu0 0.0
        %3594 = vmatpush1.msra.mxu0 0.0
        %3595 = vmatprep.subr.mxu0 0.0
        %3596 = vmatpush1.msra.mxu0 0.0
        %3597 = vmatprep.subr.mxu0 0.0
        %3598 = vmatpush1.msra.mxu0 0.0
        %3599 = vmatprep.subr.mxu0 0.0
        %3600 = vmatpush1.msra.mxu0 0.0
        %3601 = vmatprep.subr.mxu0 0.0
        %3602 = vmatpush1.msra.mxu0 0.0
        %3603 = vmatprep.mubr.f32.mxu0 0.0
        %v3604 = vand.u32 %v3160, 4294901760
        %v3605 = vsub.f32 %v3160, %v3604
        %v3606 = vand.u32 %v3605, 4294901760
        %3607 = vmatmul.mubr.f32.gmra.mrb[0].mxu0 %v3606
        %v3608 = vpop.f32.mrb[0].mxu0
        %v3609 = vadd.f32 %v3503, %v3608
        %v3610 = vpop.f32.mrb[0].mxu0
        %v3611 = vadd.f32 %v3505, %v3610
        %3612 = vmatprep.mubr.f32.mxu0 0.0
        %v3613 = vand.u32 %v3162, 4294901760
        %v3614 = vsub.f32 %v3162, %v3613
        %v3615 = vand.u32 %v3614, 4294901760
        %3616 = vmatmul.mubr.f32.gmra.mrb[0].mxu0 %v3615
        %v3617 = vpop.f32.mrb[0].mxu0
        %v3618 = vadd.f32 %v3511, %v3617
        %v3619 = vpop.f32.mrb[0].mxu0
        %v3620 = vadd.f32 %v3513, %v3619
        %3621 = vmatprep.mubr.f32.mxu0 0.0
        %v3622 = vand.u32 %v3164, 4294901760
        %v3623 = vsub.f32 %v3164, %v3622
        %v3624 = vand.u32 %v3623, 4294901760
        %3625 = vmatmul.mubr.f32.gmra.mrb[0].mxu0 %v3624
        %v3626 = vpop.f32.mrb[0].mxu0
        %v3627 = vadd.f32 %v3519, %v3626
        %v3628 = vpop.f32.mrb[0].mxu0
        %v3629 = vadd.f32 %v3521, %v3628
        %3630 = vmatprep.mubr.f32.mxu0 0.0
        %v3631 = vand.u32 %v3166, 4294901760
        %v3632 = vsub.f32 %v3166, %v3631
        %v3633 = vand.u32 %v3632, 4294901760
        %3634 = vmatmul.mubr.f32.gmra.mrb[0].mxu0 %v3633
        %v3635 = vpop.f32.mrb[0].mxu0
        %v3636 = vadd.f32 %v3527, %v3635
        %v3637 = vpop.f32.mrb[0].mxu0
        %v3638 = vadd.f32 %v3529, %v3637
        %3639 = vdwg.mxu0
        %v3640 = vand.u32 %v3121, 4294901760
        %v3641 = vsub.f32 %v3121, %v3640
        %v3642 = vand.u32 %v3641, 4294901760
        %3643 = vmatprep.subr.mxu0 %v3642
        %v3644 = vand.u32 %v3120, 4294901760
        %v3645 = vsub.f32 %v3120, %v3644
        %v3646 = vand.u32 %v3645, 4294901760
        %3647 = vmatpush1.msra.mxu0 %v3646
        %v3648 = vand.u32 %v3125, 4294901760
        %v3649 = vsub.f32 %v3125, %v3648
        %v3650 = vand.u32 %v3649, 4294901760
        %3651 = vmatprep.subr.mxu0 %v3650
        %v3652 = vand.u32 %v3124, 4294901760
        %v3653 = vsub.f32 %v3124, %v3652
        %v3654 = vand.u32 %v3653, 4294901760
        %3655 = vmatpush1.msra.mxu0 %v3654
        %v3656 = vand.u32 %v3129, 4294901760
        %v3657 = vsub.f32 %v3129, %v3656
        %v3658 = vand.u32 %v3657, 4294901760
        %3659 = vmatprep.subr.mxu0 %v3658
        %v3660 = vand.u32 %v3128, 4294901760
        %v3661 = vsub.f32 %v3128, %v3660
        %v3662 = vand.u32 %v3661, 4294901760
        %3663 = vmatpush1.msra.mxu0 %v3662
        %v3664 = vand.u32 %v3133, 4294901760
        %v3665 = vsub.f32 %v3133, %v3664
        %v3666 = vand.u32 %v3665, 4294901760
        %3667 = vmatprep.subr.mxu0 %v3666
        %v3668 = vand.u32 %v3132, 4294901760
        %v3669 = vsub.f32 %v3132, %v3668
        %v3670 = vand.u32 %v3669, 4294901760
        %3671 = vmatpush1.msra.mxu0 %v3670
        %3672 = vmatprep.subr.mxu0 0.0
        %3673 = vmatpush1.msra.mxu0 0.0
        %3674 = vmatprep.subr.mxu0 0.0
        %3675 = vmatpush1.msra.mxu0 0.0
        %3676 = vmatprep.subr.mxu0 0.0
        %3677 = vmatpush1.msra.mxu0 0.0
        %3678 = vmatprep.subr.mxu0 0.0
        %3679 = vmatpush1.msra.mxu0 0.0
        %3680 = vmatprep.subr.mxu0 0.0
        %3681 = vmatpush1.msra.mxu0 0.0
        %3682 = vmatprep.subr.mxu0 0.0
        %3683 = vmatpush1.msra.mxu0 0.0
        %3684 = vmatprep.subr.mxu0 0.0
        %3685 = vmatpush1.msra.mxu0 0.0
        %3686 = vmatprep.subr.mxu0 0.0
        %3687 = vmatpush1.msra.mxu0 0.0
        %3688 = vmatprep.subr.mxu0 0.0
        %3689 = vmatpush1.msra.mxu0 0.0
        %3690 = vmatprep.subr.mxu0 0.0
        %3691 = vmatpush1.msra.mxu0 0.0
        %3692 = vmatprep.subr.mxu0 0.0
        %3693 = vmatpush1.msra.mxu0 0.0
        %3694 = vmatprep.subr.mxu0 0.0
        %3695 = vmatpush1.msra.mxu0 0.0
        %3696 = vmatprep.subr.mxu0 0.0
        %3697 = vmatpush1.msra.mxu0 0.0
        %3698 = vmatprep.subr.mxu0 0.0
        %3699 = vmatpush1.msra.mxu0 0.0
        %3700 = vmatprep.subr.mxu0 0.0
        %3701 = vmatpush1.msra.mxu0 0.0
        %3702 = vmatprep.subr.mxu0 0.0
        %3703 = vmatpush1.msra.mxu0 0.0
        %3704 = vmatprep.subr.mxu0 0.0
        %3705 = vmatpush1.msra.mxu0 0.0
        %3706 = vmatprep.subr.mxu0 0.0
        %3707 = vmatpush1.msra.mxu0 0.0
        %3708 = vmatprep.subr.mxu0 0.0
        %3709 = vmatpush1.msra.mxu0 0.0
        %3710 = vmatprep.subr.mxu0 0.0
        %3711 = vmatpush1.msra.mxu0 0.0
        %3712 = vmatprep.subr.mxu0 0.0
        %3713 = vmatpush1.msra.mxu0 0.0
        %3714 = vmatprep.subr.mxu0 0.0
        %3715 = vmatpush1.msra.mxu0 0.0
        %3716 = vmatprep.subr.mxu0 0.0
        %3717 = vmatpush1.msra.mxu0 0.0
        %3718 = vmatprep.subr.mxu0 0.0
        %3719 = vmatpush1.msra.mxu0 0.0
        %3720 = vmatprep.subr.mxu0 0.0
        %3721 = vmatpush1.msra.mxu0 0.0
        %3722 = vmatprep.subr.mxu0 0.0
        %3723 = vmatpush1.msra.mxu0 0.0
        %3724 = vmatprep.subr.mxu0 0.0
        %3725 = vmatpush1.msra.mxu0 0.0
        %3726 = vmatprep.subr.mxu0 0.0
        %3727 = vmatpush1.msra.mxu0 0.0
        %3728 = vmatprep.mubr.f32.mxu0 0.0
        %v3729 = vand.u32 %v3160, 4294901760
        %3730 = vmatmul.mubr.f32.gmra.mrb[0].mxu0 %v3729
        %v3731 = vpop.f32.mrb[0].mxu0
        %v3732 = vadd.f32 %v3609, %v3731
        %v3733 = vpop.f32.mrb[0].mxu0
        %v3734 = vadd.f32 %v3611, %v3733
        %3735 = vmatprep.mubr.f32.mxu0 0.0
        %v3736 = vand.u32 %v3162, 4294901760
        %3737 = vmatmul.mubr.f32.gmra.mrb[0].mxu0 %v3736
        %v3738 = vpop.f32.mrb[0].mxu0
        %v3739 = vadd.f32 %v3618, %v3738
        %v3740 = vpop.f32.mrb[0].mxu0
        %v3741 = vadd.f32 %v3620, %v3740
        %3742 = vmatprep.mubr.f32.mxu0 0.0
        %v3743 = vand.u32 %v3164, 4294901760
        %3744 = vmatmul.mubr.f32.gmra.mrb[0].mxu0 %v3743
        %v3745 = vpop.f32.mrb[0].mxu0
        %v3746 = vadd.f32 %v3627, %v3745
        %v3747 = vpop.f32.mrb[0].mxu0
        %v3748 = vadd.f32 %v3629, %v3747
        %3749 = vmatprep.mubr.f32.mxu0 0.0
        %v3750 = vand.u32 %v3166, 4294901760
        %3751 = vmatmul.mubr.f32.gmra.mrb[0].mxu0 %v3750
        %v3752 = vpop.f32.mrb[0].mxu0
        %v3753 = vadd.f32 %v3636, %v3752
        %v3754 = vpop.f32.mrb[0].mxu0
        %v3755 = vadd.f32 %v3638, %v3754
        %3756 = vdwg.mxu0
        %v3757 = vand.u32 %v3121, 4294901760
        %3758 = vmatprep.subr.mxu0 %v3757
        %v3759 = vand.u32 %v3120, 4294901760
        %3760 = vmatpush1.msra.mxu0 %v3759
        %v3761 = vand.u32 %v3125, 4294901760
        %3762 = vmatprep.subr.mxu0 %v3761
        %v3763 = vand.u32 %v3124, 4294901760
        %3764 = vmatpush1.msra.mxu0 %v3763
        %v3765 = vand.u32 %v3129, 4294901760
        %3766 = vmatprep.subr.mxu0 %v3765
        %v3767 = vand.u32 %v3128, 4294901760
        %3768 = vmatpush1.msra.mxu0 %v3767
        %v3769 = vand.u32 %v3133, 4294901760
        %3770 = vmatprep.subr.mxu0 %v3769
        %v3771 = vand.u32 %v3132, 4294901760
        %3772 = vmatpush1.msra.mxu0 %v3771
        %3773 = vmatprep.subr.mxu0 0.0
        %3774 = vmatpush1.msra.mxu0 0.0
        %3775 = vmatprep.subr.mxu0 0.0
        %3776 = vmatpush1.msra.mxu0 0.0
        %3777 = vmatprep.subr.mxu0 0.0
        %3778 = vmatpush1.msra.mxu0 0.0
        %3779 = vmatprep.subr.mxu0 0.0
        %3780 = vmatpush1.msra.mxu0 0.0
        %3781 = vmatprep.subr.mxu0 0.0
        %3782 = vmatpush1.msra.mxu0 0.0
        %3783 = vmatprep.subr.mxu0 0.0
        %3784 = vmatpush1.msra.mxu0 0.0
        %3785 = vmatprep.subr.mxu0 0.0
        %3786 = vmatpush1.msra.mxu0 0.0
        %3787 = vmatprep.subr.mxu0 0.0
        %3788 = vmatpush1.msra.mxu0 0.0
        %3789 = vmatprep.subr.mxu0 0.0
        %3790 = vmatpush1.msra.mxu0 0.0
        %3791 = vmatprep.subr.mxu0 0.0
        %3792 = vmatpush1.msra.mxu0 0.0
        %3793 = vmatprep.subr.mxu0 0.0
        %3794 = vmatpush1.msra.mxu0 0.0
        %3795 = vmatprep.subr.mxu0 0.0
        %3796 = vmatpush1.msra.mxu0 0.0
        %3797 = vmatprep.subr.mxu0 0.0
        %3798 = vmatpush1.msra.mxu0 0.0
        %3799 = vmatprep.subr.mxu0 0.0
        %3800 = vmatpush1.msra.mxu0 0.0
        %3801 = vmatprep.subr.mxu0 0.0
        %3802 = vmatpush1.msra.mxu0 0.0
        %3803 = vmatprep.subr.mxu0 0.0
        %3804 = vmatpush1.msra.mxu0 0.0
        %3805 = vmatprep.subr.mxu0 0.0
        %3806 = vmatpush1.msra.mxu0 0.0
        %3807 = vmatprep.subr.mxu0 0.0
        %3808 = vmatpush1.msra.mxu0 0.0
        %3809 = vmatprep.subr.mxu0 0.0
        %3810 = vmatpush1.msra.mxu0 0.0
        %3811 = vmatprep.subr.mxu0 0.0
        %3812 = vmatpush1.msra.mxu0 0.0
        %3813 = vmatprep.subr.mxu0 0.0
        %3814 = vmatpush1.msra.mxu0 0.0
        %3815 = vmatprep.subr.mxu0 0.0
        %3816 = vmatpush1.msra.mxu0 0.0
        %3817 = vmatprep.subr.mxu0 0.0
        %3818 = vmatpush1.msra.mxu0 0.0
        %3819 = vmatprep.subr.mxu0 0.0
        %3820 = vmatpush1.msra.mxu0 0.0
        %3821 = vmatprep.subr.mxu0 0.0
        %3822 = vmatpush1.msra.mxu0 0.0
        %3823 = vmatprep.subr.mxu0 0.0
        %3824 = vmatpush1.msra.mxu0 0.0
        %3825 = vmatprep.subr.mxu0 0.0
        %3826 = vmatpush1.msra.mxu0 0.0
        %3827 = vmatprep.subr.mxu0 0.0
        %3828 = vmatpush1.msra.mxu0 0.0
        %3829 = vmatprep.mubr.f32.mxu0 0.0
        %v3830 = vand.u32 %v3160, 4294901760
        %3831 = vmatmul.mubr.f32.gmra.mrb[0].mxu0 %v3830
        %v3832 = vpop.f32.mrb[0].mxu0
        %v3833 = vadd.f32 %v3732, %v3832
        %v3834 = vpop.f32.mrb[0].mxu0
        %v3835 = vadd.f32 %v3734, %v3834
        %3836 = vmatprep.mubr.f32.mxu0 0.0
        %v3837 = vand.u32 %v3162, 4294901760
        %3838 = vmatmul.mubr.f32.gmra.mrb[0].mxu0 %v3837
        %v3839 = vpop.f32.mrb[0].mxu0
        %v3840 = vadd.f32 %v3739, %v3839
        %v3841 = vpop.f32.mrb[0].mxu0
        %v3842 = vadd.f32 %v3741, %v3841
        %3843 = vmatprep.mubr.f32.mxu0 0.0
        %v3844 = vand.u32 %v3164, 4294901760
        %3845 = vmatmul.mubr.f32.gmra.mrb[0].mxu0 %v3844
        %v3846 = vpop.f32.mrb[0].mxu0
        %v3847 = vadd.f32 %v3746, %v3846
        %v3848 = vpop.f32.mrb[0].mxu0
        %v3849 = vadd.f32 %v3748, %v3848
        %3850 = vmatprep.mubr.f32.mxu0 0.0
        %v3851 = vand.u32 %v3166, 4294901760
        %3852 = vmatmul.mubr.f32.gmra.mrb[0].mxu0 %v3851
        %v3853 = vpop.f32.mrb[0].mxu0
        %v3854 = vadd.f32 %v3753, %v3853
        %v3855 = vpop.f32.mrb[0].mxu0
        %v3856 = vadd.f32 %v3755, %v3855
        %3857 = vdwg.mxu0
        %v3858 = vand.u32 %v3123, 4294901760
        %3859 = vmatprep.subr.mxu0 %v3858
        %v3860 = vand.u32 %v3122, 4294901760
        %3861 = vmatpush1.msra.mxu0 %v3860
        %v3862 = vand.u32 %v3127, 4294901760
        %3863 = vmatprep.subr.mxu0 %v3862
        %v3864 = vand.u32 %v3126, 4294901760
        %3865 = vmatpush1.msra.mxu0 %v3864
        %v3866 = vand.u32 %v3131, 4294901760
        %3867 = vmatprep.subr.mxu0 %v3866
        %v3868 = vand.u32 %v3130, 4294901760
        %3869 = vmatpush1.msra.mxu0 %v3868
        %v3870 = vand.u32 %v3135, 4294901760
        %3871 = vmatprep.subr.mxu0 %v3870
        %v3872 = vand.u32 %v3134, 4294901760
        %3873 = vmatpush1.msra.mxu0 %v3872
        %3874 = vmatprep.subr.mxu0 0.0
        %3875 = vmatpush1.msra.mxu0 0.0
        %3876 = vmatprep.subr.mxu0 0.0
        %3877 = vmatpush1.msra.mxu0 0.0
        %3878 = vmatprep.subr.mxu0 0.0
        %3879 = vmatpush1.msra.mxu0 0.0
        %3880 = vmatprep.subr.mxu0 0.0
        %3881 = vmatpush1.msra.mxu0 0.0
        %3882 = vmatprep.subr.mxu0 0.0
        %3883 = vmatpush1.msra.mxu0 0.0
        %3884 = vmatprep.subr.mxu0 0.0
        %3885 = vmatpush1.msra.mxu0 0.0
        %3886 = vmatprep.subr.mxu0 0.0
        %3887 = vmatpush1.msra.mxu0 0.0
        %3888 = vmatprep.subr.mxu0 0.0
        %3889 = vmatpush1.msra.mxu0 0.0
        %3890 = vmatprep.subr.mxu0 0.0
        %3891 = vmatpush1.msra.mxu0 0.0
        %3892 = vmatprep.subr.mxu0 0.0
        %3893 = vmatpush1.msra.mxu0 0.0
        %3894 = vmatprep.subr.mxu0 0.0
        %3895 = vmatpush1.msra.mxu0 0.0
        %3896 = vmatprep.subr.mxu0 0.0
        %3897 = vmatpush1.msra.mxu0 0.0
        %3898 = vmatprep.subr.mxu0 0.0
        %3899 = vmatpush1.msra.mxu0 0.0
        %3900 = vmatprep.subr.mxu0 0.0
        %3901 = vmatpush1.msra.mxu0 0.0
        %3902 = vmatprep.subr.mxu0 0.0
        %3903 = vmatpush1.msra.mxu0 0.0
        %3904 = vmatprep.subr.mxu0 0.0
        %3905 = vmatpush1.msra.mxu0 0.0
        %3906 = vmatprep.subr.mxu0 0.0
        %3907 = vmatpush1.msra.mxu0 0.0
        %3908 = vmatprep.subr.mxu0 0.0
        %3909 = vmatpush1.msra.mxu0 0.0
        %3910 = vmatprep.subr.mxu0 0.0
        %3911 = vmatpush1.msra.mxu0 0.0
        %3912 = vmatprep.subr.mxu0 0.0
        %3913 = vmatpush1.msra.mxu0 0.0
        %3914 = vmatprep.subr.mxu0 0.0
        %3915 = vmatpush1.msra.mxu0 0.0
        %3916 = vmatprep.subr.mxu0 0.0
        %3917 = vmatpush1.msra.mxu0 0.0
        %3918 = vmatprep.subr.mxu0 0.0
        %3919 = vmatpush1.msra.mxu0 0.0
        %3920 = vmatprep.subr.mxu0 0.0
        %3921 = vmatpush1.msra.mxu0 0.0
        %3922 = vmatprep.subr.mxu0 0.0
        %3923 = vmatpush1.msra.mxu0 0.0
        %3924 = vmatprep.subr.mxu0 0.0
        %3925 = vmatpush1.msra.mxu0 0.0
        %3926 = vmatprep.subr.mxu0 0.0
        %3927 = vmatpush1.msra.mxu0 0.0
        %3928 = vmatprep.subr.mxu0 0.0
        %3929 = vmatpush1.msra.mxu0 0.0
        %3930 = vmatprep.mubr.f32.mxu0 0.0
        %v3931 = vand.u32 %v3160, 4294901760
        %v3932 = vsub.f32 %v3160, %v3931
        %v3933 = vand.u32 %v3932, 4294901760
        %v3934 = vsub.f32 %v3932, %v3933
        %v3935 = vand.u32 %v3934, 4294901760
        %3936 = vmatmul.mubr.f32.gmra.mrb[0].mxu0 %v3935
        %v3937 = vpop.f32.mrb[0].mxu0
        %v3938 = vadd.f32 %v3138, %v3937
        %v3939 = vpop.f32.mrb[0].mxu0
        %v3940 = vadd.f32 %v3138, %v3939
        %3941 = vmatprep.mubr.f32.mxu0 0.0
        %v3942 = vand.u32 %v3162, 4294901760
        %v3943 = vsub.f32 %v3162, %v3942
        %v3944 = vand.u32 %v3943, 4294901760
        %v3945 = vsub.f32 %v3943, %v3944
        %v3946 = vand.u32 %v3945, 4294901760
        %3947 = vmatmul.mubr.f32.gmra.mrb[0].mxu0 %v3946
        %v3948 = vpop.f32.mrb[0].mxu0
        %v3949 = vadd.f32 %v3142, %v3948
        %v3950 = vpop.f32.mrb[0].mxu0
        %v3951 = vadd.f32 %v3142, %v3950
        %3952 = vmatprep.mubr.f32.mxu0 0.0
        %v3953 = vand.u32 %v3164, 4294901760
        %v3954 = vsub.f32 %v3164, %v3953
        %v3955 = vand.u32 %v3954, 4294901760
        %v3956 = vsub.f32 %v3954, %v3955
        %v3957 = vand.u32 %v3956, 4294901760
        %3958 = vmatmul.mubr.f32.gmra.mrb[0].mxu0 %v3957
        %v3959 = vpop.f32.mrb[0].mxu0
        %v3960 = vadd.f32 %v3146, %v3959
        %v3961 = vpop.f32.mrb[0].mxu0
        %v3962 = vadd.f32 %v3146, %v3961
        %3963 = vmatprep.mubr.f32.mxu0 0.0
        %v3964 = vand.u32 %v3166, 4294901760
        %v3965 = vsub.f32 %v3166, %v3964
        %v3966 = vand.u32 %v3965, 4294901760
        %v3967 = vsub.f32 %v3965, %v3966
        %v3968 = vand.u32 %v3967, 4294901760
        %3969 = vmatmul.mubr.f32.gmra.mrb[0].mxu0 %v3968
        %v3970 = vpop.f32.mrb[0].mxu0
        %v3971 = vadd.f32 %v3150, %v3970
        %v3972 = vpop.f32.mrb[0].mxu0
        %v3973 = vadd.f32 %v3150, %v3972
        %3974 = vdwg.mxu0
        %v3975 = vand.u32 %v3123, 4294901760
        %v3976 = vsub.f32 %v3123, %v3975
        %v3977 = vand.u32 %v3976, 4294901760
        %v3978 = vsub.f32 %v3976, %v3977
        %v3979 = vand.u32 %v3978, 4294901760
        %3980 = vmatprep.subr.mxu0 %v3979
        %v3981 = vand.u32 %v3122, 4294901760
        %v3982 = vsub.f32 %v3122, %v3981
        %v3983 = vand.u32 %v3982, 4294901760
        %v3984 = vsub.f32 %v3982, %v3983
        %v3985 = vand.u32 %v3984, 4294901760
        %3986 = vmatpush1.msra.mxu0 %v3985
        %v3987 = vand.u32 %v3127, 4294901760
        %v3988 = vsub.f32 %v3127, %v3987
        %v3989 = vand.u32 %v3988, 4294901760
        %v3990 = vsub.f32 %v3988, %v3989
        %v3991 = vand.u32 %v3990, 4294901760
        %3992 = vmatprep.subr.mxu0 %v3991
        %v3993 = vand.u32 %v3126, 4294901760
        %v3994 = vsub.f32 %v3126, %v3993
        %v3995 = vand.u32 %v3994, 4294901760
        %v3996 = vsub.f32 %v3994, %v3995
        %v3997 = vand.u32 %v3996, 4294901760
        %3998 = vmatpush1.msra.mxu0 %v3997
        %v3999 = vand.u32 %v3131, 4294901760
        %v4000 = vsub.f32 %v3131, %v3999
        %v4001 = vand.u32 %v4000, 4294901760
        %v4002 = vsub.f32 %v4000, %v4001
        %v4003 = vand.u32 %v4002, 4294901760
        %4004 = vmatprep.subr.mxu0 %v4003
        %v4005 = vand.u32 %v3130, 4294901760
        %v4006 = vsub.f32 %v3130, %v4005
        %v4007 = vand.u32 %v4006, 4294901760
        %v4008 = vsub.f32 %v4006, %v4007
        %v4009 = vand.u32 %v4008, 4294901760
        %4010 = vmatpush1.msra.mxu0 %v4009
        %v4011 = vand.u32 %v3135, 4294901760
        %v4012 = vsub.f32 %v3135, %v4011
        %v4013 = vand.u32 %v4012, 4294901760
        %v4014 = vsub.f32 %v4012, %v4013
        %v4015 = vand.u32 %v4014, 4294901760
        %4016 = vmatprep.subr.mxu0 %v4015
        %v4017 = vand.u32 %v3134, 4294901760
        %v4018 = vsub.f32 %v3134, %v4017
        %v4019 = vand.u32 %v4018, 4294901760
        %v4020 = vsub.f32 %v4018, %v4019
        %v4021 = vand.u32 %v4020, 4294901760
        %4022 = vmatpush1.msra.mxu0 %v4021
        %4023 = vmatprep.subr.mxu0 0.0
        %4024 = vmatpush1.msra.mxu0 0.0
        %4025 = vmatprep.subr.mxu0 0.0
        %4026 = vmatpush1.msra.mxu0 0.0
        %4027 = vmatprep.subr.mxu0 0.0
        %4028 = vmatpush1.msra.mxu0 0.0
        %4029 = vmatprep.subr.mxu0 0.0
        %4030 = vmatpush1.msra.mxu0 0.0
        %4031 = vmatprep.subr.mxu0 0.0
        %4032 = vmatpush1.msra.mxu0 0.0
        %4033 = vmatprep.subr.mxu0 0.0
        %4034 = vmatpush1.msra.mxu0 0.0
        %4035 = vmatprep.subr.mxu0 0.0
        %4036 = vmatpush1.msra.mxu0 0.0
        %4037 = vmatprep.subr.mxu0 0.0
        %4038 = vmatpush1.msra.mxu0 0.0
        %4039 = vmatprep.subr.mxu0 0.0
        %4040 = vmatpush1.msra.mxu0 0.0
        %4041 = vmatprep.subr.mxu0 0.0
        %4042 = vmatpush1.msra.mxu0 0.0
        %4043 = vmatprep.subr.mxu0 0.0
        %4044 = vmatpush1.msra.mxu0 0.0
        %4045 = vmatprep.subr.mxu0 0.0
        %4046 = vmatpush1.msra.mxu0 0.0
        %4047 = vmatprep.subr.mxu0 0.0
        %4048 = vmatpush1.msra.mxu0 0.0
        %4049 = vmatprep.subr.mxu0 0.0
        %4050 = vmatpush1.msra.mxu0 0.0
        %4051 = vmatprep.subr.mxu0 0.0
        %4052 = vmatpush1.msra.mxu0 0.0
        %4053 = vmatprep.subr.mxu0 0.0
        %4054 = vmatpush1.msra.mxu0 0.0
        %4055 = vmatprep.subr.mxu0 0.0
        %4056 = vmatpush1.msra.mxu0 0.0
        %4057 = vmatprep.subr.mxu0 0.0
        %4058 = vmatpush1.msra.mxu0 0.0
        %4059 = vmatprep.subr.mxu0 0.0
        %4060 = vmatpush1.msra.mxu0 0.0
        %4061 = vmatprep.subr.mxu0 0.0
        %4062 = vmatpush1.msra.mxu0 0.0
        %4063 = vmatprep.subr.mxu0 0.0
        %4064 = vmatpush1.msra.mxu0 0.0
        %4065 = vmatprep.subr.mxu0 0.0
        %4066 = vmatpush1.msra.mxu0 0.0
        %4067 = vmatprep.subr.mxu0 0.0
        %4068 = vmatpush1.msra.mxu0 0.0
        %4069 = vmatprep.subr.mxu0 0.0
        %4070 = vmatpush1.msra.mxu0 0.0
        %4071 = vmatprep.subr.mxu0 0.0
        %4072 = vmatpush1.msra.mxu0 0.0
        %4073 = vmatprep.subr.mxu0 0.0
        %4074 = vmatpush1.msra.mxu0 0.0
        %4075 = vmatprep.subr.mxu0 0.0
        %4076 = vmatpush1.msra.mxu0 0.0
        %4077 = vmatprep.subr.mxu0 0.0
        %4078 = vmatpush1.msra.mxu0 0.0
        %4079 = vmatprep.mubr.f32.mxu0 0.0
        %v4080 = vand.u32 %v3160, 4294901760
        %4081 = vmatmul.mubr.f32.gmra.mrb[0].mxu0 %v4080
        %v4082 = vpop.f32.mrb[0].mxu0
        %v4083 = vadd.f32 %v3938, %v4082
        %v4084 = vpop.f32.mrb[0].mxu0
        %v4085 = vadd.f32 %v3940, %v4084
        %4086 = vmatprep.mubr.f32.mxu0 0.0
        %v4087 = vand.u32 %v3162, 4294901760
        %4088 = vmatmul.mubr.f32.gmra.mrb[0].mxu0 %v4087
        %v4089 = vpop.f32.mrb[0].mxu0
        %v4090 = vadd.f32 %v3949, %v4089
        %v4091 = vpop.f32.mrb[0].mxu0
        %v4092 = vadd.f32 %v3951, %v4091
        %4093 = vmatprep.mubr.f32.mxu0 0.0
        %v4094 = vand.u32 %v3164, 4294901760
        %4095 = vmatmul.mubr.f32.gmra.mrb[0].mxu0 %v4094
        %v4096 = vpop.f32.mrb[0].mxu0
        %v4097 = vadd.f32 %v3960, %v4096
        %v4098 = vpop.f32.mrb[0].mxu0
        %v4099 = vadd.f32 %v3962, %v4098
        %4100 = vmatprep.mubr.f32.mxu0 0.0
        %v4101 = vand.u32 %v3166, 4294901760
        %4102 = vmatmul.mubr.f32.gmra.mrb[0].mxu0 %v4101
        %v4103 = vpop.f32.mrb[0].mxu0
        %v4104 = vadd.f32 %v3971, %v4103
        %v4105 = vpop.f32.mrb[0].mxu0
        %v4106 = vadd.f32 %v3973, %v4105
        %4107 = vdwg.mxu0
        %v4108 = vand.u32 %v3123, 4294901760
        %v4109 = vsub.f32 %v3123, %v4108
        %4110 = vmatprep.subr.mxu0 %v4109
        %v4111 = vand.u32 %v3122, 4294901760
        %v4112 = vsub.f32 %v3122, %v4111
        %4113 = vmatpush1.msra.mxu0 %v4112
        %v4114 = vand.u32 %v3127, 4294901760
        %v4115 = vsub.f32 %v3127, %v4114
        %4116 = vmatprep.subr.mxu0 %v4115
        %v4117 = vand.u32 %v3126, 4294901760
        %v4118 = vsub.f32 %v3126, %v4117
        %4119 = vmatpush1.msra.mxu0 %v4118
        %v4120 = vand.u32 %v3131, 4294901760
        %v4121 = vsub.f32 %v3131, %v4120
        %4122 = vmatprep.subr.mxu0 %v4121
        %v4123 = vand.u32 %v3130, 4294901760
        %v4124 = vsub.f32 %v3130, %v4123
        %4125 = vmatpush1.msra.mxu0 %v4124
        %v4126 = vand.u32 %v3135, 4294901760
        %v4127 = vsub.f32 %v3135, %v4126
        %4128 = vmatprep.subr.mxu0 %v4127
        %v4129 = vand.u32 %v3134, 4294901760
        %v4130 = vsub.f32 %v3134, %v4129
        %4131 = vmatpush1.msra.mxu0 %v4130
        %4132 = vmatprep.subr.mxu0 0.0
        %4133 = vmatpush1.msra.mxu0 0.0
        %4134 = vmatprep.subr.mxu0 0.0
        %4135 = vmatpush1.msra.mxu0 0.0
        %4136 = vmatprep.subr.mxu0 0.0
        %4137 = vmatpush1.msra.mxu0 0.0
        %4138 = vmatprep.subr.mxu0 0.0
        %4139 = vmatpush1.msra.mxu0 0.0
        %4140 = vmatprep.subr.mxu0 0.0
        %4141 = vmatpush1.msra.mxu0 0.0
        %4142 = vmatprep.subr.mxu0 0.0
        %4143 = vmatpush1.msra.mxu0 0.0
        %4144 = vmatprep.subr.mxu0 0.0
        %4145 = vmatpush1.msra.mxu0 0.0
        %4146 = vmatprep.subr.mxu0 0.0
        %4147 = vmatpush1.msra.mxu0 0.0
        %4148 = vmatprep.subr.mxu0 0.0
        %4149 = vmatpush1.msra.mxu0 0.0
        %4150 = vmatprep.subr.mxu0 0.0
        %4151 = vmatpush1.msra.mxu0 0.0
        %4152 = vmatprep.subr.mxu0 0.0
        %4153 = vmatpush1.msra.mxu0 0.0
        %4154 = vmatprep.subr.mxu0 0.0
        %4155 = vmatpush1.msra.mxu0 0.0
        %4156 = vmatprep.subr.mxu0 0.0
        %4157 = vmatpush1.msra.mxu0 0.0
        %4158 = vmatprep.subr.mxu0 0.0
        %4159 = vmatpush1.msra.mxu0 0.0
        %4160 = vmatprep.subr.mxu0 0.0
        %4161 = vmatpush1.msra.mxu0 0.0
        %4162 = vmatprep.subr.mxu0 0.0
        %4163 = vmatpush1.msra.mxu0 0.0
        %4164 = vmatprep.subr.mxu0 0.0
        %4165 = vmatpush1.msra.mxu0 0.0
        %4166 = vmatprep.subr.mxu0 0.0
        %4167 = vmatpush1.msra.mxu0 0.0
        %4168 = vmatprep.subr.mxu0 0.0
        %4169 = vmatpush1.msra.mxu0 0.0
        %4170 = vmatprep.subr.mxu0 0.0
        %4171 = vmatpush1.msra.mxu0 0.0
        %4172 = vmatprep.subr.mxu0 0.0
        %4173 = vmatpush1.msra.mxu0 0.0
        %4174 = vmatprep.subr.mxu0 0.0
        %4175 = vmatpush1.msra.mxu0 0.0
        %4176 = vmatprep.subr.mxu0 0.0
        %4177 = vmatpush1.msra.mxu0 0.0
        %4178 = vmatprep.subr.mxu0 0.0
        %4179 = vmatpush1.msra.mxu0 0.0
        %4180 = vmatprep.subr.mxu0 0.0
        %4181 = vmatpush1.msra.mxu0 0.0
        %4182 = vmatprep.subr.mxu0 0.0
        %4183 = vmatpush1.msra.mxu0 0.0
        %4184 = vmatprep.subr.mxu0 0.0
        %4185 = vmatpush1.msra.mxu0 0.0
        %4186 = vmatprep.subr.mxu0 0.0
        %4187 = vmatpush1.msra.mxu0 0.0
        %4188 = vmatprep.mubr.f32.mxu0 0.0
        %v4189 = vand.u32 %v3160, 4294901760
        %v4190 = vsub.f32 %v3160, %v4189
        %4191 = vmatmul.mubr.f32.gmra.mrb[0].mxu0 %v4190
        %v4192 = vpop.f32.mrb[0].mxu0
        %v4193 = vadd.f32 %v4083, %v4192
        %v4194 = vpop.f32.mrb[0].mxu0
        %v4195 = vadd.f32 %v4085, %v4194
        %4196 = vmatprep.mubr.f32.mxu0 0.0
        %v4197 = vand.u32 %v3162, 4294901760
        %v4198 = vsub.f32 %v3162, %v4197
        %4199 = vmatmul.mubr.f32.gmra.mrb[0].mxu0 %v4198
        %v4200 = vpop.f32.mrb[0].mxu0
        %v4201 = vadd.f32 %v4090, %v4200
        %v4202 = vpop.f32.mrb[0].mxu0
        %v4203 = vadd.f32 %v4092, %v4202
        %4204 = vmatprep.mubr.f32.mxu0 0.0
        %v4205 = vand.u32 %v3164, 4294901760
        %v4206 = vsub.f32 %v3164, %v4205
        %4207 = vmatmul.mubr.f32.gmra.mrb[0].mxu0 %v4206
        %v4208 = vpop.f32.mrb[0].mxu0
        %v4209 = vadd.f32 %v4097, %v4208
        %v4210 = vpop.f32.mrb[0].mxu0
        %v4211 = vadd.f32 %v4099, %v4210
        %4212 = vmatprep.mubr.f32.mxu0 0.0
        %v4213 = vand.u32 %v3166, 4294901760
        %v4214 = vsub.f32 %v3166, %v4213
        %4215 = vmatmul.mubr.f32.gmra.mrb[0].mxu0 %v4214
        %v4216 = vpop.f32.mrb[0].mxu0
        %v4217 = vadd.f32 %v4104, %v4216
        %v4218 = vpop.f32.mrb[0].mxu0
        %v4219 = vadd.f32 %v4106, %v4218
        %4220 = vdwg.mxu0
        %v4221 = vand.u32 %v3123, 4294901760
        %4222 = vmatprep.subr.mxu0 %v4221
        %v4223 = vand.u32 %v3122, 4294901760
        %4224 = vmatpush1.msra.mxu0 %v4223
        %v4225 = vand.u32 %v3127, 4294901760
        %4226 = vmatprep.subr.mxu0 %v4225
        %v4227 = vand.u32 %v3126, 4294901760
        %4228 = vmatpush1.msra.mxu0 %v4227
        %v4229 = vand.u32 %v3131, 4294901760
        %4230 = vmatprep.subr.mxu0 %v4229
        %v4231 = vand.u32 %v3130, 4294901760
        %4232 = vmatpush1.msra.mxu0 %v4231
        %v4233 = vand.u32 %v3135, 4294901760
        %4234 = vmatprep.subr.mxu0 %v4233
        %v4235 = vand.u32 %v3134, 4294901760
        %4236 = vmatpush1.msra.mxu0 %v4235
        %4237 = vmatprep.subr.mxu0 0.0
        %4238 = vmatpush1.msra.mxu0 0.0
        %4239 = vmatprep.subr.mxu0 0.0
        %4240 = vmatpush1.msra.mxu0 0.0
        %4241 = vmatprep.subr.mxu0 0.0
        %4242 = vmatpush1.msra.mxu0 0.0
        %4243 = vmatprep.subr.mxu0 0.0
        %4244 = vmatpush1.msra.mxu0 0.0
        %4245 = vmatprep.subr.mxu0 0.0
        %4246 = vmatpush1.msra.mxu0 0.0
        %4247 = vmatprep.subr.mxu0 0.0
        %4248 = vmatpush1.msra.mxu0 0.0
        %4249 = vmatprep.subr.mxu0 0.0
        %4250 = vmatpush1.msra.mxu0 0.0
        %4251 = vmatprep.subr.mxu0 0.0
        %4252 = vmatpush1.msra.mxu0 0.0
        %4253 = vmatprep.subr.mxu0 0.0
        %4254 = vmatpush1.msra.mxu0 0.0
        %4255 = vmatprep.subr.mxu0 0.0
        %4256 = vmatpush1.msra.mxu0 0.0
        %4257 = vmatprep.subr.mxu0 0.0
        %4258 = vmatpush1.msra.mxu0 0.0
        %4259 = vmatprep.subr.mxu0 0.0
        %4260 = vmatpush1.msra.mxu0 0.0
        %4261 = vmatprep.subr.mxu0 0.0
        %4262 = vmatpush1.msra.mxu0 0.0
        %4263 = vmatprep.subr.mxu0 0.0
        %4264 = vmatpush1.msra.mxu0 0.0
        %4265 = vmatprep.subr.mxu0 0.0
        %4266 = vmatpush1.msra.mxu0 0.0
        %4267 = vmatprep.subr.mxu0 0.0
        %4268 = vmatpush1.msra.mxu0 0.0
        %4269 = vmatprep.subr.mxu0 0.0
        %4270 = vmatpush1.msra.mxu0 0.0
        %4271 = vmatprep.subr.mxu0 0.0
        %4272 = vmatpush1.msra.mxu0 0.0
        %4273 = vmatprep.subr.mxu0 0.0
        %4274 = vmatpush1.msra.mxu0 0.0
        %4275 = vmatprep.subr.mxu0 0.0
        %4276 = vmatpush1.msra.mxu0 0.0
        %4277 = vmatprep.subr.mxu0 0.0
        %4278 = vmatpush1.msra.mxu0 0.0
        %4279 = vmatprep.subr.mxu0 0.0
        %4280 = vmatpush1.msra.mxu0 0.0
        %4281 = vmatprep.subr.mxu0 0.0
        %4282 = vmatpush1.msra.mxu0 0.0
        %4283 = vmatprep.subr.mxu0 0.0
        %4284 = vmatpush1.msra.mxu0 0.0
        %4285 = vmatprep.subr.mxu0 0.0
        %4286 = vmatpush1.msra.mxu0 0.0
        %4287 = vmatprep.subr.mxu0 0.0
        %4288 = vmatpush1.msra.mxu0 0.0
        %4289 = vmatprep.subr.mxu0 0.0
        %4290 = vmatpush1.msra.mxu0 0.0
        %4291 = vmatprep.subr.mxu0 0.0
        %4292 = vmatpush1.msra.mxu0 0.0
        %4293 = vmatprep.mubr.f32.mxu0 0.0
        %v4294 = vand.u32 %v3160, 4294901760
        %v4295 = vsub.f32 %v3160, %v4294
        %v4296 = vand.u32 %v4295, 4294901760
        %4297 = vmatmul.mubr.f32.gmra.mrb[0].mxu0 %v4296
        %v4298 = vpop.f32.mrb[0].mxu0
        %v4299 = vadd.f32 %v4193, %v4298
        %v4300 = vpop.f32.mrb[0].mxu0
        %v4301 = vadd.f32 %v4195, %v4300
        %4302 = vmatprep.mubr.f32.mxu0 0.0
        %v4303 = vand.u32 %v3162, 4294901760
        %v4304 = vsub.f32 %v3162, %v4303
        %v4305 = vand.u32 %v4304, 4294901760
        %4306 = vmatmul.mubr.f32.gmra.mrb[0].mxu0 %v4305
        %v4307 = vpop.f32.mrb[0].mxu0
        %v4308 = vadd.f32 %v4201, %v4307
        %v4309 = vpop.f32.mrb[0].mxu0
        %v4310 = vadd.f32 %v4203, %v4309
        %4311 = vmatprep.mubr.f32.mxu0 0.0
        %v4312 = vand.u32 %v3164, 4294901760
        %v4313 = vsub.f32 %v3164, %v4312
        %v4314 = vand.u32 %v4313, 4294901760
        %4315 = vmatmul.mubr.f32.gmra.mrb[0].mxu0 %v4314
        %v4316 = vpop.f32.mrb[0].mxu0
        %v4317 = vadd.f32 %v4209, %v4316
        %v4318 = vpop.f32.mrb[0].mxu0
        %v4319 = vadd.f32 %v4211, %v4318
        %4320 = vmatprep.mubr.f32.mxu0 0.0
        %v4321 = vand.u32 %v3166, 4294901760
        %v4322 = vsub.f32 %v3166, %v4321
        %v4323 = vand.u32 %v4322, 4294901760
        %4324 = vmatmul.mubr.f32.gmra.mrb[0].mxu0 %v4323
        %v4325 = vpop.f32.mrb[0].mxu0
        %v4326 = vadd.f32 %v4217, %v4325
        %v4327 = vpop.f32.mrb[0].mxu0
        %v4328 = vadd.f32 %v4219, %v4327
        %4329 = vdwg.mxu0
        %v4330 = vand.u32 %v3123, 4294901760
        %v4331 = vsub.f32 %v3123, %v4330
        %v4332 = vand.u32 %v4331, 4294901760
        %4333 = vmatprep.subr.mxu0 %v4332
        %v4334 = vand.u32 %v3122, 4294901760
        %v4335 = vsub.f32 %v3122, %v4334
        %v4336 = vand.u32 %v4335, 4294901760
        %4337 = vmatpush1.msra.mxu0 %v4336
        %v4338 = vand.u32 %v3127, 4294901760
        %v4339 = vsub.f32 %v3127, %v4338
        %v4340 = vand.u32 %v4339, 4294901760
        %4341 = vmatprep.subr.mxu0 %v4340
        %v4342 = vand.u32 %v3126, 4294901760
        %v4343 = vsub.f32 %v3126, %v4342
        %v4344 = vand.u32 %v4343, 4294901760
        %4345 = vmatpush1.msra.mxu0 %v4344
        %v4346 = vand.u32 %v3131, 4294901760
        %v4347 = vsub.f32 %v3131, %v4346
        %v4348 = vand.u32 %v4347, 4294901760
        %4349 = vmatprep.subr.mxu0 %v4348
        %v4350 = vand.u32 %v3130, 4294901760
        %v4351 = vsub.f32 %v3130, %v4350
        %v4352 = vand.u32 %v4351, 4294901760
        %4353 = vmatpush1.msra.mxu0 %v4352
        %v4354 = vand.u32 %v3135, 4294901760
        %v4355 = vsub.f32 %v3135, %v4354
        %v4356 = vand.u32 %v4355, 4294901760
        %4357 = vmatprep.subr.mxu0 %v4356
        %v4358 = vand.u32 %v3134, 4294901760
        %v4359 = vsub.f32 %v3134, %v4358
        %v4360 = vand.u32 %v4359, 4294901760
        %4361 = vmatpush1.msra.mxu0 %v4360
        %4362 = vmatprep.subr.mxu0 0.0
        %4363 = vmatpush1.msra.mxu0 0.0
        %4364 = vmatprep.subr.mxu0 0.0
        %4365 = vmatpush1.msra.mxu0 0.0
        %4366 = vmatprep.subr.mxu0 0.0
        %4367 = vmatpush1.msra.mxu0 0.0
        %4368 = vmatprep.subr.mxu0 0.0
        %4369 = vmatpush1.msra.mxu0 0.0
        %4370 = vmatprep.subr.mxu0 0.0
        %4371 = vmatpush1.msra.mxu0 0.0
        %4372 = vmatprep.subr.mxu0 0.0
        %4373 = vmatpush1.msra.mxu0 0.0
        %4374 = vmatprep.subr.mxu0 0.0
        %4375 = vmatpush1.msra.mxu0 0.0
        %4376 = vmatprep.subr.mxu0 0.0
        %4377 = vmatpush1.msra.mxu0 0.0
        %4378 = vmatprep.subr.mxu0 0.0
        %4379 = vmatpush1.msra.mxu0 0.0
        %4380 = vmatprep.subr.mxu0 0.0
        %4381 = vmatpush1.msra.mxu0 0.0
        %4382 = vmatprep.subr.mxu0 0.0
        %4383 = vmatpush1.msra.mxu0 0.0
        %4384 = vmatprep.subr.mxu0 0.0
        %4385 = vmatpush1.msra.mxu0 0.0
        %4386 = vmatprep.subr.mxu0 0.0
        %4387 = vmatpush1.msra.mxu0 0.0
        %4388 = vmatprep.subr.mxu0 0.0
        %4389 = vmatpush1.msra.mxu0 0.0
        %4390 = vmatprep.subr.mxu0 0.0
        %4391 = vmatpush1.msra.mxu0 0.0
        %4392 = vmatprep.subr.mxu0 0.0
        %4393 = vmatpush1.msra.mxu0 0.0
        %4394 = vmatprep.subr.mxu0 0.0
        %4395 = vmatpush1.msra.mxu0 0.0
        %4396 = vmatprep.subr.mxu0 0.0
        %4397 = vmatpush1.msra.mxu0 0.0
        %4398 = vmatprep.subr.mxu0 0.0
        %4399 = vmatpush1.msra.mxu0 0.0
        %4400 = vmatprep.subr.mxu0 0.0
        %4401 = vmatpush1.msra.mxu0 0.0
        %4402 = vmatprep.subr.mxu0 0.0
        %4403 = vmatpush1.msra.mxu0 0.0
        %4404 = vmatprep.subr.mxu0 0.0
        %4405 = vmatpush1.msra.mxu0 0.0
        %4406 = vmatprep.subr.mxu0 0.0
        %4407 = vmatpush1.msra.mxu0 0.0
        %4408 = vmatprep.subr.mxu0 0.0
        %4409 = vmatpush1.msra.mxu0 0.0
        %4410 = vmatprep.subr.mxu0 0.0
        %4411 = vmatpush1.msra.mxu0 0.0
        %4412 = vmatprep.subr.mxu0 0.0
        %4413 = vmatpush1.msra.mxu0 0.0
        %4414 = vmatprep.subr.mxu0 0.0
        %4415 = vmatpush1.msra.mxu0 0.0
        %4416 = vmatprep.subr.mxu0 0.0
        %4417 = vmatpush1.msra.mxu0 0.0
        %4418 = vmatprep.mubr.f32.mxu0 0.0
        %v4419 = vand.u32 %v3160, 4294901760
        %4420 = vmatmul.mubr.f32.gmra.mrb[0].mxu0 %v4419
        %v4421 = vpop.f32.mrb[0].mxu0
        %v4422 = vadd.f32 %v4299, %v4421
        %v4423 = vpop.f32.mrb[0].mxu0
        %v4424 = vadd.f32 %v4301, %v4423
        %4425 = vmatprep.mubr.f32.mxu0 0.0
        %v4426 = vand.u32 %v3162, 4294901760
        %4427 = vmatmul.mubr.f32.gmra.mrb[0].mxu0 %v4426
        %v4428 = vpop.f32.mrb[0].mxu0
        %v4429 = vadd.f32 %v4308, %v4428
        %v4430 = vpop.f32.mrb[0].mxu0
        %v4431 = vadd.f32 %v4310, %v4430
        %4432 = vmatprep.mubr.f32.mxu0 0.0
        %v4433 = vand.u32 %v3164, 4294901760
        %4434 = vmatmul.mubr.f32.gmra.mrb[0].mxu0 %v4433
        %v4435 = vpop.f32.mrb[0].mxu0
        %v4436 = vadd.f32 %v4317, %v4435
        %v4437 = vpop.f32.mrb[0].mxu0
        %v4438 = vadd.f32 %v4319, %v4437
        %4439 = vmatprep.mubr.f32.mxu0 0.0
        %v4440 = vand.u32 %v3166, 4294901760
        %4441 = vmatmul.mubr.f32.gmra.mrb[0].mxu0 %v4440
        %v4442 = vpop.f32.mrb[0].mxu0
        %v4443 = vadd.f32 %v4326, %v4442
        %v4444 = vpop.f32.mrb[0].mxu0
        %v4445 = vadd.f32 %v4328, %v4444
        %4446 = vdwg.mxu0
        %v4447 = vand.u32 %v3123, 4294901760
        %4448 = vmatprep.subr.mxu0 %v4447
        %v4449 = vand.u32 %v3122, 4294901760
        %4450 = vmatpush1.msra.mxu0 %v4449
        %v4451 = vand.u32 %v3127, 4294901760
        %4452 = vmatprep.subr.mxu0 %v4451
        %v4453 = vand.u32 %v3126, 4294901760
        %4454 = vmatpush1.msra.mxu0 %v4453
        %v4455 = vand.u32 %v3131, 4294901760
        %4456 = vmatprep.subr.mxu0 %v4455
        %v4457 = vand.u32 %v3130, 4294901760
        %4458 = vmatpush1.msra.mxu0 %v4457
        %v4459 = vand.u32 %v3135, 4294901760
        %4460 = vmatprep.subr.mxu0 %v4459
        %v4461 = vand.u32 %v3134, 4294901760
        %4462 = vmatpush1.msra.mxu0 %v4461
        %4463 = vmatprep.subr.mxu0 0.0
        %4464 = vmatpush1.msra.mxu0 0.0
        %4465 = vmatprep.subr.mxu0 0.0
        %4466 = vmatpush1.msra.mxu0 0.0
        %4467 = vmatprep.subr.mxu0 0.0
        %4468 = vmatpush1.msra.mxu0 0.0
        %4469 = vmatprep.subr.mxu0 0.0
        %4470 = vmatpush1.msra.mxu0 0.0
        %4471 = vmatprep.subr.mxu0 0.0
        %4472 = vmatpush1.msra.mxu0 0.0
        %4473 = vmatprep.subr.mxu0 0.0
        %4474 = vmatpush1.msra.mxu0 0.0
        %4475 = vmatprep.subr.mxu0 0.0
        %4476 = vmatpush1.msra.mxu0 0.0
        %4477 = vmatprep.subr.mxu0 0.0
        %4478 = vmatpush1.msra.mxu0 0.0
        %4479 = vmatprep.subr.mxu0 0.0
        %4480 = vmatpush1.msra.mxu0 0.0
        %4481 = vmatprep.subr.mxu0 0.0
        %4482 = vmatpush1.msra.mxu0 0.0
        %4483 = vmatprep.subr.mxu0 0.0
        %4484 = vmatpush1.msra.mxu0 0.0
        %4485 = vmatprep.subr.mxu0 0.0
        %4486 = vmatpush1.msra.mxu0 0.0
        %4487 = vmatprep.subr.mxu0 0.0
        %4488 = vmatpush1.msra.mxu0 0.0
        %4489 = vmatprep.subr.mxu0 0.0
        %4490 = vmatpush1.msra.mxu0 0.0
        %4491 = vmatprep.subr.mxu0 0.0
        %4492 = vmatpush1.msra.mxu0 0.0
        %4493 = vmatprep.subr.mxu0 0.0
        %4494 = vmatpush1.msra.mxu0 0.0
        %4495 = vmatprep.subr.mxu0 0.0
        %4496 = vmatpush1.msra.mxu0 0.0
        %4497 = vmatprep.subr.mxu0 0.0
        %4498 = vmatpush1.msra.mxu0 0.0
        %4499 = vmatprep.subr.mxu0 0.0
        %4500 = vmatpush1.msra.mxu0 0.0
        %4501 = vmatprep.subr.mxu0 0.0
        %4502 = vmatpush1.msra.mxu0 0.0
        %4503 = vmatprep.subr.mxu0 0.0
        %4504 = vmatpush1.msra.mxu0 0.0
        %4505 = vmatprep.subr.mxu0 0.0
        %4506 = vmatpush1.msra.mxu0 0.0
        %4507 = vmatprep.subr.mxu0 0.0
        %4508 = vmatpush1.msra.mxu0 0.0
        %4509 = vmatprep.subr.mxu0 0.0
        %4510 = vmatpush1.msra.mxu0 0.0
        %4511 = vmatprep.subr.mxu0 0.0
        %4512 = vmatpush1.msra.mxu0 0.0
        %4513 = vmatprep.subr.mxu0 0.0
        %4514 = vmatpush1.msra.mxu0 0.0
        %4515 = vmatprep.subr.mxu0 0.0
        %4516 = vmatpush1.msra.mxu0 0.0
        %4517 = vmatprep.subr.mxu0 0.0
        %4518 = vmatpush1.msra.mxu0 0.0
        %4519 = vmatprep.mubr.f32.mxu0 0.0
        %v4520 = vand.u32 %v3160, 4294901760
        %4521 = vmatmul.mubr.f32.gmra.mrb[0].mxu0 %v4520
        %v4522 = vpop.f32.mrb[0].mxu0
        %v4523 = vadd.f32 %v4422, %v4522
        %v4524 = vpop.f32.mrb[0].mxu0
        %v4525 = vadd.f32 %v4424, %v4524
        %4526 = vmatprep.mubr.f32.mxu0 0.0
        %v4527 = vand.u32 %v3162, 4294901760
        %4528 = vmatmul.mubr.f32.gmra.mrb[0].mxu0 %v4527
        %v4529 = vpop.f32.mrb[0].mxu0
        %v4530 = vadd.f32 %v4429, %v4529
        %v4531 = vpop.f32.mrb[0].mxu0
        %v4532 = vadd.f32 %v4431, %v4531
        %4533 = vmatprep.mubr.f32.mxu0 0.0
        %v4534 = vand.u32 %v3164, 4294901760
        %4535 = vmatmul.mubr.f32.gmra.mrb[0].mxu0 %v4534
        %v4536 = vpop.f32.mrb[0].mxu0
        %v4537 = vadd.f32 %v4436, %v4536
        %v4538 = vpop.f32.mrb[0].mxu0
        %v4539 = vadd.f32 %v4438, %v4538
        %4540 = vmatprep.mubr.f32.mxu0 0.0
        %v4541 = vand.u32 %v3166, 4294901760
        %4542 = vmatmul.mubr.f32.gmra.mrb[0].mxu0 %v4541
        %v4543 = vpop.f32.mrb[0].mxu0
        %v4544 = vadd.f32 %v4443, %v4543
        %v4545 = vpop.f32.mrb[0].mxu0
        %v4546 = vadd.f32 %v4445, %v4545
        %4547 = vdwg.mxu0
        %v4548 = vmax.f32 %v3833, 0.0
        %v4549 = vmax.f32 %v3835, 0.0
        %v4550 = vmax.f32 %v4523, 0.0
        %v4551 = vmax.f32 %v4525, 0.0
        %v4552 = vmax.f32 %v3840, 0.0
        %v4553 = vmax.f32 %v3842, 0.0
        %v4554 = vmax.f32 %v4530, 0.0
        %v4555 = vmax.f32 %v4532, 0.0
        %v4556 = vmax.f32 %v3847, 0.0
        %v4557 = vmax.f32 %v3849, 0.0
        %v4558 = vmax.f32 %v4537, 0.0
        %v4559 = vmax.f32 %v4539, 0.0
        %v4560 = vmax.f32 %v3854, 0.0
        %v4561 = vmax.f32 %v3856, 0.0
        %v4562 = vmax.f32 %v4544, 0.0
        %v4563 = vmax.f32 %v4546, 0.0
        %4564 = vset.pattern.permute.xlu0 101
        %4565 = vperm.xlu0 %4564, %v177
        %v4566 = vpop.permute.xlu0 %4565
        %4568 = vset.pattern.permute.xlu0 101
        %4569 = vperm.xlu0 %4568, %v178
        %v4570 = vpop.permute.xlu0 %4569
        %4572 = vset.pattern.permute.xlu0 101
        %4573 = vperm.xlu0 %4572, %v179
        %v4574 = vpop.permute.xlu0 %4573
        %4576 = vset.pattern.permute.xlu0 101
        %4577 = vperm.xlu0 %4576, %v180
        %v4578 = vpop.permute.xlu0 %4577
        %v4580 = vmul.f32 %v4566, %v4548
        %v4581 = vmul.f32 %v4566, %v4549
        %v4582 = vmul.f32 %v4566, %v4550
        %v4583 = vmul.f32 %v4566, %v4551
        %v4584 = vmul.f32 %v4570, %v4552
        %v4585 = vmul.f32 %v4570, %v4553
        %v4586 = vmul.f32 %v4570, %v4554
        %v4587 = vmul.f32 %v4570, %v4555
        %v4588 = vmul.f32 %v4574, %v4556
        %v4589 = vmul.f32 %v4574, %v4557
        %v4590 = vmul.f32 %v4574, %v4558
        %v4591 = vmul.f32 %v4574, %v4559
        %v4592 = vmul.f32 %v4578, %v4560
        %v4593 = vmul.f32 %v4578, %v4561
        %v4594 = vmul.f32 %v4578, %v4562
        %v4595 = vmul.f32 %v4578, %v4563
        %v4596 = vadd.f32 %v4580, %v4584
        %v4597 = vadd.f32 %v4596, %v4588
        %v4598 = vadd.f32 %v4597, %v4592
        %v4599 = vrot.slane %v4598, 4
        %v4600 = vadd.f32 %v4598, %v4599
        %v4601 = vrot.slane %v4600, 2
        %v4602 = vadd.f32 %v4600, %v4601
        %v4603 = vrot.slane %v4602, 1
        %v4604 = vadd.f32 %v4602, %v4603
        %v4605 = vadd.f32 %v4581, %v4585
        %v4606 = vadd.f32 %v4605, %v4589
        %v4607 = vadd.f32 %v4606, %v4593
        %v4608 = vrot.slane %v4607, 4
        %v4609 = vadd.f32 %v4607, %v4608
        %v4610 = vrot.slane %v4609, 2
        %v4611 = vadd.f32 %v4609, %v4610
        %v4612 = vrot.slane %v4611, 1
        %v4613 = vadd.f32 %v4611, %v4612
        %v4614 = vadd.f32 %v4582, %v4586
        %v4615 = vadd.f32 %v4614, %v4590
        %v4616 = vadd.f32 %v4615, %v4594
        %v4617 = vrot.slane %v4616, 4
        %v4618 = vadd.f32 %v4616, %v4617
        %v4619 = vrot.slane %v4618, 2
        %v4620 = vadd.f32 %v4618, %v4619
        %v4621 = vrot.slane %v4620, 1
        %v4622 = vadd.f32 %v4620, %v4621
        %v4623 = vadd.f32 %v4583, %v4587
        %v4624 = vadd.f32 %v4623, %v4591
        %v4625 = vadd.f32 %v4624, %v4595
        %v4626 = vrot.slane %v4625, 4
        %v4627 = vadd.f32 %v4625, %v4626
        %v4628 = vrot.slane %v4627, 2
        %v4629 = vadd.f32 %v4627, %v4628
        %v4630 = vrot.slane %v4629, 1
        %v4631 = vadd.f32 %v4629, %v4630
        %4632 = vset.pattern.permute.xlu0 102
        %4633 = vperm.xlu0 %4632, %v177
        %v4634 = vpop.permute.xlu0 %4633
        %v4636 = vadd.f32 %v4604, %v4634
        %v4637 = vadd.f32 %v4613, %v4634
        %v4638 = vadd.f32 %v4622, %v4634
        %v4639 = vadd.f32 %v4631, %v4634
        %v4644 = vcombine.low %v4636, %v4637
        %v4645 = vcombine.low %v4638, %v4639
        %v4647 = vunpack.c.l.s4 1966171168
        %v4648 = vunpack.c.0.s8 %v4647
        %v4649 = vlaneseq
        %v4650 = vshrl.u32 %v4649, 7
        %v4651 = vsub.s32 %v4648, %v4650
        %v4652 = vrot.slane %v4644, %v4651
        %v4654 = vunpack.c.l.s4 1966171168
        %v4655 = vunpack.c.0.s8 %v4654
        %v4656 = vlaneseq
        %v4657 = vshrl.u32 %v4656, 7
        %v4658 = vsub.s32 %v4655, %v4657
        %v4659 = vrot.slane %v4645, %v4658
        %v4660 = vcombine.low %v4652, %v4659
        %v4662 = vunpack.c.l.s4 1966171168
        %v4663 = vunpack.c.0.s8 %v4662
        %v4664 = vlaneseq
        %v4665 = vshrl.u32 %v4664, 7
        %v4666 = vsub.s32 %v4663, %v4665
        %v4667 = vrot.slane %v4660, %v4666
        %v4669 = vlaneseq
        %vm4670 = vcmp.ge.s32.totalorder %v4669, 0
        %vm4671 = vcmp.lt.s32.totalorder %v4669, 512
        %vm4672 = vmand %vm4670, %vm4671
        %4673 = vst.msk [vmem:[%s174] sm:$0xf] %vm4672, %v4667
        %s4674 = sand.u32 %s75, 1
        %s4675 = scalar_lea.sflag [#allocation4], %s4674
        %s4676 = sand.u32 %s75, 1
        %s4677 = smul.addr %s4676, 4
        %s4678 = scalar_lea.vmem [#allocation7], %s4677
        // Predicated region
        $region37: #{tpu_custom_call.1} parent=27 // pred_check
          %p4679 = pneg %p85
        $region38: #{tpu_custom_call.1} parent=27 // pred_check_branch
          %4681 = sbr.rel (%p4679) target = $region40
        $region39: #{tpu_custom_call.1} parent=27 // pred_region
          %s4682 = smul.u32 4, %s20
          %s4684 = ssub.s32 64, 64
          %4685 = vsyncadd %s4675, %s4684
          %s4686 = smul.addr %s4682, 16
          %s4687 = scalar_lea.hbm %s2, %s4686
          %s4689 = sshll.u32 %s4678, 4
          %s4690 = int_to_ptr.vmem [resolvable:$true] %s4689
          %4692 = dma.vmem_to_hbm [thread:$0]  %s4690, 64, %s4687, %s4675
        $region40: #{tpu_custom_call.1} parent=27 // pred_fallthru
          _
      $region28: #{tpu_custom_call.1} parent=5 // pred_fallthru
        _
      %p4693 = scmp.le.s32.totalorder 2, %s15
      // Predicated region
      $region41: #{tpu_custom_call.1} parent=5 // pred_check
        %p4694 = pneg %p4693
      $region42: #{tpu_custom_call.1} parent=5 // pred_check_branch
        %4696 = sbr.rel (%p4694) target = $region44
      $region43: #{tpu_custom_call.1} parent=5 // pred_region
        %s4697 = ssub.s32 %s15, 2
        // Predicated region
        $region45: #{tpu_custom_call.1} parent=43 // pred_check
          %p4698 = pneg %p91
        $region46: #{tpu_custom_call.1} parent=43 // pred_check_branch
          %4700 = sbr.rel (%p4698) target = $region48
        $region47: #{tpu_custom_call.1} parent=43 // pred_region
          %s4701 = sand.u32 %s76, 1
          %s4702 = scalar_lea.sflag [#allocation4], %s4701
          %s4703 = sand.u32 %s76, 1
          %s4704 = smul.addr %s4703, 4
          %s4705 = scalar_lea.vmem [#allocation7], %s4704
          %4706 = dma.done %s4702, 64
        $region48: #{tpu_custom_call.1} parent=43 // pred_fallthru
          _
      $region44: #{tpu_custom_call.1} parent=5 // pred_fallthru
        _
    $region6: #{tpu_custom_call.1} parent=1 // loop_footer
      %s19 = sadd.s32 1, %s15
    $region7: #{tpu_custom_call.1} parent=1 // loop_footer_branch
      %14 = sbr.rel target = $region3
    $region8: #{tpu_custom_call.1} parent=1 // loop_exit
      _
    %4707 = vsyncpa [#allocation3], 1
    %s4708 = scalar_lea.sflag [#allocation3], 1
    %4709 = vsyncpa %s4708, 1
    %4710 = vsyncpa [#allocation6], 1
    %4711 = vsyncpa [#allocation4], 1
    %s4712 = scalar_lea.sflag [#allocation4], 1
    %4713 = vsyncpa %s4712, 1

</llo_original>
